<compile_context>
chip_gen: v5e
topology: v5e:2x2
jax: 0.10.0
libtpu: 0.0.40
codegen_flags: <defaults>
</compile_context>

<pallas_src>
import math

import jax
import jax.numpy as jnp
from jax.experimental import pallas as pl
from jax.experimental.pallas import tpu as pltpu

D_MODEL = 384
N_HEADS = 6
D_QK = 64                       # per-head q/k dim
D_V = 16                        # per-head v dim (384 // 4 // 6)
D_VTOT = N_HEADS * D_V          # 96
D_QKV = 2 * D_MODEL + D_VTOT    # 864 = fused q|k|v projection width
SCALE = 1.0 / math.sqrt(D_QK)   # SDPA default scale


def _attention_kernel(x_ref, wqkv_ref, bqkv_ref, wd_ref, bd_ref, o_ref):
    tb, s_len, _ = x_ref.shape
    rows = tb * s_len

    # ---- Fused Q/K/V projection: one (rows,384)@(384,864) MXU pass + 1 bias add.
    x2 = x_ref[...].reshape(rows, D_MODEL)
    qkv = jnp.dot(x2, wqkv_ref[...],
                  preferred_element_type=jnp.float32) + bqkv_ref[0]
    q = qkv[:, :D_MODEL].reshape(tb, s_len, D_MODEL)                 # lane-aligned
    k = qkv[:, D_MODEL:2 * D_MODEL].reshape(tb, s_len, D_MODEL)      # lane-aligned
    v = qkv[:, 2 * D_MODEL:].reshape(tb, s_len, D_VTOT)              # lane-aligned

    # ---- Per-head attention, batched over the TB batch elements in this block.
    head_outs = []
    for h in range(N_HEADS):                       # 6 heads, static unroll
        qh = q[:, :, h * D_QK:(h + 1) * D_QK]      # (tb, S, 64)
        kh = k[:, :, h * D_QK:(h + 1) * D_QK]      # (tb, S, 64)
        vh = v[:, :, h * D_V:(h + 1) * D_V]        # (tb, S, 16)

        s = jnp.einsum("bqd,bkd->bqk", qh, kh,
                       preferred_element_type=jnp.float32) * SCALE   # (tb,S,S)
        s = s - jnp.max(s, axis=-1, keepdims=True)
        p = jnp.exp(s)                             # unnormalized probabilities
        l = jnp.sum(p, axis=-1, keepdims=True)     # (tb, S, 1)

        oh = jnp.einsum("bqk,bkd->bqd", p, vh,
                        preferred_element_type=jnp.float32)          # (tb,S,16)
        # Deferred softmax normalization on the small tile (EUP reciprocal).
        head_outs.append(oh * pl.reciprocal(l, approx=False))

    # Lane-dense (rows, 96) slab feeding a single output-dense matmul.
    y = jnp.concatenate(head_outs, axis=-1).reshape(rows, D_VTOT)

    # ---- Single fused output dense: (rows,96)@(96,384), bias added once. ----
    out = jnp.dot(y, wd_ref[...], preferred_element_type=jnp.float32) + bd_ref[0]
    o_ref[...] = out.reshape(tb, s_len, D_MODEL).astype(o_ref.dtype)


def _pick_tb(batch, seq, max_rows=512):
    """Largest TB with batch % TB == 0, TB*seq <= max_rows, and >= 2 grid steps
    (so v7x's two TensorCores both get work). Prefers TB*seq multiples of 128."""
    cands = [tb for tb in range(1, batch + 1)
             if batch % tb == 0
             and tb * seq <= max_rows
             and (batch < 2 or batch // tb >= 2)]
    if not cands:
        return 1
    aligned = [tb for tb in cands if (tb * seq) % 128 == 0]
    return max(aligned) if aligned else max(cands)


def attention_forward(x, params):
    """Pallas TPU forward for the PyTorch `Attention` module.

    x: (B, S, 384). params: weights stored as (in, out) plus 1-D biases.
    Returns a 1-tuple, matching the module's `(self.dense(y),)`.
    """
    B, S, D = x.shape
    assert D == D_MODEL, f"model dim must be {D_MODEL}, got {D}"
    TB = _pick_tb(B, S)
    # TODO(synk): for very long sequences add a flash-style K/V grid axis; here
    # the (TB*S, .) activations per step fit comfortably in VMEM.

    # Host-side packing (tiny, one-time): fused QKV weight/bias, 2-D biases.
    wqkv = jnp.concatenate([params["wq"], params["wk"], params["wv"]], axis=1)
    bqkv = jnp.concatenate(
        [params["bq"], params["bk"], params["bv"]]).reshape(1, D_QKV)
    wd = params["wd"]
    bd2 = params["bd"].reshape(1, D_MODEL)

    def resident(shape):
        # Whole-array block, constant index map -> DMA'd once, stays resident.
        return pl.BlockSpec(shape, lambda b, _n=len(shape): (0,) * _n)

    flops = (2 * B * S * D_MODEL * D_QKV                       # fused QKV proj
             + 2 * B * N_HEADS * S * S * (D_QK + D_V)          # scores + AV
             + 2 * B * S * D_VTOT * D_MODEL)                   # output dense
    bytes_accessed = 4 * (2 * x.size + wqkv.size + bqkv.size + wd.size + bd2.size)
    cost = pl.CostEstimate(flops=flops,
                           transcendentals=B * N_HEADS * S * S,
                           bytes_accessed=bytes_accessed)

    out = pl.pallas_call(
        _attention_kernel,
        out_shape=jax.ShapeDtypeStruct((B, S, D_MODEL), x.dtype),
        grid_spec=pltpu.PrefetchScalarGridSpec(
            num_scalar_prefetch=0,
            grid=(B // TB,),
            in_specs=[
                pl.BlockSpec((TB, S, D_MODEL), lambda b: (b, 0, 0)),   # x
                resident((D_MODEL, D_QKV)),                            # wqkv
                resident((1, D_QKV)),                                  # bqkv
                resident((D_VTOT, D_MODEL)),                           # wd
                resident((1, D_MODEL)),                                # bd
            ],
            out_specs=pl.BlockSpec((TB, S, D_MODEL), lambda b: (b, 0, 0)),
        ),
        compiler_params=pltpu.CompilerParams(
            dimension_semantics=("parallel",),
            vmem_limit_bytes=32 * 1024 * 1024),
        cost_estimate=cost,
    )(x, wqkv, bqkv, wd, bd2)
    return (out,)


if __name__ == "__main__":
    key = jax.random.PRNGKey(0)
    keys = jax.random.split(key, 9)
    B, S = 8, 8          # small demo shapes; TB=4 -> 2 "parallel" grid steps
    x = jax.random.normal(keys[0], (B, S, D_MODEL), dtype=jnp.float32)

    def lin_init(kw, kb, fan_in, fan_out):
        bound = 1.0 / math.sqrt(fan_in)
        w = jax.random.uniform(kw, (fan_in, fan_out), jnp.float32, -bound, bound)
        b = jax.random.uniform(kb, (fan_out,), jnp.float32, -bound, bound)
        return w, b

    wq, bq = lin_init(keys[1], keys[2], D_MODEL, D_MODEL)
    wk, bk = lin_init(keys[3], keys[4], D_MODEL, D_MODEL)
    wv, bv = lin_init(keys[5], keys[6], D_MODEL, D_VTOT)
    wd, bd = lin_init(keys[7], keys[8], D_VTOT, D_MODEL)
    params = dict(wq=wq, bq=bq, wk=wk, bk=bk, wv=wv, bv=bv, wd=wd, bd=bd)

    (out,) = attention_forward(x, params)
    out = jax.block_until_ready(out)

    # Pure-JAX reference matching the PyTorch module exactly.
    def ref(x):
        q = jnp.einsum("bsd,df->bsf", x, wq, precision="highest") + bq
        k = jnp.einsum("bsd,df->bsf", x, wk, precision="highest") + bk
        v = jnp.einsum("bsd,df->bsf", x, wv, precision="highest") + bv
        qh = q.reshape(B, S, N_HEADS, D_QK).transpose(0, 2, 1, 3)
        kh = k.reshape(B, S, N_HEADS, D_QK).transpose(0, 2, 1, 3)
        vh = v.reshape(B, S, N_HEADS, D_V).transpose(0, 2, 1, 3)
        s = jnp.einsum("bhqd,bhkd->bhqk", qh, kh, precision="highest") * SCALE
        p = jax.nn.softmax(s, axis=-1)
        o = jnp.einsum("bhqk,bhkd->bhqd", p, vh, precision="highest")
        y = o.transpose(0, 2, 1, 3).reshape(B, S, D_VTOT)
        return jnp.einsum("bsv,vd->bsd", y, wd, precision="highest") + bd

    expected = ref(x)
    assert out.shape == expected.shape and out.dtype == expected.dtype
    err = float(jnp.max(jnp.abs(out - expected)))
    assert jnp.allclose(out, expected, atol=2e-3, rtol=2e-3), (
        "max abs err = %g" % err)
    print("KERNEL_OK")
</pallas_src>

<mosaic_0001>
module attributes {stable_mosaic.version = 11 : i64} {
  func.func @_attention_kernel(%arg0: i32, %arg1: memref<4x8x384xf32, #tpu.memory_space<vmem>>, %arg2: memref<384x864xf32, #tpu.memory_space<vmem>>, %arg3: memref<1x864xf32, #tpu.memory_space<vmem>>, %arg4: memref<96x384xf32, #tpu.memory_space<vmem>>, %arg5: memref<1x384xf32, #tpu.memory_space<vmem>>, %arg6: memref<4x8x384xf32, #tpu.memory_space<vmem>>) attributes {dimension_semantics = [#tpu.dimension_semantics<parallel>], iteration_bounds = array<i64: 2>, scalar_prefetch = 0 : i64, scratch_operands = 0 : i64, tpu.core_type = #tpu.core_type<tc>, window_params = [{transform_indices = @transform_0, window_bounds = array<i64: 4, 8, 384>}, {pipeline_mode = #tpu.pipeline_mode<synchronous>, transform_indices = @transform_1, window_bounds = array<i64: 384, 864>}, {pipeline_mode = #tpu.pipeline_mode<synchronous>, transform_indices = @transform_2, window_bounds = array<i64: 1, 864>}, {pipeline_mode = #tpu.pipeline_mode<synchronous>, transform_indices = @transform_3, window_bounds = array<i64: 96, 384>}, {pipeline_mode = #tpu.pipeline_mode<synchronous>, transform_indices = @transform_4, window_bounds = array<i64: 1, 384>}, {transform_indices = @transform_5, window_bounds = array<i64: 4, 8, 384>}]} {
    %c0 = arith.constant 0 : index
    %c0_0 = arith.constant 0 : index
    %c0_1 = arith.constant 0 : index
    %0 = vector.load %arg1[%c0, %c0_0, %c0_1] : memref<4x8x384xf32, #tpu.memory_space<vmem>>, vector<4x8x384xf32>
    %1 = vector.shape_cast %0 : vector<4x8x384xf32> to vector<32x384xf32>
    %c0_2 = arith.constant 0 : index
    %c0_3 = arith.constant 0 : index
    %2 = vector.load %arg2[%c0_2, %c0_3] : memref<384x864xf32, #tpu.memory_space<vmem>>, vector<384x864xf32>
    %cst = arith.constant dense<0.000000e+00> : vector<32x864xf32>
    %3 = tpu.matmul %1, %2, %cst {dimension_numbers = #tpu.dot_dimension_numbers<[1], [0], [0], [1], [0, 0, 1, 1], [], []>} : vector<32x384xf32>, vector<384x864xf32>, vector<32x864xf32> -> vector<32x864xf32>
    %c0_4 = arith.constant 0 : index
    %c0_5 = arith.constant 0 : index
    %4 = vector.load %arg3[%c0_4, %c0_5] : memref<1x864xf32, #tpu.memory_space<vmem>>, vector<1x864xf32>
    %5 = vector.shape_cast %4 : vector<1x864xf32> to vector<864xf32>
    %6 = vector.shape_cast %5 : vector<864xf32> to vector<1x864xf32>
    %7 = vector.broadcast %6 : vector<1x864xf32> to vector<32x864xf32>
    %8 = arith.addf %3, %7 : vector<32x864xf32>
    %9 = vector.extract_strided_slice %8 {offsets = [0, 0], sizes = [32, 384], strides = [1, 1]} : vector<32x864xf32> to vector<32x384xf32>
    %10 = vector.shape_cast %9 : vector<32x384xf32> to vector<4x8x384xf32>
    %11 = vector.extract_strided_slice %8 {offsets = [0, 384], sizes = [32, 384], strides = [1, 1]} : vector<32x864xf32> to vector<32x384xf32>
    %12 = vector.shape_cast %11 : vector<32x384xf32> to vector<4x8x384xf32>
    %13 = vector.extract_strided_slice %8 {offsets = [0, 768], sizes = [32, 96], strides = [1, 1]} : vector<32x864xf32> to vector<32x96xf32>
    %14 = vector.shape_cast %13 : vector<32x96xf32> to vector<4x8x96xf32>
    %15 = vector.extract_strided_slice %10 {offsets = [0, 0, 0], sizes = [4, 8, 64], strides = [1, 1, 1]} : vector<4x8x384xf32> to vector<4x8x64xf32>
    %16 = vector.extract_strided_slice %12 {offsets = [0, 0, 0], sizes = [4, 8, 64], strides = [1, 1, 1]} : vector<4x8x384xf32> to vector<4x8x64xf32>
    %17 = vector.extract_strided_slice %14 {offsets = [0, 0, 0], sizes = [4, 8, 16], strides = [1, 1, 1]} : vector<4x8x96xf32> to vector<4x8x16xf32>
    "tpu.trace_start"() <{level = 10 : i32, message = "bqd,bkd->bqk"}> : () -> ()
    %cst_6 = arith.constant dense<0.000000e+00> : vector<4x8x8xf32>
    %18 = tpu.matmul %15, %16, %cst_6 {dimension_numbers = #tpu.dot_dimension_numbers<[2], [2], [1], [1], [0, 0, 0, 1, 1, 1], [0], [0]>} : vector<4x8x64xf32>, vector<4x8x64xf32>, vector<4x8x8xf32> -> vector<4x8x8xf32>
    "tpu.trace_stop"() : () -> ()
    %cst_7 = arith.constant 1.250000e-01 : f32
    %19 = vector.broadcast %cst_7 : f32 to vector<4x8x8xf32>
    %20 = arith.mulf %18, %19 : vector<4x8x8xf32>
    %cst_8 = arith.constant dense<0xFF800000> : vector<4x8xf32>
    %21 = vector.multi_reduction <maximumf>, %20, %cst_8 [2] : vector<4x8x8xf32> to vector<4x8xf32>
    %22 = vector.shape_cast %21 : vector<4x8xf32> to vector<4x8x1xf32>
    %23 = vector.broadcast %22 : vector<4x8x1xf32> to vector<4x8x8xf32>
    %24 = arith.subf %20, %23 : vector<4x8x8xf32>
    %25 = math.exp %24 : vector<4x8x8xf32>
    %cst_9 = arith.constant dense<0.000000e+00> : vector<4x8xf32>
    %26 = vector.multi_reduction <add>, %25, %cst_9 [2] : vector<4x8x8xf32> to vector<4x8xf32>
    %27 = vector.shape_cast %26 : vector<4x8xf32> to vector<4x8x1xf32>
    "tpu.trace_start"() <{level = 10 : i32, message = "bqk,bkd->bqd"}> : () -> ()
    %cst_10 = arith.constant dense<0.000000e+00> : vector<4x8x16xf32>
    %28 = tpu.matmul %25, %17, %cst_10 {dimension_numbers = #tpu.dot_dimension_numbers<[2], [1], [1], [2], [0, 0, 0, 1, 1, 2], [0], [0]>} : vector<4x8x8xf32>, vector<4x8x16xf32>, vector<4x8x16xf32> -> vector<4x8x16xf32>
    "tpu.trace_stop"() : () -> ()
    %29 = tpu.reciprocal %27 : vector<4x8x1xf32> -> vector<4x8x1xf32>
    %30 = vector.broadcast %29 : vector<4x8x1xf32> to vector<4x8x16xf32>
    %31 = arith.mulf %28, %30 : vector<4x8x16xf32>
    %32 = vector.extract_strided_slice %10 {offsets = [0, 0, 64], sizes = [4, 8, 64], strides = [1, 1, 1]} : vector<4x8x384xf32> to vector<4x8x64xf32>
    %33 = vector.extract_strided_slice %12 {offsets = [0, 0, 64], sizes = [4, 8, 64], strides = [1, 1, 1]} : vector<4x8x384xf32> to vector<4x8x64xf32>
    %34 = vector.extract_strided_slice %14 {offsets = [0, 0, 16], sizes = [4, 8, 16], strides = [1, 1, 1]} : vector<4x8x96xf32> to vector<4x8x16xf32>
    "tpu.trace_start"() <{level = 10 : i32, message = "bqd,bkd->bqk"}> : () -> ()
    %cst_11 = arith.constant dense<0.000000e+00> : vector<4x8x8xf32>
    %35 = tpu.matmul %32, %33, %cst_11 {dimension_numbers = #tpu.dot_dimension_numbers<[2], [2], [1], [1], [0, 0, 0, 1, 1, 1], [0], [0]>} : vector<4x8x64xf32>, vector<4x8x64xf32>, vector<4x8x8xf32> -> vector<4x8x8xf32>
    "tpu.trace_stop"() : () -> ()
    %cst_12 = arith.constant 1.250000e-01 : f32
    %36 = vector.broadcast %cst_12 : f32 to vector<4x8x8xf32>
    %37 = arith.mulf %35, %36 : vector<4x8x8xf32>
    %cst_13 = arith.constant dense<0xFF800000> : vector<4x8xf32>
    %38 = vector.multi_reduction <maximumf>, %37, %cst_13 [2] : vector<4x8x8xf32> to vector<4x8xf32>
    %39 = vector.shape_cast %38 : vector<4x8xf32> to vector<4x8x1xf32>
    %40 = vector.broadcast %39 : vector<4x8x1xf32> to vector<4x8x8xf32>
    %41 = arith.subf %37, %40 : vector<4x8x8xf32>
    %42 = math.exp %41 : vector<4x8x8xf32>
    %cst_14 = arith.constant dense<0.000000e+00> : vector<4x8xf32>
    %43 = vector.multi_reduction <add>, %42, %cst_14 [2] : vector<4x8x8xf32> to vector<4x8xf32>
    %44 = vector.shape_cast %43 : vector<4x8xf32> to vector<4x8x1xf32>
    "tpu.trace_start"() <{level = 10 : i32, message = "bqk,bkd->bqd"}> : () -> ()
    %cst_15 = arith.constant dense<0.000000e+00> : vector<4x8x16xf32>
    %45 = tpu.matmul %42, %34, %cst_15 {dimension_numbers = #tpu.dot_dimension_numbers<[2], [1], [1], [2], [0, 0, 0, 1, 1, 2], [0], [0]>} : vector<4x8x8xf32>, vector<4x8x16xf32>, vector<4x8x16xf32> -> vector<4x8x16xf32>
    "tpu.trace_stop"() : () -> ()
    %46 = tpu.reciprocal %44 : vector<4x8x1xf32> -> vector<4x8x1xf32>
    %47 = vector.broadcast %46 : vector<4x8x1xf32> to vector<4x8x16xf32>
    %48 = arith.mulf %45, %47 : vector<4x8x16xf32>
    %49 = vector.extract_strided_slice %10 {offsets = [0, 0, 128], sizes = [4, 8, 64], strides = [1, 1, 1]} : vector<4x8x384xf32> to vector<4x8x64xf32>
    %50 = vector.extract_strided_slice %12 {offsets = [0, 0, 128], sizes = [4, 8, 64], strides = [1, 1, 1]} : vector<4x8x384xf32> to vector<4x8x64xf32>
    %51 = vector.extract_strided_slice %14 {offsets = [0, 0, 32], sizes = [4, 8, 16], strides = [1, 1, 1]} : vector<4x8x96xf32> to vector<4x8x16xf32>
    "tpu.trace_start"() <{level = 10 : i32, message = "bqd,bkd->bqk"}> : () -> ()
    %cst_16 = arith.constant dense<0.000000e+00> : vector<4x8x8xf32>
    %52 = tpu.matmul %49, %50, %cst_16 {dimension_numbers = #tpu.dot_dimension_numbers<[2], [2], [1], [1], [0, 0, 0, 1, 1, 1], [0], [0]>} : vector<4x8x64xf32>, vector<4x8x64xf32>, vector<4x8x8xf32> -> vector<4x8x8xf32>
    "tpu.trace_stop"() : () -> ()
    %cst_17 = arith.constant 1.250000e-01 : f32
    %53 = vector.broadcast %cst_17 : f32 to vector<4x8x8xf32>
    %54 = arith.mulf %52, %53 : vector<4x8x8xf32>
    %cst_18 = arith.constant dense<0xFF800000> : vector<4x8xf32>
    %55 = vector.multi_reduction <maximumf>, %54, %cst_18 [2] : vector<4x8x8xf32> to vector<4x8xf32>
    %56 = vector.shape_cast %55 : vector<4x8xf32> to vector<4x8x1xf32>
    %57 = vector.broadcast %56 : vector<4x8x1xf32> to vector<4x8x8xf32>
    %58 = arith.subf %54, %57 : vector<4x8x8xf32>
    %59 = math.exp %58 : vector<4x8x8xf32>
    %cst_19 = arith.constant dense<0.000000e+00> : vector<4x8xf32>
    %60 = vector.multi_reduction <add>, %59, %cst_19 [2] : vector<4x8x8xf32> to vector<4x8xf32>
    %61 = vector.shape_cast %60 : vector<4x8xf32> to vector<4x8x1xf32>
    "tpu.trace_start"() <{level = 10 : i32, message = "bqk,bkd->bqd"}> : () -> ()
    %cst_20 = arith.constant dense<0.000000e+00> : vector<4x8x16xf32>
    %62 = tpu.matmul %59, %51, %cst_20 {dimension_numbers = #tpu.dot_dimension_numbers<[2], [1], [1], [2], [0, 0, 0, 1, 1, 2], [0], [0]>} : vector<4x8x8xf32>, vector<4x8x16xf32>, vector<4x8x16xf32> -> vector<4x8x16xf32>
    "tpu.trace_stop"() : () -> ()
    %63 = tpu.reciprocal %61 : vector<4x8x1xf32> -> vector<4x8x1xf32>
    %64 = vector.broadcast %63 : vector<4x8x1xf32> to vector<4x8x16xf32>
    %65 = arith.mulf %62, %64 : vector<4x8x16xf32>
    %66 = vector.extract_strided_slice %10 {offsets = [0, 0, 192], sizes = [4, 8, 64], strides = [1, 1, 1]} : vector<4x8x384xf32> to vector<4x8x64xf32>
    %67 = vector.extract_strided_slice %12 {offsets = [0, 0, 192], sizes = [4, 8, 64], strides = [1, 1, 1]} : vector<4x8x384xf32> to vector<4x8x64xf32>
    %68 = vector.extract_strided_slice %14 {offsets = [0, 0, 48], sizes = [4, 8, 16], strides = [1, 1, 1]} : vector<4x8x96xf32> to vector<4x8x16xf32>
    "tpu.trace_start"() <{level = 10 : i32, message = "bqd,bkd->bqk"}> : () -> ()
    %cst_21 = arith.constant dense<0.000000e+00> : vector<4x8x8xf32>
    %69 = tpu.matmul %66, %67, %cst_21 {dimension_numbers = #tpu.dot_dimension_numbers<[2], [2], [1], [1], [0, 0, 0, 1, 1, 1], [0], [0]>} : vector<4x8x64xf32>, vector<4x8x64xf32>, vector<4x8x8xf32> -> vector<4x8x8xf32>
    "tpu.trace_stop"() : () -> ()
    %cst_22 = arith.constant 1.250000e-01 : f32
    %70 = vector.broadcast %cst_22 : f32 to vector<4x8x8xf32>
    %71 = arith.mulf %69, %70 : vector<4x8x8xf32>
    %cst_23 = arith.constant dense<0xFF800000> : vector<4x8xf32>
    %72 = vector.multi_reduction <maximumf>, %71, %cst_23 [2] : vector<4x8x8xf32> to vector<4x8xf32>
    %73 = vector.shape_cast %72 : vector<4x8xf32> to vector<4x8x1xf32>
    %74 = vector.broadcast %73 : vector<4x8x1xf32> to vector<4x8x8xf32>
    %75 = arith.subf %71, %74 : vector<4x8x8xf32>
    %76 = math.exp %75 : vector<4x8x8xf32>
    %cst_24 = arith.constant dense<0.000000e+00> : vector<4x8xf32>
    %77 = vector.multi_reduction <add>, %76, %cst_24 [2] : vector<4x8x8xf32> to vector<4x8xf32>
    %78 = vector.shape_cast %77 : vector<4x8xf32> to vector<4x8x1xf32>
    "tpu.trace_start"() <{level = 10 : i32, message = "bqk,bkd->bqd"}> : () -> ()
    %cst_25 = arith.constant dense<0.000000e+00> : vector<4x8x16xf32>
    %79 = tpu.matmul %76, %68, %cst_25 {dimension_numbers = #tpu.dot_dimension_numbers<[2], [1], [1], [2], [0, 0, 0, 1, 1, 2], [0], [0]>} : vector<4x8x8xf32>, vector<4x8x16xf32>, vector<4x8x16xf32> -> vector<4x8x16xf32>
    "tpu.trace_stop"() : () -> ()
    %80 = tpu.reciprocal %78 : vector<4x8x1xf32> -> vector<4x8x1xf32>
    %81 = vector.broadcast %80 : vector<4x8x1xf32> to vector<4x8x16xf32>
    %82 = arith.mulf %79, %81 : vector<4x8x16xf32>
    %83 = vector.extract_strided_slice %10 {offsets = [0, 0, 256], sizes = [4, 8, 64], strides = [1, 1, 1]} : vector<4x8x384xf32> to vector<4x8x64xf32>
    %84 = vector.extract_strided_slice %12 {offsets = [0, 0, 256], sizes = [4, 8, 64], strides = [1, 1, 1]} : vector<4x8x384xf32> to vector<4x8x64xf32>
    %85 = vector.extract_strided_slice %14 {offsets = [0, 0, 64], sizes = [4, 8, 16], strides = [1, 1, 1]} : vector<4x8x96xf32> to vector<4x8x16xf32>
    "tpu.trace_start"() <{level = 10 : i32, message = "bqd,bkd->bqk"}> : () -> ()
    %cst_26 = arith.constant dense<0.000000e+00> : vector<4x8x8xf32>
    %86 = tpu.matmul %83, %84, %cst_26 {dimension_numbers = #tpu.dot_dimension_numbers<[2], [2], [1], [1], [0, 0, 0, 1, 1, 1], [0], [0]>} : vector<4x8x64xf32>, vector<4x8x64xf32>, vector<4x8x8xf32> -> vector<4x8x8xf32>
    "tpu.trace_stop"() : () -> ()
    %cst_27 = arith.constant 1.250000e-01 : f32
    %87 = vector.broadcast %cst_27 : f32 to vector<4x8x8xf32>
    %88 = arith.mulf %86, %87 : vector<4x8x8xf32>
    %cst_28 = arith.constant dense<0xFF800000> : vector<4x8xf32>
    %89 = vector.multi_reduction <maximumf>, %88, %cst_28 [2] : vector<4x8x8xf32> to vector<4x8xf32>
    %90 = vector.shape_cast %89 : vector<4x8xf32> to vector<4x8x1xf32>
    %91 = vector.broadcast %90 : vector<4x8x1xf32> to vector<4x8x8xf32>
    %92 = arith.subf %88, %91 : vector<4x8x8xf32>
    %93 = math.exp %92 : vector<4x8x8xf32>
    %cst_29 = arith.constant dense<0.000000e+00> : vector<4x8xf32>
    %94 = vector.multi_reduction <add>, %93, %cst_29 [2] : vector<4x8x8xf32> to vector<4x8xf32>
    %95 = vector.shape_cast %94 : vector<4x8xf32> to vector<4x8x1xf32>
    "tpu.trace_start"() <{level = 10 : i32, message = "bqk,bkd->bqd"}> : () -> ()
    %cst_30 = arith.constant dense<0.000000e+00> : vector<4x8x16xf32>
    %96 = tpu.matmul %93, %85, %cst_30 {dimension_numbers = #tpu.dot_dimension_numbers<[2], [1], [1], [2], [0, 0, 0, 1, 1, 2], [0], [0]>} : vector<4x8x8xf32>, vector<4x8x16xf32>, vector<4x8x16xf32> -> vector<4x8x16xf32>
    "tpu.trace_stop"() : () -> ()
    %97 = tpu.reciprocal %95 : vector<4x8x1xf32> -> vector<4x8x1xf32>
    %98 = vector.broadcast %97 : vector<4x8x1xf32> to vector<4x8x16xf32>
    %99 = arith.mulf %96, %98 : vector<4x8x16xf32>
    %100 = vector.extract_strided_slice %10 {offsets = [0, 0, 320], sizes = [4, 8, 64], strides = [1, 1, 1]} : vector<4x8x384xf32> to vector<4x8x64xf32>
    %101 = vector.extract_strided_slice %12 {offsets = [0, 0, 320], sizes = [4, 8, 64], strides = [1, 1, 1]} : vector<4x8x384xf32> to vector<4x8x64xf32>
    %102 = vector.extract_strided_slice %14 {offsets = [0, 0, 80], sizes = [4, 8, 16], strides = [1, 1, 1]} : vector<4x8x96xf32> to vector<4x8x16xf32>
    "tpu.trace_start"() <{level = 10 : i32, message = "bqd,bkd->bqk"}> : () -> ()
    %cst_31 = arith.constant dense<0.000000e+00> : vector<4x8x8xf32>
    %103 = tpu.matmul %100, %101, %cst_31 {dimension_numbers = #tpu.dot_dimension_numbers<[2], [2], [1], [1], [0, 0, 0, 1, 1, 1], [0], [0]>} : vector<4x8x64xf32>, vector<4x8x64xf32>, vector<4x8x8xf32> -> vector<4x8x8xf32>
    "tpu.trace_stop"() : () -> ()
    %cst_32 = arith.constant 1.250000e-01 : f32
    %104 = vector.broadcast %cst_32 : f32 to vector<4x8x8xf32>
    %105 = arith.mulf %103, %104 : vector<4x8x8xf32>
    %cst_33 = arith.constant dense<0xFF800000> : vector<4x8xf32>
    %106 = vector.multi_reduction <maximumf>, %105, %cst_33 [2] : vector<4x8x8xf32> to vector<4x8xf32>
    %107 = vector.shape_cast %106 : vector<4x8xf32> to vector<4x8x1xf32>
    %108 = vector.broadcast %107 : vector<4x8x1xf32> to vector<4x8x8xf32>
    %109 = arith.subf %105, %108 : vector<4x8x8xf32>
    %110 = math.exp %109 : vector<4x8x8xf32>
    %cst_34 = arith.constant dense<0.000000e+00> : vector<4x8xf32>
    %111 = vector.multi_reduction <add>, %110, %cst_34 [2] : vector<4x8x8xf32> to vector<4x8xf32>
    %112 = vector.shape_cast %111 : vector<4x8xf32> to vector<4x8x1xf32>
    "tpu.trace_start"() <{level = 10 : i32, message = "bqk,bkd->bqd"}> : () -> ()
    %cst_35 = arith.constant dense<0.000000e+00> : vector<4x8x16xf32>
    %113 = tpu.matmul %110, %102, %cst_35 {dimension_numbers = #tpu.dot_dimension_numbers<[2], [1], [1], [2], [0, 0, 0, 1, 1, 2], [0], [0]>} : vector<4x8x8xf32>, vector<4x8x16xf32>, vector<4x8x16xf32> -> vector<4x8x16xf32>
    "tpu.trace_stop"() : () -> ()
    %114 = tpu.reciprocal %112 : vector<4x8x1xf32> -> vector<4x8x1xf32>
    %115 = vector.broadcast %114 : vector<4x8x1xf32> to vector<4x8x16xf32>
    %116 = arith.mulf %113, %115 : vector<4x8x16xf32>
    %117 = tpu.concatenate %31, %48, %65, %82, %99, %116 in 2 : vector<4x8x16xf32>, vector<4x8x16xf32>, vector<4x8x16xf32>, vector<4x8x16xf32>, vector<4x8x16xf32>, vector<4x8x16xf32> -> vector<4x8x96xf32>
    %118 = vector.shape_cast %117 : vector<4x8x96xf32> to vector<32x96xf32>
    %c0_36 = arith.constant 0 : index
    %c0_37 = arith.constant 0 : index
    %119 = vector.load %arg4[%c0_36, %c0_37] : memref<96x384xf32, #tpu.memory_space<vmem>>, vector<96x384xf32>
    %cst_38 = arith.constant dense<0.000000e+00> : vector<32x384xf32>
    %120 = tpu.matmul %118, %119, %cst_38 {dimension_numbers = #tpu.dot_dimension_numbers<[1], [0], [0], [1], [0, 0, 1, 1], [], []>} : vector<32x96xf32>, vector<96x384xf32>, vector<32x384xf32> -> vector<32x384xf32>
    %c0_39 = arith.constant 0 : index
    %c0_40 = arith.constant 0 : index
    %121 = vector.load %arg5[%c0_39, %c0_40] : memref<1x384xf32, #tpu.memory_space<vmem>>, vector<1x384xf32>
    %122 = vector.shape_cast %121 : vector<1x384xf32> to vector<384xf32>
    %123 = vector.shape_cast %122 : vector<384xf32> to vector<1x384xf32>
    %124 = vector.broadcast %123 : vector<1x384xf32> to vector<32x384xf32>
    %125 = arith.addf %120, %124 : vector<32x384xf32>
    %126 = vector.shape_cast %125 : vector<32x384xf32> to vector<4x8x384xf32>
    %c0_41 = arith.constant 0 : index
    %c0_42 = arith.constant 0 : index
    %c0_43 = arith.constant 0 : index
    %127 = vector.load %arg6[%c0_41, %c0_42, %c0_43] : memref<4x8x384xf32, #tpu.memory_space<vmem>>, vector<4x8x384xf32>
    tpu.vector_store %arg6[%c0_41, %c0_42, %c0_43], %126 {strides = array<i32>} : memref<4x8x384xf32, #tpu.memory_space<vmem>>, vector<4x8x384xf32>,
    return
  }
  func.func @transform_0(%arg0: i32) -> (i32, i32, i32) {
    %c0_i32 = arith.constant 0 : i32
    %c0_i32_0 = arith.constant 0 : i32
    %c0_i32_1 = arith.constant 0 : i32
    return %arg0, %c0_i32, %c0_i32_0 : i32, i32, i32
  }
  func.func @transform_1(%arg0: i32) -> (i32, i32) {
    %c0_i32 = arith.constant 0 : i32
    %c0_i32_0 = arith.constant 0 : i32
    %c0_i32_1 = arith.constant 0 : i32
    return %c0_i32, %c0_i32_0 : i32, i32
  }
  func.func @transform_2(%arg0: i32) -> (i32, i32) {
    %c0_i32 = arith.constant 0 : i32
    %c0_i32_0 = arith.constant 0 : i32
    %c0_i32_1 = arith.constant 0 : i32
    return %c0_i32, %c0_i32_0 : i32, i32
  }
  func.func @transform_3(%arg0: i32) -> (i32, i32) {
    %c0_i32 = arith.constant 0 : i32
    %c0_i32_0 = arith.constant 0 : i32
    %c0_i32_1 = arith.constant 0 : i32
    return %c0_i32, %c0_i32_0 : i32, i32
  }
  func.func @transform_4(%arg0: i32) -> (i32, i32) {
    %c0_i32 = arith.constant 0 : i32
    %c0_i32_0 = arith.constant 0 : i32
    %c0_i32_1 = arith.constant 0 : i32
    return %c0_i32, %c0_i32_0 : i32, i32
  }
  func.func @transform_5(%arg0: i32) -> (i32, i32, i32) {
    %c0_i32 = arith.constant 0 : i32
    %c0_i32_0 = arith.constant 0 : i32
    %c0_i32_1 = arith.constant 0 : i32
    return %arg0, %c0_i32, %c0_i32_0 : i32, i32, i32
  }
}

</mosaic_0001>

<llo_original>
// kernel: tpu_custom_call.1
$region0: #{tpu_custom_call.1}
  #allocation0 [shape = 'u32[]', space=smem, size = 0x4, offset = 0x4, fixed_abs, tag = 'smem constant byte address 0x4 - core index']
  #allocation1 [shape = 'u32[72,128]{1,0:T(1,128)}', space=vmem, size = 0x9000, scoped, tag = 'internal scratch']
  %s0 = inlined_call_operand.vmem [shape: f32[8,8,384], index: 0, kind: input, shape index: {}]
  %s1 = inlined_call_operand.vmem [shape: f32[384,864], index: 1, kind: input, shape index: {}]
  %s2 = inlined_call_operand.vmem [shape: f32[1,864], index: 2, kind: input, shape index: {}]
  %s3 = inlined_call_operand.vmem [shape: f32[96,384], index: 3, kind: input, shape index: {}]
  %s4 = inlined_call_operand.vmem [shape: f32[1,384], index: 4, kind: input, shape index: {}]
  %s5 = inlined_call_operand.hbm [shape: f32[8,8,384], index: 5, kind: output, shape index: {}]
  %s6 = sld [smem:[#allocation0]]
  $region53: #{tpu_custom_call.1} parent=0
    _
  %s8 = ssub.s32 1, %s6
  %s9 = scalar_select 0, %s8, %s6
  $region1: #{tpu_custom_call.1} parent=0
    #allocation2 [shape = 'u8[98304]{0}', space=vmem, size = 0x18000, scoped, tag = 'output window, operand 0']
    #allocation3 [shape = 's32[2]{0}', space=sflag, size = 0x8, scoped, tag = 'scoped memory for tpu_custom_call.1']
    %10 = vsyncpa [#allocation3], 0
    %s11 = scalar_lea.sflag [#allocation3], 1
    %12 = vsyncpa %s11, 0
    loop: start=0, step=1, limit=4
    $region2: #{tpu_custom_call.1} parent=1 // loop_pre_header
      _
    $region3: #{tpu_custom_call.1} parent=1 // loop_header
      %s14 = sphi 0, %s18
      %p15 = scmp.ge.s32.totalorder %s14, 4
      %s24 = sphi 0, %s26
      %s27 = sphi 0, %s24
      %s28 = sphi 0, %s27
      %s44 = sphi 0, %s28
      %s48 = sphi 0, %s48
      %s50 = sphi 0, %s48
      %s51 = sphi 0, %s50
      %s65 = sphi 0, %s51
      %s69 = sphi 0, %s69
      %s71 = sphi 0, %s69
      %s72 = sphi 0, %s71
      %s86 = sphi 0, %s72
      %s90 = sphi 0, %s90
      %s92 = sphi 0, %s90
      %s93 = sphi 0, %s92
      %s107 = sphi 0, %s93
      %s111 = sphi 0, %s111
      %s113 = sphi 0, %s111
      %s114 = sphi 0, %s113
      %s128 = sphi 0, %s114
      %s134 = sphi 0, %s136
      %s137 = sphi 0, %s134
      %s138 = sphi 0, %s137
      %s154 = sphi 0, %s138
    $region4: #{tpu_custom_call.1} parent=1 // loop_header_branch
      %17 = sbr.rel (%p15) target = $region8
    $region5: #{tpu_custom_call.1} parent=1 // loop_body
      %s19 = ssub.s32 %s14, 1
      %s20 = ssub.s32 %s14, 2
      %s21 = sadd.s32 %s14, 1
      %s22 = ssub.s32 %s14, %s21
      %p23 = scmp.eq.s32.totalorder %s22, 0
      %s25 = sadd.s32 %s24, 1
      %s26 = scalar_select %p23, %s24, %s25
      %p29 = pneg %p23
      %p30 = scmp.eq.s32.totalorder %s14, 1
      %p31 = por %p29, %p30
      %p32 = scmp.ne.s32.totalorder %s24, %s27
      %p33 = scmp.eq.s32.totalorder %s14, 0
      %p34 = por %p32, %p33
      %p35 = scmp.ne.s32.totalorder %s24, %s27
      %p36 = scmp.eq.s32.totalorder %s19, 1
      %p37 = por %p35, %p36
      %p38 = scmp.ne.s32.totalorder %s27, %s28
      %p39 = scmp.eq.s32.totalorder %s19, 0
      %p40 = por %p38, %p39
      %p41 = scmp.ne.s32.totalorder %s27, %s28
      %p42 = scmp.eq.s32.totalorder %s20, 1
      %p43 = por %p41, %p42
      %p45 = scmp.ne.s32.totalorder %s28, %s44
      %p46 = scmp.eq.s32.totalorder %s20, 0
      %p47 = por %p45, %p46
      %s49 = sadd.s32 %s48, 1
      %p52 = scmp.eq.s32.totalorder %s14, 1
      %p53 = scmp.ne.s32.totalorder %s48, %s50
      %p54 = scmp.eq.s32.totalorder %s14, 0
      %p55 = por %p53, %p54
      %p56 = scmp.ne.s32.totalorder %s48, %s50
      %p57 = scmp.eq.s32.totalorder %s19, 1
      %p58 = por %p56, %p57
      %p59 = scmp.ne.s32.totalorder %s50, %s51
      %p60 = scmp.eq.s32.totalorder %s19, 0
      %p61 = por %p59, %p60
      %p62 = scmp.ne.s32.totalorder %s50, %s51
      %p63 = scmp.eq.s32.totalorder %s20, 1
      %p64 = por %p62, %p63
      %p66 = scmp.ne.s32.totalorder %s51, %s65
      %p67 = scmp.eq.s32.totalorder %s20, 0
      %p68 = por %p66, %p67
      %s70 = sadd.s32 %s69, 1
      %p73 = scmp.eq.s32.totalorder %s14, 1
      %p74 = scmp.ne.s32.totalorder %s69, %s71
      %p75 = scmp.eq.s32.totalorder %s14, 0
      %p76 = por %p74, %p75
      %p77 = scmp.ne.s32.totalorder %s69, %s71
      %p78 = scmp.eq.s32.totalorder %s19, 1
      %p79 = por %p77, %p78
      %p80 = scmp.ne.s32.totalorder %s71, %s72
      %p81 = scmp.eq.s32.totalorder %s19, 0
      %p82 = por %p80, %p81
      %p83 = scmp.ne.s32.totalorder %s71, %s72
      %p84 = scmp.eq.s32.totalorder %s20, 1
      %p85 = por %p83, %p84
      %p87 = scmp.ne.s32.totalorder %s72, %s86
      %p88 = scmp.eq.s32.totalorder %s20, 0
      %p89 = por %p87, %p88
      %s91 = sadd.s32 %s90, 1
      %p94 = scmp.eq.s32.totalorder %s14, 1
      %p95 = scmp.ne.s32.totalorder %s90, %s92
      %p96 = scmp.eq.s32.totalorder %s14, 0
      %p97 = por %p95, %p96
      %p98 = scmp.ne.s32.totalorder %s90, %s92
      %p99 = scmp.eq.s32.totalorder %s19, 1
      %p100 = por %p98, %p99
      %p101 = scmp.ne.s32.totalorder %s92, %s93
      %p102 = scmp.eq.s32.totalorder %s19, 0
      %p103 = por %p101, %p102
      %p104 = scmp.ne.s32.totalorder %s92, %s93
      %p105 = scmp.eq.s32.totalorder %s20, 1
      %p106 = por %p104, %p105
      %p108 = scmp.ne.s32.totalorder %s93, %s107
      %p109 = scmp.eq.s32.totalorder %s20, 0
      %p110 = por %p108, %p109
      %s112 = sadd.s32 %s111, 1
      %p115 = scmp.eq.s32.totalorder %s14, 1
      %p116 = scmp.ne.s32.totalorder %s111, %s113
      %p117 = scmp.eq.s32.totalorder %s14, 0
      %p118 = por %p116, %p117
      %p119 = scmp.ne.s32.totalorder %s111, %s113
      %p120 = scmp.eq.s32.totalorder %s19, 1
      %p121 = por %p119, %p120
      %p122 = scmp.ne.s32.totalorder %s113, %s114
      %p123 = scmp.eq.s32.totalorder %s19, 0
      %p124 = por %p122, %p123
      %p125 = scmp.ne.s32.totalorder %s113, %s114
      %p126 = scmp.eq.s32.totalorder %s20, 1
      %p127 = por %p125, %p126
      %p129 = scmp.ne.s32.totalorder %s114, %s128
      %p130 = scmp.eq.s32.totalorder %s20, 0
      %p131 = por %p129, %p130
      %s132 = ssub.s32 %s14, %s21
      %p133 = scmp.eq.s32.totalorder %s132, 0
      %s135 = sadd.s32 %s134, 1
      %s136 = scalar_select %p133, %s134, %s135
      %p139 = pneg %p133
      %p140 = scmp.eq.s32.totalorder %s14, 1
      %p141 = por %p139, %p140
      %p142 = scmp.ne.s32.totalorder %s134, %s137
      %p143 = scmp.eq.s32.totalorder %s14, 0
      %p144 = por %p142, %p143
      %p145 = scmp.ne.s32.totalorder %s134, %s137
      %p146 = scmp.eq.s32.totalorder %s19, 1
      %p147 = por %p145, %p146
      %p148 = scmp.ne.s32.totalorder %s137, %s138
      %p149 = scmp.eq.s32.totalorder %s19, 0
      %p150 = por %p148, %p149
      %p151 = scmp.ne.s32.totalorder %s137, %s138
      %p152 = scmp.eq.s32.totalorder %s20, 1
      %p153 = por %p151, %p152
      %p155 = scmp.ne.s32.totalorder %s138, %s154
      %p156 = scmp.eq.s32.totalorder %s20, 0
      %p157 = por %p155, %p156
      %p158 = scmp.le.s32.totalorder 1, %s14
      %p159 = scmp.lt.s32.totalorder %s14, 3
      %p160 = pnand %p158, %p159
      %p161 = pneg %p160
      // Predicated region
      $region9: #{tpu_custom_call.1} parent=5 // pred_check
        _
      $region10: #{tpu_custom_call.1} parent=5 // pred_check_branch
        %163 = sbr.rel (%p160) target = $region12
      $region11: #{tpu_custom_call.1} parent=5 // pred_region
        %s164 = ssub.s32 %s14, 1
        // Predicated region
        $region13: #{tpu_custom_call.1} parent=11 // pred_check
          %p165 = pneg %p61
        $region14: #{tpu_custom_call.1} parent=11 // pred_check_branch
          %167 = sbr.rel (%p165) target = $region16
        $region15: #{tpu_custom_call.1} parent=11 // pred_region
          _
        $region16: #{tpu_custom_call.1} parent=11 // pred_fallthru
          _
        // Predicated region
        $region17: #{tpu_custom_call.1} parent=11 // pred_check
          %p168 = pneg %p82
        $region18: #{tpu_custom_call.1} parent=11 // pred_check_branch
          %170 = sbr.rel (%p168) target = $region20
        $region19: #{tpu_custom_call.1} parent=11 // pred_region
          _
        $region20: #{tpu_custom_call.1} parent=11 // pred_fallthru
          _
        // Predicated region
        $region21: #{tpu_custom_call.1} parent=11 // pred_check
          %p171 = pneg %p103
        $region22: #{tpu_custom_call.1} parent=11 // pred_check_branch
          %173 = sbr.rel (%p171) target = $region24
        $region23: #{tpu_custom_call.1} parent=11 // pred_region
          _
        $region24: #{tpu_custom_call.1} parent=11 // pred_fallthru
          _
        // Predicated region
        $region25: #{tpu_custom_call.1} parent=11 // pred_check
          %p174 = pneg %p124
        $region26: #{tpu_custom_call.1} parent=11 // pred_check_branch
          %176 = sbr.rel (%p174) target = $region28
        $region27: #{tpu_custom_call.1} parent=11 // pred_region
          _
        $region28: #{tpu_custom_call.1} parent=11 // pred_fallthru
          _
      $region12: #{tpu_custom_call.1} parent=5 // pred_fallthru
        _
      %p177 = scmp.lt.s32.totalorder %s14, 2
      // Predicated region
      $region29: #{tpu_custom_call.1} parent=5 // pred_check
        %p178 = pneg %p177
      $region30: #{tpu_custom_call.1} parent=5 // pred_check_branch
        %180 = sbr.rel (%p178) target = $region32
      $region31: #{tpu_custom_call.1} parent=5 // pred_region
        // Predicated region
        $region33: #{tpu_custom_call.1} parent=31 // pred_check
          %p181 = pneg %p34
        $region34: #{tpu_custom_call.1} parent=31 // pred_check_branch
          %183 = sbr.rel (%p181) target = $region36
        $region35: #{tpu_custom_call.1} parent=31 // pred_region
          %s184 = smul.u32 4, %s14
          %p185 = scmp.lt.s32.totalorder %s184, 7
          %s186 = scalar_select %p185, %s184, 7
          %s187 = smul.addr %s186, 3
          %s188 = smul.addr %s187, 8
          %s189 = scalar_lea.vmem %s0, %s188
          %s190 = smul.u32 4, %s14
        $region36: #{tpu_custom_call.1} parent=31 // pred_fallthru
          _
      $region32: #{tpu_custom_call.1} parent=5 // pred_fallthru
        _
      %p191 = scmp.le.s32.totalorder 1, %s14
      %p192 = scmp.lt.s32.totalorder %s14, 3
      %p193 = pnand %p191, %p192
      %p194 = pneg %p193
      // Predicated region
      $region37: #{tpu_custom_call.1} parent=5 // pred_check
        _
      $region38: #{tpu_custom_call.1} parent=5 // pred_check_branch
        %196 = sbr.rel (%p193) target = $region40
      $region39: #{tpu_custom_call.1} parent=5 // pred_region
        %s197 = ssub.s32 %s14, 1
        %s198 = smul.u32 4, %s19
        %p199 = scmp.lt.s32.totalorder %s198, 7
        %s200 = scalar_select %p199, %s198, 7
        %s201 = smul.addr %s200, 3
        %s202 = smul.addr %s201, 8
        %s203 = scalar_lea.vmem %s0, %s202
        %p204 = pneg %p40
        %p205 = pneg %p37
        %p206 = pneg %p61
        %p207 = pneg %p58
        %p208 = pneg %p82
        %p209 = pneg %p79
        %p210 = pneg %p103
        %p211 = pneg %p100
        %p212 = pneg %p124
        %p213 = pneg %p121
        %p214 = pneg %p150
        %p215 = pneg %p147
        %s216 = sand.u32 %s137, 1
        %s217 = scalar_lea.sflag [#allocation3], %s216
        %s218 = sand.u32 %s137, 1
        %s219 = smul.addr %s218, 96
        %s220 = scalar_lea.vmem [#allocation2], %s219
        %s221 = smul.u32 4, %s19
        %p222 = scmp.lt.s32.totalorder %s221, 7
        %s223 = scalar_select %p222, %s221, 7
        %s224 = smul.addr %s223, 3
        %s225 = smul.addr %s224, 8
        %s226 = scalar_lea.vmem %s0, %s225
        %s227 = smul.u32 4, %s19
        %s228 = smul.u32 4, %s19
        %v229 = vld [vmem:[%s226] sm:$0xff]
        %v230 = vld [vmem:[%s226 + $0x8] sm:$0xff]
        %v231 = vld [vmem:[%s226 + $0x10] sm:$0xff]
        %v232 = vld [vmem:[%s226 + $0x18] sm:$0xff]
        %v233 = vld [vmem:[%s226 + $0x20] sm:$0xff]
        %v234 = vld [vmem:[%s226 + $0x28] sm:$0xff]
        %v235 = vld [vmem:[%s226 + $0x30] sm:$0xff]
        %v236 = vld [vmem:[%s226 + $0x38] sm:$0xff]
        %v237 = vld [vmem:[%s226 + $0x40] sm:$0xff]
        %v238 = vld [vmem:[%s226 + $0x48] sm:$0xff]
        %v239 = vld [vmem:[%s226 + $0x50] sm:$0xff]
        %v240 = vld [vmem:[%s226 + $0x58] sm:$0xff]
        %v241 = vld [vmem:[%s1] sm:$0xff]
        %v242 = vld [vmem:[%s1 + $0x8] sm:$0xff]
        %v243 = vld [vmem:[%s1 + $0x10] sm:$0xff]
        %v244 = vld [vmem:[%s1 + $0x18] sm:$0xff]
        %v245 = vld [vmem:[%s1 + $0x20] sm:$0xff]
        %v246 = vld [vmem:[%s1 + $0x28] sm:$0xff]
        %v247 = vld [vmem:[%s1 + $0x30] sm:$0xff]
        %v248 = vld [vmem:[%s1 + $0x38] sm:$0xff]
        %v249 = vld [vmem:[%s1 + $0x40] sm:$0xff]
        %v250 = vld [vmem:[%s1 + $0x48] sm:$0xff]
        %v251 = vld [vmem:[%s1 + $0x50] sm:$0xff]
        %v252 = vld [vmem:[%s1 + $0x58] sm:$0xff]
        %v253 = vld [vmem:[%s1 + $0x60] sm:$0xff]
        %v254 = vld [vmem:[%s1 + $0x68] sm:$0xff]
        %v255 = vld [vmem:[%s1 + $0x70] sm:$0xff]
        %v256 = vld [vmem:[%s1 + $0x78] sm:$0xff]
        %v257 = vld [vmem:[%s1 + $0x80] sm:$0xff]
        %v258 = vld [vmem:[%s1 + $0x88] sm:$0xff]
        %v259 = vld [vmem:[%s1 + $0x90] sm:$0xff]
        %v260 = vld [vmem:[%s1 + $0x98] sm:$0xff]
        %v261 = vld [vmem:[%s1 + $0xa0] sm:$0xff]
        %v262 = vld [vmem:[%s1 + $0xa8] sm:$0xff]
        %v263 = vld [vmem:[%s1 + $0xb0] sm:$0xff]
        %v264 = vld [vmem:[%s1 + $0xb8] sm:$0xff]
        %v265 = vld [vmem:[%s1 + $0xc0] sm:$0xff]
        %v266 = vld [vmem:[%s1 + $0xc8] sm:$0xff]
        %v267 = vld [vmem:[%s1 + $0xd0] sm:$0xff]
        %v268 = vld [vmem:[%s1 + $0xd8] sm:$0xff]
        %v269 = vld [vmem:[%s1 + $0xe0] sm:$0xff]
        %v270 = vld [vmem:[%s1 + $0xe8] sm:$0xff]
        %v271 = vld [vmem:[%s1 + $0xf0] sm:$0xff]
        %v272 = vld [vmem:[%s1 + $0xf8] sm:$0xff]
        %v273 = vld [vmem:[%s1 + $0x100] sm:$0xff]
        %v274 = vld [vmem:[%s1 + $0x108] sm:$0xff]
        %v275 = vld [vmem:[%s1 + $0x110] sm:$0xff]
        %v276 = vld [vmem:[%s1 + $0x118] sm:$0xff]
        %v277 = vld [vmem:[%s1 + $0x120] sm:$0xff]
        %v278 = vld [vmem:[%s1 + $0x128] sm:$0xff]
        %v279 = vld [vmem:[%s1 + $0x130] sm:$0xff]
        %v280 = vld [vmem:[%s1 + $0x138] sm:$0xff]
        %v281 = vld [vmem:[%s1 + $0x140] sm:$0xff]
        %v282 = vld [vmem:[%s1 + $0x148] sm:$0xff]
        %v283 = vld [vmem:[%s1 + $0x150] sm:$0xff]
        %v284 = vld [vmem:[%s1 + $0x158] sm:$0xff]
        %v285 = vld [vmem:[%s1 + $0x160] sm:$0xff]
        %v286 = vld [vmem:[%s1 + $0x168] sm:$0xff]
        %v287 = vld [vmem:[%s1 + $0x170] sm:$0xff]
        %v288 = vld [vmem:[%s1 + $0x178] sm:$0xff]
        %v289 = vld [vmem:[%s1 + $0x180] sm:$0xff]
        %v290 = vld [vmem:[%s1 + $0x188] sm:$0xff]
        %v291 = vld [vmem:[%s1 + $0x190] sm:$0xff]
        %v292 = vld [vmem:[%s1 + $0x198] sm:$0xff]
        %v293 = vld [vmem:[%s1 + $0x1a0] sm:$0xff]
        %v294 = vld [vmem:[%s1 + $0x1a8] sm:$0xff]
        %v295 = vld [vmem:[%s1 + $0x1b0] sm:$0xff]
        %v296 = vld [vmem:[%s1 + $0x1b8] sm:$0xff]
        %v297 = vld [vmem:[%s1 + $0x1c0] sm:$0xff]
        %v298 = vld [vmem:[%s1 + $0x1c8] sm:$0xff]
        %v299 = vld [vmem:[%s1 + $0x1d0] sm:$0xff]
        %v300 = vld [vmem:[%s1 + $0x1d8] sm:$0xff]
        %v301 = vld [vmem:[%s1 + $0x1e0] sm:$0xff]
        %v302 = vld [vmem:[%s1 + $0x1e8] sm:$0xff]
        %v303 = vld [vmem:[%s1 + $0x1f0] sm:$0xff]
        %v304 = vld [vmem:[%s1 + $0x1f8] sm:$0xff]
        %v305 = vld [vmem:[%s1 + $0x200] sm:$0xff]
        %v306 = vld [vmem:[%s1 + $0x208] sm:$0xff]
        %v307 = vld [vmem:[%s1 + $0x210] sm:$0xff]
        %v308 = vld [vmem:[%s1 + $0x218] sm:$0xff]
        %v309 = vld [vmem:[%s1 + $0x220] sm:$0xff]
        %v310 = vld [vmem:[%s1 + $0x228] sm:$0xff]
        %v311 = vld [vmem:[%s1 + $0x230] sm:$0xff]
        %v312 = vld [vmem:[%s1 + $0x238] sm:$0xff]
        %v313 = vld [vmem:[%s1 + $0x240] sm:$0xff]
        %v314 = vld [vmem:[%s1 + $0x248] sm:$0xff]
        %v315 = vld [vmem:[%s1 + $0x250] sm:$0xff]
        %v316 = vld [vmem:[%s1 + $0x258] sm:$0xff]
        %v317 = vld [vmem:[%s1 + $0x260] sm:$0xff]
        %v318 = vld [vmem:[%s1 + $0x268] sm:$0xff]
        %v319 = vld [vmem:[%s1 + $0x270] sm:$0xff]
        %v320 = vld [vmem:[%s1 + $0x278] sm:$0xff]
        %v321 = vld [vmem:[%s1 + $0x280] sm:$0xff]
        %v322 = vld [vmem:[%s1 + $0x288] sm:$0xff]
        %v323 = vld [vmem:[%s1 + $0x290] sm:$0xff]
        %v324 = vld [vmem:[%s1 + $0x298] sm:$0xff]
        %v325 = vld [vmem:[%s1 + $0x2a0] sm:$0xff]
        %v326 = vld [vmem:[%s1 + $0x2a8] sm:$0xff]
        %v327 = vld [vmem:[%s1 + $0x2b0] sm:$0xff]
        %v328 = vld [vmem:[%s1 + $0x2b8] sm:$0xff]
        %v329 = vld [vmem:[%s1 + $0x2c0] sm:$0xff]
        %v330 = vld [vmem:[%s1 + $0x2c8] sm:$0xff]
        %v331 = vld [vmem:[%s1 + $0x2d0] sm:$0xff]
        %v332 = vld [vmem:[%s1 + $0x2d8] sm:$0xff]
        %v333 = vld [vmem:[%s1 + $0x2e0] sm:$0xff]
        %v334 = vld [vmem:[%s1 + $0x2e8] sm:$0xff]
        %v335 = vld [vmem:[%s1 + $0x2f0] sm:$0xff]
        %v336 = vld [vmem:[%s1 + $0x2f8] sm:$0xff]
        %v337 = vld [vmem:[%s1 + $0x300] sm:$0xff]
        %v338 = vld [vmem:[%s1 + $0x308] sm:$0xff]
        %v339 = vld [vmem:[%s1 + $0x310] sm:$0xff]
        %v340 = vld [vmem:[%s1 + $0x318] sm:$0xff]
        %v341 = vld [vmem:[%s1 + $0x320] sm:$0xff]
        %v342 = vld [vmem:[%s1 + $0x328] sm:$0xff]
        %v343 = vld [vmem:[%s1 + $0x330] sm:$0xff]
        %v344 = vld [vmem:[%s1 + $0x338] sm:$0xff]
        %v345 = vld [vmem:[%s1 + $0x340] sm:$0xff]
        %v346 = vld [vmem:[%s1 + $0x348] sm:$0xff]
        %v347 = vld [vmem:[%s1 + $0x350] sm:$0xff]
        %v348 = vld [vmem:[%s1 + $0x358] sm:$0xff]
        %v349 = vld [vmem:[%s1 + $0x360] sm:$0xff]
        %v350 = vld [vmem:[%s1 + $0x368] sm:$0xff]
        %v351 = vld [vmem:[%s1 + $0x370] sm:$0xff]
        %v352 = vld [vmem:[%s1 + $0x378] sm:$0xff]
        %v353 = vld [vmem:[%s1 + $0x380] sm:$0xff]
        %v354 = vld [vmem:[%s1 + $0x388] sm:$0xff]
        %v355 = vld [vmem:[%s1 + $0x390] sm:$0xff]
        %v356 = vld [vmem:[%s1 + $0x398] sm:$0xff]
        %v357 = vld [vmem:[%s1 + $0x3a0] sm:$0xff]
        %v358 = vld [vmem:[%s1 + $0x3a8] sm:$0xff]
        %v359 = vld [vmem:[%s1 + $0x3b0] sm:$0xff]
        %v360 = vld [vmem:[%s1 + $0x3b8] sm:$0xff]
        %v361 = vld [vmem:[%s1 + $0x3c0] sm:$0xff]
        %v362 = vld [vmem:[%s1 + $0x3c8] sm:$0xff]
        %v363 = vld [vmem:[%s1 + $0x3d0] sm:$0xff]
        %v364 = vld [vmem:[%s1 + $0x3d8] sm:$0xff]
        %v365 = vld [vmem:[%s1 + $0x3e0] sm:$0xff]
        %v366 = vld [vmem:[%s1 + $0x3e8] sm:$0xff]
        %v367 = vld [vmem:[%s1 + $0x3f0] sm:$0xff]
        %v368 = vld [vmem:[%s1 + $0x3f8] sm:$0xff]
        %v369 = vld [vmem:[%s1 + $0x400] sm:$0xff]
        %v370 = vld [vmem:[%s1 + $0x408] sm:$0xff]
        %v371 = vld [vmem:[%s1 + $0x410] sm:$0xff]
        %v372 = vld [vmem:[%s1 + $0x418] sm:$0xff]
        %v373 = vld [vmem:[%s1 + $0x420] sm:$0xff]
        %v374 = vld [vmem:[%s1 + $0x428] sm:$0xff]
        %v375 = vld [vmem:[%s1 + $0x430] sm:$0xff]
        %v376 = vld [vmem:[%s1 + $0x438] sm:$0xff]
        %v377 = vld [vmem:[%s1 + $0x440] sm:$0xff]
        %v378 = vld [vmem:[%s1 + $0x448] sm:$0xff]
        %v379 = vld [vmem:[%s1 + $0x450] sm:$0xff]
        %v380 = vld [vmem:[%s1 + $0x458] sm:$0xff]
        %v381 = vld [vmem:[%s1 + $0x460] sm:$0xff]
        %v382 = vld [vmem:[%s1 + $0x468] sm:$0xff]
        %v383 = vld [vmem:[%s1 + $0x470] sm:$0xff]
        %v384 = vld [vmem:[%s1 + $0x478] sm:$0xff]
        %v385 = vld [vmem:[%s1 + $0x480] sm:$0xff]
        %v386 = vld [vmem:[%s1 + $0x488] sm:$0xff]
        %v387 = vld [vmem:[%s1 + $0x490] sm:$0xff]
        %v388 = vld [vmem:[%s1 + $0x498] sm:$0xff]
        %v389 = vld [vmem:[%s1 + $0x4a0] sm:$0xff]
        %v390 = vld [vmem:[%s1 + $0x4a8] sm:$0xff]
        %v391 = vld [vmem:[%s1 + $0x4b0] sm:$0xff]
        %v392 = vld [vmem:[%s1 + $0x4b8] sm:$0xff]
        %v393 = vld [vmem:[%s1 + $0x4c0] sm:$0xff]
        %v394 = vld [vmem:[%s1 + $0x4c8] sm:$0xff]
        %v395 = vld [vmem:[%s1 + $0x4d0] sm:$0xff]
        %v396 = vld [vmem:[%s1 + $0x4d8] sm:$0xff]
        %v397 = vld [vmem:[%s1 + $0x4e0] sm:$0xff]
        %v398 = vld [vmem:[%s1 + $0x4e8] sm:$0xff]
        %v399 = vld [vmem:[%s1 + $0x4f0] sm:$0xff]
        %v400 = vld [vmem:[%s1 + $0x4f8] sm:$0xff]
        %v401 = vld [vmem:[%s1 + $0x500] sm:$0xff]
        %v402 = vld [vmem:[%s1 + $0x508] sm:$0xff]
        %v403 = vld [vmem:[%s1 + $0x510] sm:$0xff]
        %v404 = vld [vmem:[%s1 + $0x518] sm:$0xff]
        %v405 = vld [vmem:[%s1 + $0x520] sm:$0xff]
        %v406 = vld [vmem:[%s1 + $0x528] sm:$0xff]
        %v407 = vld [vmem:[%s1 + $0x530] sm:$0xff]
        %v408 = vld [vmem:[%s1 + $0x538] sm:$0xff]
        %v409 = vld [vmem:[%s1 + $0x540] sm:$0xff]
        %v410 = vld [vmem:[%s1 + $0x548] sm:$0xff]
        %v411 = vld [vmem:[%s1 + $0x550] sm:$0xff]
        %v412 = vld [vmem:[%s1 + $0x558] sm:$0xff]
        %v413 = vld [vmem:[%s1 + $0x560] sm:$0xff]
        %v414 = vld [vmem:[%s1 + $0x568] sm:$0xff]
        %v415 = vld [vmem:[%s1 + $0x570] sm:$0xff]
        %v416 = vld [vmem:[%s1 + $0x578] sm:$0xff]
        %v417 = vld [vmem:[%s1 + $0x580] sm:$0xff]
        %v418 = vld [vmem:[%s1 + $0x588] sm:$0xff]
        %v419 = vld [vmem:[%s1 + $0x590] sm:$0xff]
        %v420 = vld [vmem:[%s1 + $0x598] sm:$0xff]
        %v421 = vld [vmem:[%s1 + $0x5a0] sm:$0xff]
        %v422 = vld [vmem:[%s1 + $0x5a8] sm:$0xff]
        %v423 = vld [vmem:[%s1 + $0x5b0] sm:$0xff]
        %v424 = vld [vmem:[%s1 + $0x5b8] sm:$0xff]
        %v425 = vld [vmem:[%s1 + $0x5c0] sm:$0xff]
        %v426 = vld [vmem:[%s1 + $0x5c8] sm:$0xff]
        %v427 = vld [vmem:[%s1 + $0x5d0] sm:$0xff]
        %v428 = vld [vmem:[%s1 + $0x5d8] sm:$0xff]
        %v429 = vld [vmem:[%s1 + $0x5e0] sm:$0xff]
        %v430 = vld [vmem:[%s1 + $0x5e8] sm:$0xff]
        %v431 = vld [vmem:[%s1 + $0x5f0] sm:$0xff]
        %v432 = vld [vmem:[%s1 + $0x5f8] sm:$0xff]
        %v433 = vld [vmem:[%s1 + $0x600] sm:$0xff]
        %v434 = vld [vmem:[%s1 + $0x608] sm:$0xff]
        %v435 = vld [vmem:[%s1 + $0x610] sm:$0xff]
        %v436 = vld [vmem:[%s1 + $0x618] sm:$0xff]
        %v437 = vld [vmem:[%s1 + $0x620] sm:$0xff]
        %v438 = vld [vmem:[%s1 + $0x628] sm:$0xff]
        %v439 = vld [vmem:[%s1 + $0x630] sm:$0xff]
        %v440 = vld [vmem:[%s1 + $0x638] sm:$0xff]
        %v441 = vld [vmem:[%s1 + $0x640] sm:$0xff]
        %v442 = vld [vmem:[%s1 + $0x648] sm:$0xff]
        %v443 = vld [vmem:[%s1 + $0x650] sm:$0xff]
        %v444 = vld [vmem:[%s1 + $0x658] sm:$0xff]
        %v445 = vld [vmem:[%s1 + $0x660] sm:$0xff]
        %v446 = vld [vmem:[%s1 + $0x668] sm:$0xff]
        %v447 = vld [vmem:[%s1 + $0x670] sm:$0xff]
        %v448 = vld [vmem:[%s1 + $0x678] sm:$0xff]
        %v449 = vld [vmem:[%s1 + $0x680] sm:$0xff]
        %v450 = vld [vmem:[%s1 + $0x688] sm:$0xff]
        %v451 = vld [vmem:[%s1 + $0x690] sm:$0xff]
        %v452 = vld [vmem:[%s1 + $0x698] sm:$0xff]
        %v453 = vld [vmem:[%s1 + $0x6a0] sm:$0xff]
        %v454 = vld [vmem:[%s1 + $0x6a8] sm:$0xff]
        %v455 = vld [vmem:[%s1 + $0x6b0] sm:$0xff]
        %v456 = vld [vmem:[%s1 + $0x6b8] sm:$0xff]
        %v457 = vld [vmem:[%s1 + $0x6c0] sm:$0xff]
        %v458 = vld [vmem:[%s1 + $0x6c8] sm:$0xff]
        %v459 = vld [vmem:[%s1 + $0x6d0] sm:$0xff]
        %v460 = vld [vmem:[%s1 + $0x6d8] sm:$0xff]
        %v461 = vld [vmem:[%s1 + $0x6e0] sm:$0xff]
        %v462 = vld [vmem:[%s1 + $0x6e8] sm:$0xff]
        %v463 = vld [vmem:[%s1 + $0x6f0] sm:$0xff]
        %v464 = vld [vmem:[%s1 + $0x6f8] sm:$0xff]
        %v465 = vld [vmem:[%s1 + $0x700] sm:$0xff]
        %v466 = vld [vmem:[%s1 + $0x708] sm:$0xff]
        %v467 = vld [vmem:[%s1 + $0x710] sm:$0xff]
        %v468 = vld [vmem:[%s1 + $0x718] sm:$0xff]
        %v469 = vld [vmem:[%s1 + $0x720] sm:$0xff]
        %v470 = vld [vmem:[%s1 + $0x728] sm:$0xff]
        %v471 = vld [vmem:[%s1 + $0x730] sm:$0xff]
        %v472 = vld [vmem:[%s1 + $0x738] sm:$0xff]
        %v473 = vld [vmem:[%s1 + $0x740] sm:$0xff]
        %v474 = vld [vmem:[%s1 + $0x748] sm:$0xff]
        %v475 = vld [vmem:[%s1 + $0x750] sm:$0xff]
        %v476 = vld [vmem:[%s1 + $0x758] sm:$0xff]
        %v477 = vld [vmem:[%s1 + $0x760] sm:$0xff]
        %v478 = vld [vmem:[%s1 + $0x768] sm:$0xff]
        %v479 = vld [vmem:[%s1 + $0x770] sm:$0xff]
        %v480 = vld [vmem:[%s1 + $0x778] sm:$0xff]
        %v481 = vld [vmem:[%s1 + $0x780] sm:$0xff]
        %v482 = vld [vmem:[%s1 + $0x788] sm:$0xff]
        %v483 = vld [vmem:[%s1 + $0x790] sm:$0xff]
        %v484 = vld [vmem:[%s1 + $0x798] sm:$0xff]
        %v485 = vld [vmem:[%s1 + $0x7a0] sm:$0xff]
        %v486 = vld [vmem:[%s1 + $0x7a8] sm:$0xff]
        %v487 = vld [vmem:[%s1 + $0x7b0] sm:$0xff]
        %v488 = vld [vmem:[%s1 + $0x7b8] sm:$0xff]
        %v489 = vld [vmem:[%s1 + $0x7c0] sm:$0xff]
        %v490 = vld [vmem:[%s1 + $0x7c8] sm:$0xff]
        %v491 = vld [vmem:[%s1 + $0x7d0] sm:$0xff]
        %v492 = vld [vmem:[%s1 + $0x7d8] sm:$0xff]
        %v493 = vld [vmem:[%s1 + $0x7e0] sm:$0xff]
        %v494 = vld [vmem:[%s1 + $0x7e8] sm:$0xff]
        %v495 = vld [vmem:[%s1 + $0x7f0] sm:$0xff]
        %v496 = vld [vmem:[%s1 + $0x7f8] sm:$0xff]
        %v497 = vld [vmem:[%s1 + $0x800] sm:$0xff]
        %v498 = vld [vmem:[%s1 + $0x808] sm:$0xff]
        %v499 = vld [vmem:[%s1 + $0x810] sm:$0xff]
        %v500 = vld [vmem:[%s1 + $0x818] sm:$0xff]
        %v501 = vld [vmem:[%s1 + $0x820] sm:$0xff]
        %v502 = vld [vmem:[%s1 + $0x828] sm:$0xff]
        %v503 = vld [vmem:[%s1 + $0x830] sm:$0xff]
        %v504 = vld [vmem:[%s1 + $0x838] sm:$0xff]
        %v505 = vld [vmem:[%s1 + $0x840] sm:$0xff]
        %v506 = vld [vmem:[%s1 + $0x848] sm:$0xff]
        %v507 = vld [vmem:[%s1 + $0x850] sm:$0xff]
        %v508 = vld [vmem:[%s1 + $0x858] sm:$0xff]
        %v509 = vld [vmem:[%s1 + $0x860] sm:$0xff]
        %v510 = vld [vmem:[%s1 + $0x868] sm:$0xff]
        %v511 = vld [vmem:[%s1 + $0x870] sm:$0xff]
        %v512 = vld [vmem:[%s1 + $0x878] sm:$0xff]
        %v513 = vld [vmem:[%s1 + $0x880] sm:$0xff]
        %v514 = vld [vmem:[%s1 + $0x888] sm:$0xff]
        %v515 = vld [vmem:[%s1 + $0x890] sm:$0xff]
        %v516 = vld [vmem:[%s1 + $0x898] sm:$0xff]
        %v517 = vld [vmem:[%s1 + $0x8a0] sm:$0xff]
        %v518 = vld [vmem:[%s1 + $0x8a8] sm:$0xff]
        %v519 = vld [vmem:[%s1 + $0x8b0] sm:$0xff]
        %v520 = vld [vmem:[%s1 + $0x8b8] sm:$0xff]
        %v521 = vld [vmem:[%s1 + $0x8c0] sm:$0xff]
        %v522 = vld [vmem:[%s1 + $0x8c8] sm:$0xff]
        %v523 = vld [vmem:[%s1 + $0x8d0] sm:$0xff]
        %v524 = vld [vmem:[%s1 + $0x8d8] sm:$0xff]
        %v525 = vld [vmem:[%s1 + $0x8e0] sm:$0xff]
        %v526 = vld [vmem:[%s1 + $0x8e8] sm:$0xff]
        %v527 = vld [vmem:[%s1 + $0x8f0] sm:$0xff]
        %v528 = vld [vmem:[%s1 + $0x8f8] sm:$0xff]
        %v529 = vld [vmem:[%s1 + $0x900] sm:$0xff]
        %v530 = vld [vmem:[%s1 + $0x908] sm:$0xff]
        %v531 = vld [vmem:[%s1 + $0x910] sm:$0xff]
        %v532 = vld [vmem:[%s1 + $0x918] sm:$0xff]
        %v533 = vld [vmem:[%s1 + $0x920] sm:$0xff]
        %v534 = vld [vmem:[%s1 + $0x928] sm:$0xff]
        %v535 = vld [vmem:[%s1 + $0x930] sm:$0xff]
        %v536 = vld [vmem:[%s1 + $0x938] sm:$0xff]
        %v537 = vld [vmem:[%s1 + $0x940] sm:$0xff]
        %v538 = vld [vmem:[%s1 + $0x948] sm:$0xff]
        %v539 = vld [vmem:[%s1 + $0x950] sm:$0xff]
        %v540 = vld [vmem:[%s1 + $0x958] sm:$0xff]
        %v541 = vld [vmem:[%s1 + $0x960] sm:$0xff]
        %v542 = vld [vmem:[%s1 + $0x968] sm:$0xff]
        %v543 = vld [vmem:[%s1 + $0x970] sm:$0xff]
        %v544 = vld [vmem:[%s1 + $0x978] sm:$0xff]
        %v545 = vld [vmem:[%s1 + $0x980] sm:$0xff]
        %v546 = vld [vmem:[%s1 + $0x988] sm:$0xff]
        %v547 = vld [vmem:[%s1 + $0x990] sm:$0xff]
        %v548 = vld [vmem:[%s1 + $0x998] sm:$0xff]
        %v549 = vld [vmem:[%s1 + $0x9a0] sm:$0xff]
        %v550 = vld [vmem:[%s1 + $0x9a8] sm:$0xff]
        %v551 = vld [vmem:[%s1 + $0x9b0] sm:$0xff]
        %v552 = vld [vmem:[%s1 + $0x9b8] sm:$0xff]
        %v553 = vld [vmem:[%s1 + $0x9c0] sm:$0xff]
        %v554 = vld [vmem:[%s1 + $0x9c8] sm:$0xff]
        %v555 = vld [vmem:[%s1 + $0x9d0] sm:$0xff]
        %v556 = vld [vmem:[%s1 + $0x9d8] sm:$0xff]
        %v557 = vld [vmem:[%s1 + $0x9e0] sm:$0xff]
        %v558 = vld [vmem:[%s1 + $0x9e8] sm:$0xff]
        %v559 = vld [vmem:[%s1 + $0x9f0] sm:$0xff]
        %v560 = vld [vmem:[%s1 + $0x9f8] sm:$0xff]
        %v561 = vld [vmem:[%s1 + $0xa00] sm:$0xff]
        %v562 = vld [vmem:[%s1 + $0xa08] sm:$0xff]
        %v563 = vld [vmem:[%s1 + $0xa10] sm:$0xff]
        %v564 = vld [vmem:[%s1 + $0xa18] sm:$0xff]
        %v565 = vld [vmem:[%s1 + $0xa20] sm:$0xff]
        %v566 = vld [vmem:[%s1 + $0xa28] sm:$0xff]
        %v567 = vld [vmem:[%s1 + $0xa30] sm:$0xff]
        %v568 = vld [vmem:[%s1 + $0xa38] sm:$0xff]
        %v569 = vld [vmem:[%s1 + $0xa40] sm:$0xff]
        %v570 = vld [vmem:[%s1 + $0xa48] sm:$0xff]
        %v571 = vld [vmem:[%s1 + $0xa50] sm:$0xff]
        %v572 = vld [vmem:[%s1 + $0xa58] sm:$0xff]
        %v573 = vld [vmem:[%s1 + $0xa60] sm:$0xff]
        %v574 = vld [vmem:[%s1 + $0xa68] sm:$0xff]
        %v575 = vld [vmem:[%s1 + $0xa70] sm:$0xff]
        %v576 = vld [vmem:[%s1 + $0xa78] sm:$0xff]
        %v577 = vld [vmem:[%s2] sm:$0x7f]
        %v579 = vperm.slane %v577, 0
        %v580 = vperm.slane %v577, 1
        %v581 = vperm.slane %v577, 2
        %v582 = vperm.slane %v577, 3
        %v583 = vperm.slane %v577, 4
        %v584 = vperm.slane %v577, 5
        %v585 = vperm.slane %v577, 6
        %593 = vmatpush.msra.mxu0 %v346
        %594 = vmatpush.msra.mxu0 %v339
        %595 = vmatpush.msra.mxu0 %v332
        %596 = vmatpush.msra.mxu0 %v325
        %597 = vmatpush.msra.mxu0 %v318
        %598 = vmatpush.msra.mxu0 %v311
        %599 = vmatpush.msra.mxu0 %v304
        %600 = vmatpush.msra.mxu0 %v297
        %601 = vmatpush.msra.mxu0 %v290
        %602 = vmatpush.msra.mxu0 %v283
        %603 = vmatpush.msra.mxu0 %v276
        %604 = vmatpush.msra.mxu0 %v269
        %605 = vmatpush.msra.mxu0 %v262
        %606 = vmatpush.msra.mxu0 %v255
        %607 = vmatpush.msra.mxu0 %v248
        %608 = vmatpush.msra.mxu0 %v241
        %609 = vmatmul.f32.gmra.mxu0 %v229
        %v610 = vpop.f32.mrf.mxu0
        %v611 = vadd.f32 %v579, %v610
        %612 = vmatmul.f32.gmra.mxu0 %v232
        %v613 = vpop.f32.mrf.mxu0
        %v614 = vadd.f32 %v579, %v613
        %615 = vmatmul.f32.gmra.mxu0 %v235
        %v616 = vpop.f32.mrf.mxu0
        %v617 = vadd.f32 %v579, %v616
        %618 = vmatmul.f32.gmra.mxu0 %v238
        %v619 = vpop.f32.mrf.mxu0
        %v620 = vadd.f32 %v579, %v619
        %621 = vdwg.mxu0
        %622 = vmatpush.msra.mxu0 %v458
        %623 = vmatpush.msra.mxu0 %v451
        %624 = vmatpush.msra.mxu0 %v444
        %625 = vmatpush.msra.mxu0 %v437
        %626 = vmatpush.msra.mxu0 %v430
        %627 = vmatpush.msra.mxu0 %v423
        %628 = vmatpush.msra.mxu0 %v416
        %629 = vmatpush.msra.mxu0 %v409
        %630 = vmatpush.msra.mxu0 %v402
        %631 = vmatpush.msra.mxu0 %v395
        %632 = vmatpush.msra.mxu0 %v388
        %633 = vmatpush.msra.mxu0 %v381
        %634 = vmatpush.msra.mxu0 %v374
        %635 = vmatpush.msra.mxu0 %v367
        %636 = vmatpush.msra.mxu0 %v360
        %637 = vmatpush.msra.mxu0 %v353
        %638 = vmatmul.f32.gmra.mxu0 %v230
        %v639 = vpop.f32.mrf.mxu0
        %v640 = vadd.f32 %v611, %v639
        %641 = vmatmul.f32.gmra.mxu0 %v233
        %v642 = vpop.f32.mrf.mxu0
        %v643 = vadd.f32 %v614, %v642
        %644 = vmatmul.f32.gmra.mxu0 %v236
        %v645 = vpop.f32.mrf.mxu0
        %v646 = vadd.f32 %v617, %v645
        %647 = vmatmul.f32.gmra.mxu0 %v239
        %v648 = vpop.f32.mrf.mxu0
        %v649 = vadd.f32 %v620, %v648
        %650 = vdwg.mxu0
        %651 = vmatpush.msra.mxu0 %v570
        %652 = vmatpush.msra.mxu0 %v563
        %653 = vmatpush.msra.mxu0 %v556
        %654 = vmatpush.msra.mxu0 %v549
        %655 = vmatpush.msra.mxu0 %v542
        %656 = vmatpush.msra.mxu0 %v535
        %657 = vmatpush.msra.mxu0 %v528
        %658 = vmatpush.msra.mxu0 %v521
        %659 = vmatpush.msra.mxu0 %v514
        %660 = vmatpush.msra.mxu0 %v507
        %661 = vmatpush.msra.mxu0 %v500
        %662 = vmatpush.msra.mxu0 %v493
        %663 = vmatpush.msra.mxu0 %v486
        %664 = vmatpush.msra.mxu0 %v479
        %665 = vmatpush.msra.mxu0 %v472
        %666 = vmatpush.msra.mxu0 %v465
        %667 = vmatmul.f32.gmra.mxu0 %v231
        %v668 = vpop.f32.mrf.mxu0
        %v669 = vadd.f32 %v640, %v668
        %670 = vmatmul.f32.gmra.mxu0 %v234
        %v671 = vpop.f32.mrf.mxu0
        %v672 = vadd.f32 %v643, %v671
        %673 = vmatmul.f32.gmra.mxu0 %v237
        %v674 = vpop.f32.mrf.mxu0
        %v675 = vadd.f32 %v646, %v674
        %676 = vmatmul.f32.gmra.mxu0 %v240
        %v677 = vpop.f32.mrf.mxu0
        %v678 = vadd.f32 %v649, %v677
        %679 = vdwg.mxu0
        %680 = vmatpush.msra.mxu0 %v347
        %681 = vmatpush.msra.mxu0 %v340
        %682 = vmatpush.msra.mxu0 %v333
        %683 = vmatpush.msra.mxu0 %v326
        %684 = vmatpush.msra.mxu0 %v319
        %685 = vmatpush.msra.mxu0 %v312
        %686 = vmatpush.msra.mxu0 %v305
        %687 = vmatpush.msra.mxu0 %v298
        %688 = vmatpush.msra.mxu0 %v291
        %689 = vmatpush.msra.mxu0 %v284
        %690 = vmatpush.msra.mxu0 %v277
        %691 = vmatpush.msra.mxu0 %v270
        %692 = vmatpush.msra.mxu0 %v263
        %693 = vmatpush.msra.mxu0 %v256
        %694 = vmatpush.msra.mxu0 %v249
        %695 = vmatpush.msra.mxu0 %v242
        %696 = vmatmul.f32.gmra.mxu0 %v229
        %v697 = vpop.f32.mrf.mxu0
        %v698 = vadd.f32 %v580, %v697
        %699 = vmatmul.f32.gmra.mxu0 %v232
        %v700 = vpop.f32.mrf.mxu0
        %v701 = vadd.f32 %v580, %v700
        %702 = vmatmul.f32.gmra.mxu0 %v235
        %v703 = vpop.f32.mrf.mxu0
        %v704 = vadd.f32 %v580, %v703
        %705 = vmatmul.f32.gmra.mxu0 %v238
        %v706 = vpop.f32.mrf.mxu0
        %v707 = vadd.f32 %v580, %v706
        %708 = vdwg.mxu0
        %709 = vmatpush.msra.mxu0 %v459
        %710 = vmatpush.msra.mxu0 %v452
        %711 = vmatpush.msra.mxu0 %v445
        %712 = vmatpush.msra.mxu0 %v438
        %713 = vmatpush.msra.mxu0 %v431
        %714 = vmatpush.msra.mxu0 %v424
        %715 = vmatpush.msra.mxu0 %v417
        %716 = vmatpush.msra.mxu0 %v410
        %717 = vmatpush.msra.mxu0 %v403
        %718 = vmatpush.msra.mxu0 %v396
        %719 = vmatpush.msra.mxu0 %v389
        %720 = vmatpush.msra.mxu0 %v382
        %721 = vmatpush.msra.mxu0 %v375
        %722 = vmatpush.msra.mxu0 %v368
        %723 = vmatpush.msra.mxu0 %v361
        %724 = vmatpush.msra.mxu0 %v354
        %725 = vmatmul.f32.gmra.mxu0 %v230
        %v726 = vpop.f32.mrf.mxu0
        %v727 = vadd.f32 %v698, %v726
        %728 = vmatmul.f32.gmra.mxu0 %v233
        %v729 = vpop.f32.mrf.mxu0
        %v730 = vadd.f32 %v701, %v729
        %731 = vmatmul.f32.gmra.mxu0 %v236
        %v732 = vpop.f32.mrf.mxu0
        %v733 = vadd.f32 %v704, %v732
        %734 = vmatmul.f32.gmra.mxu0 %v239
        %v735 = vpop.f32.mrf.mxu0
        %v736 = vadd.f32 %v707, %v735
        %737 = vdwg.mxu0
        %738 = vmatpush.msra.mxu0 %v571
        %739 = vmatpush.msra.mxu0 %v564
        %740 = vmatpush.msra.mxu0 %v557
        %741 = vmatpush.msra.mxu0 %v550
        %742 = vmatpush.msra.mxu0 %v543
        %743 = vmatpush.msra.mxu0 %v536
        %744 = vmatpush.msra.mxu0 %v529
        %745 = vmatpush.msra.mxu0 %v522
        %746 = vmatpush.msra.mxu0 %v515
        %747 = vmatpush.msra.mxu0 %v508
        %748 = vmatpush.msra.mxu0 %v501
        %749 = vmatpush.msra.mxu0 %v494
        %750 = vmatpush.msra.mxu0 %v487
        %751 = vmatpush.msra.mxu0 %v480
        %752 = vmatpush.msra.mxu0 %v473
        %753 = vmatpush.msra.mxu0 %v466
        %754 = vmatmul.f32.gmra.mxu0 %v231
        %v755 = vpop.f32.mrf.mxu0
        %v756 = vadd.f32 %v727, %v755
        %757 = vmatmul.f32.gmra.mxu0 %v234
        %v758 = vpop.f32.mrf.mxu0
        %v759 = vadd.f32 %v730, %v758
        %760 = vmatmul.f32.gmra.mxu0 %v237
        %v761 = vpop.f32.mrf.mxu0
        %v762 = vadd.f32 %v733, %v761
        %763 = vmatmul.f32.gmra.mxu0 %v240
        %v764 = vpop.f32.mrf.mxu0
        %v765 = vadd.f32 %v736, %v764
        %766 = vdwg.mxu0
        %767 = vmatpush.msra.mxu0 %v348
        %768 = vmatpush.msra.mxu0 %v341
        %769 = vmatpush.msra.mxu0 %v334
        %770 = vmatpush.msra.mxu0 %v327
        %771 = vmatpush.msra.mxu0 %v320
        %772 = vmatpush.msra.mxu0 %v313
        %773 = vmatpush.msra.mxu0 %v306
        %774 = vmatpush.msra.mxu0 %v299
        %775 = vmatpush.msra.mxu0 %v292
        %776 = vmatpush.msra.mxu0 %v285
        %777 = vmatpush.msra.mxu0 %v278
        %778 = vmatpush.msra.mxu0 %v271
        %779 = vmatpush.msra.mxu0 %v264
        %780 = vmatpush.msra.mxu0 %v257
        %781 = vmatpush.msra.mxu0 %v250
        %782 = vmatpush.msra.mxu0 %v243
        %783 = vmatmul.f32.gmra.mxu0 %v229
        %v784 = vpop.f32.mrf.mxu0
        %v785 = vadd.f32 %v581, %v784
        %786 = vmatmul.f32.gmra.mxu0 %v232
        %v787 = vpop.f32.mrf.mxu0
        %v788 = vadd.f32 %v581, %v787
        %789 = vmatmul.f32.gmra.mxu0 %v235
        %v790 = vpop.f32.mrf.mxu0
        %v791 = vadd.f32 %v581, %v790
        %792 = vmatmul.f32.gmra.mxu0 %v238
        %v793 = vpop.f32.mrf.mxu0
        %v794 = vadd.f32 %v581, %v793
        %795 = vdwg.mxu0
        %796 = vmatpush.msra.mxu0 %v460
        %797 = vmatpush.msra.mxu0 %v453
        %798 = vmatpush.msra.mxu0 %v446
        %799 = vmatpush.msra.mxu0 %v439
        %800 = vmatpush.msra.mxu0 %v432
        %801 = vmatpush.msra.mxu0 %v425
        %802 = vmatpush.msra.mxu0 %v418
        %803 = vmatpush.msra.mxu0 %v411
        %804 = vmatpush.msra.mxu0 %v404
        %805 = vmatpush.msra.mxu0 %v397
        %806 = vmatpush.msra.mxu0 %v390
        %807 = vmatpush.msra.mxu0 %v383
        %808 = vmatpush.msra.mxu0 %v376
        %809 = vmatpush.msra.mxu0 %v369
        %810 = vmatpush.msra.mxu0 %v362
        %811 = vmatpush.msra.mxu0 %v355
        %812 = vmatmul.f32.gmra.mxu0 %v230
        %v813 = vpop.f32.mrf.mxu0
        %v814 = vadd.f32 %v785, %v813
        %815 = vmatmul.f32.gmra.mxu0 %v233
        %v816 = vpop.f32.mrf.mxu0
        %v817 = vadd.f32 %v788, %v816
        %818 = vmatmul.f32.gmra.mxu0 %v236
        %v819 = vpop.f32.mrf.mxu0
        %v820 = vadd.f32 %v791, %v819
        %821 = vmatmul.f32.gmra.mxu0 %v239
        %v822 = vpop.f32.mrf.mxu0
        %v823 = vadd.f32 %v794, %v822
        %824 = vdwg.mxu0
        %825 = vmatpush.msra.mxu0 %v572
        %826 = vmatpush.msra.mxu0 %v565
        %827 = vmatpush.msra.mxu0 %v558
        %828 = vmatpush.msra.mxu0 %v551
        %829 = vmatpush.msra.mxu0 %v544
        %830 = vmatpush.msra.mxu0 %v537
        %831 = vmatpush.msra.mxu0 %v530
        %832 = vmatpush.msra.mxu0 %v523
        %833 = vmatpush.msra.mxu0 %v516
        %834 = vmatpush.msra.mxu0 %v509
        %835 = vmatpush.msra.mxu0 %v502
        %836 = vmatpush.msra.mxu0 %v495
        %837 = vmatpush.msra.mxu0 %v488
        %838 = vmatpush.msra.mxu0 %v481
        %839 = vmatpush.msra.mxu0 %v474
        %840 = vmatpush.msra.mxu0 %v467
        %841 = vmatmul.f32.gmra.mxu0 %v231
        %v842 = vpop.f32.mrf.mxu0
        %v843 = vadd.f32 %v814, %v842
        %844 = vmatmul.f32.gmra.mxu0 %v234
        %v845 = vpop.f32.mrf.mxu0
        %v846 = vadd.f32 %v817, %v845
        %847 = vmatmul.f32.gmra.mxu0 %v237
        %v848 = vpop.f32.mrf.mxu0
        %v849 = vadd.f32 %v820, %v848
        %850 = vmatmul.f32.gmra.mxu0 %v240
        %v851 = vpop.f32.mrf.mxu0
        %v852 = vadd.f32 %v823, %v851
        %853 = vdwg.mxu0
        %854 = vmatpush.msra.mxu0 %v349
        %855 = vmatpush.msra.mxu0 %v342
        %856 = vmatpush.msra.mxu0 %v335
        %857 = vmatpush.msra.mxu0 %v328
        %858 = vmatpush.msra.mxu0 %v321
        %859 = vmatpush.msra.mxu0 %v314
        %860 = vmatpush.msra.mxu0 %v307
        %861 = vmatpush.msra.mxu0 %v300
        %862 = vmatpush.msra.mxu0 %v293
        %863 = vmatpush.msra.mxu0 %v286
        %864 = vmatpush.msra.mxu0 %v279
        %865 = vmatpush.msra.mxu0 %v272
        %866 = vmatpush.msra.mxu0 %v265
        %867 = vmatpush.msra.mxu0 %v258
        %868 = vmatpush.msra.mxu0 %v251
        %869 = vmatpush.msra.mxu0 %v244
        %870 = vmatmul.f32.gmra.mxu0 %v229
        %v871 = vpop.f32.mrf.mxu0
        %v872 = vadd.f32 %v582, %v871
        %873 = vmatmul.f32.gmra.mxu0 %v232
        %v874 = vpop.f32.mrf.mxu0
        %v875 = vadd.f32 %v582, %v874
        %876 = vmatmul.f32.gmra.mxu0 %v235
        %v877 = vpop.f32.mrf.mxu0
        %v878 = vadd.f32 %v582, %v877
        %879 = vmatmul.f32.gmra.mxu0 %v238
        %v880 = vpop.f32.mrf.mxu0
        %v881 = vadd.f32 %v582, %v880
        %882 = vdwg.mxu0
        %883 = vmatpush.msra.mxu0 %v461
        %884 = vmatpush.msra.mxu0 %v454
        %885 = vmatpush.msra.mxu0 %v447
        %886 = vmatpush.msra.mxu0 %v440
        %887 = vmatpush.msra.mxu0 %v433
        %888 = vmatpush.msra.mxu0 %v426
        %889 = vmatpush.msra.mxu0 %v419
        %890 = vmatpush.msra.mxu0 %v412
        %891 = vmatpush.msra.mxu0 %v405
        %892 = vmatpush.msra.mxu0 %v398
        %893 = vmatpush.msra.mxu0 %v391
        %894 = vmatpush.msra.mxu0 %v384
        %895 = vmatpush.msra.mxu0 %v377
        %896 = vmatpush.msra.mxu0 %v370
        %897 = vmatpush.msra.mxu0 %v363
        %898 = vmatpush.msra.mxu0 %v356
        %899 = vmatmul.f32.gmra.mxu0 %v230
        %v900 = vpop.f32.mrf.mxu0
        %v901 = vadd.f32 %v872, %v900
        %902 = vmatmul.f32.gmra.mxu0 %v233
        %v903 = vpop.f32.mrf.mxu0
        %v904 = vadd.f32 %v875, %v903
        %905 = vmatmul.f32.gmra.mxu0 %v236
        %v906 = vpop.f32.mrf.mxu0
        %v907 = vadd.f32 %v878, %v906
        %908 = vmatmul.f32.gmra.mxu0 %v239
        %v909 = vpop.f32.mrf.mxu0
        %v910 = vadd.f32 %v881, %v909
        %911 = vdwg.mxu0
        %912 = vmatpush.msra.mxu0 %v573
        %913 = vmatpush.msra.mxu0 %v566
        %914 = vmatpush.msra.mxu0 %v559
        %915 = vmatpush.msra.mxu0 %v552
        %916 = vmatpush.msra.mxu0 %v545
        %917 = vmatpush.msra.mxu0 %v538
        %918 = vmatpush.msra.mxu0 %v531
        %919 = vmatpush.msra.mxu0 %v524
        %920 = vmatpush.msra.mxu0 %v517
        %921 = vmatpush.msra.mxu0 %v510
        %922 = vmatpush.msra.mxu0 %v503
        %923 = vmatpush.msra.mxu0 %v496
        %924 = vmatpush.msra.mxu0 %v489
        %925 = vmatpush.msra.mxu0 %v482
        %926 = vmatpush.msra.mxu0 %v475
        %927 = vmatpush.msra.mxu0 %v468
        %928 = vmatmul.f32.gmra.mxu0 %v231
        %v929 = vpop.f32.mrf.mxu0
        %v930 = vadd.f32 %v901, %v929
        %931 = vmatmul.f32.gmra.mxu0 %v234
        %v932 = vpop.f32.mrf.mxu0
        %v933 = vadd.f32 %v904, %v932
        %934 = vmatmul.f32.gmra.mxu0 %v237
        %v935 = vpop.f32.mrf.mxu0
        %v936 = vadd.f32 %v907, %v935
        %937 = vmatmul.f32.gmra.mxu0 %v240
        %v938 = vpop.f32.mrf.mxu0
        %v939 = vadd.f32 %v910, %v938
        %940 = vdwg.mxu0
        %941 = vmatpush.msra.mxu0 %v350
        %942 = vmatpush.msra.mxu0 %v343
        %943 = vmatpush.msra.mxu0 %v336
        %944 = vmatpush.msra.mxu0 %v329
        %945 = vmatpush.msra.mxu0 %v322
        %946 = vmatpush.msra.mxu0 %v315
        %947 = vmatpush.msra.mxu0 %v308
        %948 = vmatpush.msra.mxu0 %v301
        %949 = vmatpush.msra.mxu0 %v294
        %950 = vmatpush.msra.mxu0 %v287
        %951 = vmatpush.msra.mxu0 %v280
        %952 = vmatpush.msra.mxu0 %v273
        %953 = vmatpush.msra.mxu0 %v266
        %954 = vmatpush.msra.mxu0 %v259
        %955 = vmatpush.msra.mxu0 %v252
        %956 = vmatpush.msra.mxu0 %v245
        %957 = vmatmul.f32.gmra.mxu0 %v229
        %v958 = vpop.f32.mrf.mxu0
        %v959 = vadd.f32 %v583, %v958
        %960 = vmatmul.f32.gmra.mxu0 %v232
        %v961 = vpop.f32.mrf.mxu0
        %v962 = vadd.f32 %v583, %v961
        %963 = vmatmul.f32.gmra.mxu0 %v235
        %v964 = vpop.f32.mrf.mxu0
        %v965 = vadd.f32 %v583, %v964
        %966 = vmatmul.f32.gmra.mxu0 %v238
        %v967 = vpop.f32.mrf.mxu0
        %v968 = vadd.f32 %v583, %v967
        %969 = vdwg.mxu0
        %970 = vmatpush.msra.mxu0 %v462
        %971 = vmatpush.msra.mxu0 %v455
        %972 = vmatpush.msra.mxu0 %v448
        %973 = vmatpush.msra.mxu0 %v441
        %974 = vmatpush.msra.mxu0 %v434
        %975 = vmatpush.msra.mxu0 %v427
        %976 = vmatpush.msra.mxu0 %v420
        %977 = vmatpush.msra.mxu0 %v413
        %978 = vmatpush.msra.mxu0 %v406
        %979 = vmatpush.msra.mxu0 %v399
        %980 = vmatpush.msra.mxu0 %v392
        %981 = vmatpush.msra.mxu0 %v385
        %982 = vmatpush.msra.mxu0 %v378
        %983 = vmatpush.msra.mxu0 %v371
        %984 = vmatpush.msra.mxu0 %v364
        %985 = vmatpush.msra.mxu0 %v357
        %986 = vmatmul.f32.gmra.mxu0 %v230
        %v987 = vpop.f32.mrf.mxu0
        %v988 = vadd.f32 %v959, %v987
        %989 = vmatmul.f32.gmra.mxu0 %v233
        %v990 = vpop.f32.mrf.mxu0
        %v991 = vadd.f32 %v962, %v990
        %992 = vmatmul.f32.gmra.mxu0 %v236
        %v993 = vpop.f32.mrf.mxu0
        %v994 = vadd.f32 %v965, %v993
        %995 = vmatmul.f32.gmra.mxu0 %v239
        %v996 = vpop.f32.mrf.mxu0
        %v997 = vadd.f32 %v968, %v996
        %998 = vdwg.mxu0
        %999 = vmatpush.msra.mxu0 %v574
        %1000 = vmatpush.msra.mxu0 %v567
        %1001 = vmatpush.msra.mxu0 %v560
        %1002 = vmatpush.msra.mxu0 %v553
        %1003 = vmatpush.msra.mxu0 %v546
        %1004 = vmatpush.msra.mxu0 %v539
        %1005 = vmatpush.msra.mxu0 %v532
        %1006 = vmatpush.msra.mxu0 %v525
        %1007 = vmatpush.msra.mxu0 %v518
        %1008 = vmatpush.msra.mxu0 %v511
        %1009 = vmatpush.msra.mxu0 %v504
        %1010 = vmatpush.msra.mxu0 %v497
        %1011 = vmatpush.msra.mxu0 %v490
        %1012 = vmatpush.msra.mxu0 %v483
        %1013 = vmatpush.msra.mxu0 %v476
        %1014 = vmatpush.msra.mxu0 %v469
        %1015 = vmatmul.f32.gmra.mxu0 %v231
        %v1016 = vpop.f32.mrf.mxu0
        %v1017 = vadd.f32 %v988, %v1016
        %1018 = vmatmul.f32.gmra.mxu0 %v234
        %v1019 = vpop.f32.mrf.mxu0
        %v1020 = vadd.f32 %v991, %v1019
        %1021 = vmatmul.f32.gmra.mxu0 %v237
        %v1022 = vpop.f32.mrf.mxu0
        %v1023 = vadd.f32 %v994, %v1022
        %1024 = vmatmul.f32.gmra.mxu0 %v240
        %v1025 = vpop.f32.mrf.mxu0
        %v1026 = vadd.f32 %v997, %v1025
        %1027 = vdwg.mxu0
        %1028 = vmatpush.msra.mxu0 %v351
        %1029 = vmatpush.msra.mxu0 %v344
        %1030 = vmatpush.msra.mxu0 %v337
        %1031 = vmatpush.msra.mxu0 %v330
        %1032 = vmatpush.msra.mxu0 %v323
        %1033 = vmatpush.msra.mxu0 %v316
        %1034 = vmatpush.msra.mxu0 %v309
        %1035 = vmatpush.msra.mxu0 %v302
        %1036 = vmatpush.msra.mxu0 %v295
        %1037 = vmatpush.msra.mxu0 %v288
        %1038 = vmatpush.msra.mxu0 %v281
        %1039 = vmatpush.msra.mxu0 %v274
        %1040 = vmatpush.msra.mxu0 %v267
        %1041 = vmatpush.msra.mxu0 %v260
        %1042 = vmatpush.msra.mxu0 %v253
        %1043 = vmatpush.msra.mxu0 %v246
        %1044 = vmatmul.f32.gmra.mxu0 %v229
        %v1045 = vpop.f32.mrf.mxu0
        %v1046 = vadd.f32 %v584, %v1045
        %1047 = vmatmul.f32.gmra.mxu0 %v232
        %v1048 = vpop.f32.mrf.mxu0
        %v1049 = vadd.f32 %v584, %v1048
        %1050 = vmatmul.f32.gmra.mxu0 %v235
        %v1051 = vpop.f32.mrf.mxu0
        %v1052 = vadd.f32 %v584, %v1051
        %1053 = vmatmul.f32.gmra.mxu0 %v238
        %v1054 = vpop.f32.mrf.mxu0
        %v1055 = vadd.f32 %v584, %v1054
        %1056 = vdwg.mxu0
        %1057 = vmatpush.msra.mxu0 %v463
        %1058 = vmatpush.msra.mxu0 %v456
        %1059 = vmatpush.msra.mxu0 %v449
        %1060 = vmatpush.msra.mxu0 %v442
        %1061 = vmatpush.msra.mxu0 %v435
        %1062 = vmatpush.msra.mxu0 %v428
        %1063 = vmatpush.msra.mxu0 %v421
        %1064 = vmatpush.msra.mxu0 %v414
        %1065 = vmatpush.msra.mxu0 %v407
        %1066 = vmatpush.msra.mxu0 %v400
        %1067 = vmatpush.msra.mxu0 %v393
        %1068 = vmatpush.msra.mxu0 %v386
        %1069 = vmatpush.msra.mxu0 %v379
        %1070 = vmatpush.msra.mxu0 %v372
        %1071 = vmatpush.msra.mxu0 %v365
        %1072 = vmatpush.msra.mxu0 %v358
        %1073 = vmatmul.f32.gmra.mxu0 %v230
        %v1074 = vpop.f32.mrf.mxu0
        %v1075 = vadd.f32 %v1046, %v1074
        %1076 = vmatmul.f32.gmra.mxu0 %v233
        %v1077 = vpop.f32.mrf.mxu0
        %v1078 = vadd.f32 %v1049, %v1077
        %1079 = vmatmul.f32.gmra.mxu0 %v236
        %v1080 = vpop.f32.mrf.mxu0
        %v1081 = vadd.f32 %v1052, %v1080
        %1082 = vmatmul.f32.gmra.mxu0 %v239
        %v1083 = vpop.f32.mrf.mxu0
        %v1084 = vadd.f32 %v1055, %v1083
        %1085 = vdwg.mxu0
        %1086 = vmatpush.msra.mxu0 %v575
        %1087 = vmatpush.msra.mxu0 %v568
        %1088 = vmatpush.msra.mxu0 %v561
        %1089 = vmatpush.msra.mxu0 %v554
        %1090 = vmatpush.msra.mxu0 %v547
        %1091 = vmatpush.msra.mxu0 %v540
        %1092 = vmatpush.msra.mxu0 %v533
        %1093 = vmatpush.msra.mxu0 %v526
        %1094 = vmatpush.msra.mxu0 %v519
        %1095 = vmatpush.msra.mxu0 %v512
        %1096 = vmatpush.msra.mxu0 %v505
        %1097 = vmatpush.msra.mxu0 %v498
        %1098 = vmatpush.msra.mxu0 %v491
        %1099 = vmatpush.msra.mxu0 %v484
        %1100 = vmatpush.msra.mxu0 %v477
        %1101 = vmatpush.msra.mxu0 %v470
        %1102 = vmatmul.f32.gmra.mxu0 %v231
        %v1103 = vpop.f32.mrf.mxu0
        %v1104 = vadd.f32 %v1075, %v1103
        %1105 = vmatmul.f32.gmra.mxu0 %v234
        %v1106 = vpop.f32.mrf.mxu0
        %v1107 = vadd.f32 %v1078, %v1106
        %1108 = vmatmul.f32.gmra.mxu0 %v237
        %v1109 = vpop.f32.mrf.mxu0
        %v1110 = vadd.f32 %v1081, %v1109
        %1111 = vmatmul.f32.gmra.mxu0 %v240
        %v1112 = vpop.f32.mrf.mxu0
        %v1113 = vadd.f32 %v1084, %v1112
        %1114 = vdwg.mxu0
        %1115 = vmatpush.msra.mxu0 %v352
        %1116 = vmatpush.msra.mxu0 %v345
        %1117 = vmatpush.msra.mxu0 %v338
        %1118 = vmatpush.msra.mxu0 %v331
        %1119 = vmatpush.msra.mxu0 %v324
        %1120 = vmatpush.msra.mxu0 %v317
        %1121 = vmatpush.msra.mxu0 %v310
        %1122 = vmatpush.msra.mxu0 %v303
        %1123 = vmatpush.msra.mxu0 %v296
        %1124 = vmatpush.msra.mxu0 %v289
        %1125 = vmatpush.msra.mxu0 %v282
        %1126 = vmatpush.msra.mxu0 %v275
        %1127 = vmatpush.msra.mxu0 %v268
        %1128 = vmatpush.msra.mxu0 %v261
        %1129 = vmatpush.msra.mxu0 %v254
        %1130 = vmatpush.msra.mxu0 %v247
        %1131 = vmatmul.f32.gmra.mxu0 %v229
        %v1132 = vpop.f32.mrf.mxu0
        %v1133 = vadd.f32 %v585, %v1132
        %1134 = vmatmul.f32.gmra.mxu0 %v232
        %v1135 = vpop.f32.mrf.mxu0
        %v1136 = vadd.f32 %v585, %v1135
        %1137 = vmatmul.f32.gmra.mxu0 %v235
        %v1138 = vpop.f32.mrf.mxu0
        %v1139 = vadd.f32 %v585, %v1138
        %1140 = vmatmul.f32.gmra.mxu0 %v238
        %v1141 = vpop.f32.mrf.mxu0
        %v1142 = vadd.f32 %v585, %v1141
        %1143 = vdwg.mxu0
        %1144 = vmatpush.msra.mxu0 %v464
        %1145 = vmatpush.msra.mxu0 %v457
        %1146 = vmatpush.msra.mxu0 %v450
        %1147 = vmatpush.msra.mxu0 %v443
        %1148 = vmatpush.msra.mxu0 %v436
        %1149 = vmatpush.msra.mxu0 %v429
        %1150 = vmatpush.msra.mxu0 %v422
        %1151 = vmatpush.msra.mxu0 %v415
        %1152 = vmatpush.msra.mxu0 %v408
        %1153 = vmatpush.msra.mxu0 %v401
        %1154 = vmatpush.msra.mxu0 %v394
        %1155 = vmatpush.msra.mxu0 %v387
        %1156 = vmatpush.msra.mxu0 %v380
        %1157 = vmatpush.msra.mxu0 %v373
        %1158 = vmatpush.msra.mxu0 %v366
        %1159 = vmatpush.msra.mxu0 %v359
        %1160 = vmatmul.f32.gmra.mxu0 %v230
        %v1161 = vpop.f32.mrf.mxu0
        %v1162 = vadd.f32 %v1133, %v1161
        %1163 = vmatmul.f32.gmra.mxu0 %v233
        %v1164 = vpop.f32.mrf.mxu0
        %v1165 = vadd.f32 %v1136, %v1164
        %1166 = vmatmul.f32.gmra.mxu0 %v236
        %v1167 = vpop.f32.mrf.mxu0
        %v1168 = vadd.f32 %v1139, %v1167
        %1169 = vmatmul.f32.gmra.mxu0 %v239
        %v1170 = vpop.f32.mrf.mxu0
        %v1171 = vadd.f32 %v1142, %v1170
        %1172 = vdwg.mxu0
        %1173 = vmatpush.msra.mxu0 %v576
        %1174 = vmatpush.msra.mxu0 %v569
        %1175 = vmatpush.msra.mxu0 %v562
        %1176 = vmatpush.msra.mxu0 %v555
        %1177 = vmatpush.msra.mxu0 %v548
        %1178 = vmatpush.msra.mxu0 %v541
        %1179 = vmatpush.msra.mxu0 %v534
        %1180 = vmatpush.msra.mxu0 %v527
        %1181 = vmatpush.msra.mxu0 %v520
        %1182 = vmatpush.msra.mxu0 %v513
        %1183 = vmatpush.msra.mxu0 %v506
        %1184 = vmatpush.msra.mxu0 %v499
        %1185 = vmatpush.msra.mxu0 %v492
        %1186 = vmatpush.msra.mxu0 %v485
        %1187 = vmatpush.msra.mxu0 %v478
        %1188 = vmatpush.msra.mxu0 %v471
        %1189 = vmatmul.f32.gmra.mxu0 %v231
        %v1190 = vpop.f32.mrf.mxu0
        %v1191 = vadd.f32 %v1162, %v1190
        %1192 = vmatmul.f32.gmra.mxu0 %v234
        %v1193 = vpop.f32.mrf.mxu0
        %v1194 = vadd.f32 %v1165, %v1193
        %1195 = vmatmul.f32.gmra.mxu0 %v237
        %v1196 = vpop.f32.mrf.mxu0
        %v1197 = vadd.f32 %v1168, %v1196
        %1198 = vmatmul.f32.gmra.mxu0 %v240
        %v1199 = vpop.f32.mrf.mxu0
        %v1200 = vadd.f32 %v1171, %v1199
        %1201 = vdwg.mxu0
        %vm1202 = vcmask 523264
        %v1204 = vsel %vm1202, %v669, 0
        %v1207 = vsel %vm1202, %v930, 0
        %1209 = vmatpush.xpose.msra.mxu0 0.0
        %1210 = vmatpush.xpose.msra.mxu0 0.0
        %1211 = vmatpush.xpose.msra.mxu0 0.0
        %1212 = vmatpush.xpose.msra.mxu0 0.0
        %1213 = vmatpush.xpose.msra.mxu0 0.0
        %1214 = vmatpush.xpose.msra.mxu0 0.0
        %1215 = vmatpush.xpose.msra.mxu0 0.0
        %1216 = vmatpush.xpose.msra.mxu0 0.0
        %1217 = vmatpush.xpose.msra.mxu0 0.0
        %1218 = vmatpush.xpose.msra.mxu0 0.0
        %1219 = vmatpush.xpose.msra.mxu0 0.0
        %1220 = vmatpush.xpose.msra.mxu0 0.0
        %1221 = vmatpush.xpose.msra.mxu0 0.0
        %1222 = vmatpush.xpose.msra.mxu0 0.0
        %1223 = vmatpush.xpose.msra.mxu0 0.0
        %1224 = vmatpush.xpose.msra.mxu0 %v1207
        %1225 = vmatmul.f32.gmra.mxu0 %v1204
        %v1226 = vpop.f32.mrf.mxu0
        %v1227 = vadd.f32 0.0, %v1226
        %1228 = vdwg.mxu0
        %v1230 = vsel %vm1202, %v672, 0
        %v1233 = vsel %vm1202, %v933, 0
        %1235 = vmatpush.xpose.msra.mxu0 0.0
        %1236 = vmatpush.xpose.msra.mxu0 0.0
        %1237 = vmatpush.xpose.msra.mxu0 0.0
        %1238 = vmatpush.xpose.msra.mxu0 0.0
        %1239 = vmatpush.xpose.msra.mxu0 0.0
        %1240 = vmatpush.xpose.msra.mxu0 0.0
        %1241 = vmatpush.xpose.msra.mxu0 0.0
        %1242 = vmatpush.xpose.msra.mxu0 0.0
        %1243 = vmatpush.xpose.msra.mxu0 0.0
        %1244 = vmatpush.xpose.msra.mxu0 0.0
        %1245 = vmatpush.xpose.msra.mxu0 0.0
        %1246 = vmatpush.xpose.msra.mxu0 0.0
        %1247 = vmatpush.xpose.msra.mxu0 0.0
        %1248 = vmatpush.xpose.msra.mxu0 0.0
        %1249 = vmatpush.xpose.msra.mxu0 0.0
        %1250 = vmatpush.xpose.msra.mxu0 %v1233
        %1251 = vmatmul.f32.gmra.mxu0 %v1230
        %v1252 = vpop.f32.mrf.mxu0
        %v1253 = vadd.f32 0.0, %v1252
        %1254 = vdwg.mxu0
        %v1256 = vsel %vm1202, %v675, 0
        %v1259 = vsel %vm1202, %v936, 0
        %1261 = vmatpush.xpose.msra.mxu0 0.0
        %1262 = vmatpush.xpose.msra.mxu0 0.0
        %1263 = vmatpush.xpose.msra.mxu0 0.0
        %1264 = vmatpush.xpose.msra.mxu0 0.0
        %1265 = vmatpush.xpose.msra.mxu0 0.0
        %1266 = vmatpush.xpose.msra.mxu0 0.0
        %1267 = vmatpush.xpose.msra.mxu0 0.0
        %1268 = vmatpush.xpose.msra.mxu0 0.0
        %1269 = vmatpush.xpose.msra.mxu0 0.0
        %1270 = vmatpush.xpose.msra.mxu0 0.0
        %1271 = vmatpush.xpose.msra.mxu0 0.0
        %1272 = vmatpush.xpose.msra.mxu0 0.0
        %1273 = vmatpush.xpose.msra.mxu0 0.0
        %1274 = vmatpush.xpose.msra.mxu0 0.0
        %1275 = vmatpush.xpose.msra.mxu0 0.0
        %1276 = vmatpush.xpose.msra.mxu0 %v1259
        %1277 = vmatmul.f32.gmra.mxu0 %v1256
        %v1278 = vpop.f32.mrf.mxu0
        %v1279 = vadd.f32 0.0, %v1278
        %1280 = vdwg.mxu0
        %v1282 = vsel %vm1202, %v678, 0
        %v1285 = vsel %vm1202, %v939, 0
        %1287 = vmatpush.xpose.msra.mxu0 0.0
        %1288 = vmatpush.xpose.msra.mxu0 0.0
        %1289 = vmatpush.xpose.msra.mxu0 0.0
        %1290 = vmatpush.xpose.msra.mxu0 0.0
        %1291 = vmatpush.xpose.msra.mxu0 0.0
        %1292 = vmatpush.xpose.msra.mxu0 0.0
        %1293 = vmatpush.xpose.msra.mxu0 0.0
        %1294 = vmatpush.xpose.msra.mxu0 0.0
        %1295 = vmatpush.xpose.msra.mxu0 0.0
        %1296 = vmatpush.xpose.msra.mxu0 0.0
        %1297 = vmatpush.xpose.msra.mxu0 0.0
        %1298 = vmatpush.xpose.msra.mxu0 0.0
        %1299 = vmatpush.xpose.msra.mxu0 0.0
        %1300 = vmatpush.xpose.msra.mxu0 0.0
        %1301 = vmatpush.xpose.msra.mxu0 0.0
        %1302 = vmatpush.xpose.msra.mxu0 %v1285
        %1303 = vmatmul.f32.gmra.mxu0 %v1282
        %v1304 = vpop.f32.mrf.mxu0
        %v1305 = vadd.f32 0.0, %v1304
        %1306 = vdwg.mxu0
        %v1307 = vmul.f32 %v1227, 0.125
        %v1308 = vmul.f32 %v1253, 0.125
        %v1309 = vmul.f32 %v1279, 0.125
        %v1310 = vmul.f32 %v1305, 0.125
        %vm1311 = vcmask 64512
        %v1312 = vsel %vm1311, %v1307, -inf
        %1313 = vmax.xlane.f32.xlu0 %v1312
        %v1314 = vpop.xlane.xlu0 %1313
        %v1315 = vsel %vm1311, %v1308, -inf
        %1316 = vmax.xlane.f32.xlu0 %v1315
        %v1317 = vpop.xlane.xlu0 %1316
        %v1318 = vsel %vm1311, %v1309, -inf
        %1319 = vmax.xlane.f32.xlu0 %v1318
        %v1320 = vpop.xlane.xlu0 %1319
        %v1321 = vsel %vm1311, %v1310, -inf
        %1322 = vmax.xlane.f32.xlu0 %v1321
        %v1323 = vpop.xlane.xlu0 %1322
        %v1324 = vsub.f32 %v1307, %v1314
        %v1325 = vsub.f32 %v1308, %v1317
        %v1326 = vsub.f32 %v1309, %v1320
        %v1327 = vsub.f32 %v1310, %v1323
        %v1328 = vmul.f32 %v1324, 1.442695
        %v1329 = vpow.pop %v1328
        %v1330 = vmul.f32 %v1325, 1.442695
        %v1331 = vpow.pop %v1330
        %v1332 = vmul.f32 %v1326, 1.442695
        %v1333 = vpow.pop %v1332
        %v1334 = vmul.f32 %v1327, 1.442695
        %v1335 = vpow.pop %v1334
        %v1336 = vsel %vm1311, %v1329, 0.0
        %1337 = vadd.xlane.f32.xlu0 %v1336
        %v1338 = vpop.xlane.xlu0 %1337
        %v1339 = vsel %vm1311, %v1331, 0.0
        %1340 = vadd.xlane.f32.xlu0 %v1339
        %v1341 = vpop.xlane.xlu0 %1340
        %v1342 = vsel %vm1311, %v1333, 0.0
        %1343 = vadd.xlane.f32.xlu0 %v1342
        %v1344 = vpop.xlane.xlu0 %1343
        %v1345 = vsel %vm1311, %v1335, 0.0
        %1346 = vadd.xlane.f32.xlu0 %v1345
        %v1347 = vpop.xlane.xlu0 %1346
        %v1349 = vsel %vm1311, %v1329, 0
        %1351 = vmatpush.msra.mxu0 0.0
        %1352 = vmatpush.msra.mxu0 0.0
        %1353 = vmatpush.msra.mxu0 0.0
        %1354 = vmatpush.msra.mxu0 0.0
        %1355 = vmatpush.msra.mxu0 0.0
        %1356 = vmatpush.msra.mxu0 0.0
        %1357 = vmatpush.msra.mxu0 0.0
        %1358 = vmatpush.msra.mxu0 0.0
        %1359 = vmatpush.msra.mxu0 0.0
        %1360 = vmatpush.msra.mxu0 0.0
        %1361 = vmatpush.msra.mxu0 0.0
        %1362 = vmatpush.msra.mxu0 0.0
        %1363 = vmatpush.msra.mxu0 0.0
        %1364 = vmatpush.msra.mxu0 0.0
        %1365 = vmatpush.msra.mxu0 0.0
        %1366 = vmatpush.msra.mxu0 %v1191
        %1367 = vmatmul.f32.gmra.mxu0 %v1349
        %v1368 = vpop.f32.mrf.mxu0
        %v1369 = vadd.f32 0.0, %v1368
        %1370 = vdwg.mxu0
        %v1372 = vsel %vm1311, %v1331, 0
        %1374 = vmatpush.msra.mxu0 0.0
        %1375 = vmatpush.msra.mxu0 0.0
        %1376 = vmatpush.msra.mxu0 0.0
        %1377 = vmatpush.msra.mxu0 0.0
        %1378 = vmatpush.msra.mxu0 0.0
        %1379 = vmatpush.msra.mxu0 0.0
        %1380 = vmatpush.msra.mxu0 0.0
        %1381 = vmatpush.msra.mxu0 0.0
        %1382 = vmatpush.msra.mxu0 0.0
        %1383 = vmatpush.msra.mxu0 0.0
        %1384 = vmatpush.msra.mxu0 0.0
        %1385 = vmatpush.msra.mxu0 0.0
        %1386 = vmatpush.msra.mxu0 0.0
        %1387 = vmatpush.msra.mxu0 0.0
        %1388 = vmatpush.msra.mxu0 0.0
        %1389 = vmatpush.msra.mxu0 %v1194
        %1390 = vmatmul.f32.gmra.mxu0 %v1372
        %v1391 = vpop.f32.mrf.mxu0
        %v1392 = vadd.f32 0.0, %v1391
        %1393 = vdwg.mxu0
        %v1395 = vsel %vm1311, %v1333, 0
        %1397 = vmatpush.msra.mxu0 0.0
        %1398 = vmatpush.msra.mxu0 0.0
        %1399 = vmatpush.msra.mxu0 0.0
        %1400 = vmatpush.msra.mxu0 0.0
        %1401 = vmatpush.msra.mxu0 0.0
        %1402 = vmatpush.msra.mxu0 0.0
        %1403 = vmatpush.msra.mxu0 0.0
        %1404 = vmatpush.msra.mxu0 0.0
        %1405 = vmatpush.msra.mxu0 0.0
        %1406 = vmatpush.msra.mxu0 0.0
        %1407 = vmatpush.msra.mxu0 0.0
        %1408 = vmatpush.msra.mxu0 0.0
        %1409 = vmatpush.msra.mxu0 0.0
        %1410 = vmatpush.msra.mxu0 0.0
        %1411 = vmatpush.msra.mxu0 0.0
        %1412 = vmatpush.msra.mxu0 %v1197
        %1413 = vmatmul.f32.gmra.mxu0 %v1395
        %v1414 = vpop.f32.mrf.mxu0
        %v1415 = vadd.f32 0.0, %v1414
        %1416 = vdwg.mxu0
        %v1418 = vsel %vm1311, %v1335, 0
        %1420 = vmatpush.msra.mxu0 0.0
        %1421 = vmatpush.msra.mxu0 0.0
        %1422 = vmatpush.msra.mxu0 0.0
        %1423 = vmatpush.msra.mxu0 0.0
        %1424 = vmatpush.msra.mxu0 0.0
        %1425 = vmatpush.msra.mxu0 0.0
        %1426 = vmatpush.msra.mxu0 0.0
        %1427 = vmatpush.msra.mxu0 0.0
        %1428 = vmatpush.msra.mxu0 0.0
        %1429 = vmatpush.msra.mxu0 0.0
        %1430 = vmatpush.msra.mxu0 0.0
        %1431 = vmatpush.msra.mxu0 0.0
        %1432 = vmatpush.msra.mxu0 0.0
        %1433 = vmatpush.msra.mxu0 0.0
        %1434 = vmatpush.msra.mxu0 0.0
        %1435 = vmatpush.msra.mxu0 %v1200
        %1436 = vmatmul.f32.gmra.mxu0 %v1418
        %v1437 = vpop.f32.mrf.mxu0
        %v1438 = vadd.f32 0.0, %v1437
        %1439 = vdwg.mxu0
        %v1440 = vrcp.pop %v1338
        %v1441 = vmul.f32 %v1338, %v1440
        %v1442 = vsub.f32 1.0, %v1441
        %v1443 = vmul.f32 %v1440, %v1442
        %v1444 = vadd.f32 %v1440, %v1443
        %vm1445 = vweird.f32 %v1338
        %vm1446 = vweird.f32 %v1440
        %vm1447 = vmor %vm1445, %vm1446
        %v1448 = vsel %vm1447, %v1440, %v1444
        %v1449 = vand.u32 2147483647, %v1338
        %vm1450 = vcmp.eq.f32.partialorder %v1449, 8.507059e+37
        %v1451 = vand.u32 %v1338, 2147483648
        %v1452 = vor.u32 1.1754944e-38, %v1451
        %v1453 = vsel %vm1450, %v1452, %v1448
        %v1454 = vrcp.pop %v1341
        %v1455 = vmul.f32 %v1341, %v1454
        %v1456 = vsub.f32 1.0, %v1455
        %v1457 = vmul.f32 %v1454, %v1456
        %v1458 = vadd.f32 %v1454, %v1457
        %vm1459 = vweird.f32 %v1341
        %vm1460 = vweird.f32 %v1454
        %vm1461 = vmor %vm1459, %vm1460
        %v1462 = vsel %vm1461, %v1454, %v1458
        %v1463 = vand.u32 2147483647, %v1341
        %vm1464 = vcmp.eq.f32.partialorder %v1463, 8.507059e+37
        %v1465 = vand.u32 %v1341, 2147483648
        %v1466 = vor.u32 1.1754944e-38, %v1465
        %v1467 = vsel %vm1464, %v1466, %v1462
        %v1468 = vrcp.pop %v1344
        %v1469 = vmul.f32 %v1344, %v1468
        %v1470 = vsub.f32 1.0, %v1469
        %v1471 = vmul.f32 %v1468, %v1470
        %v1472 = vadd.f32 %v1468, %v1471
        %vm1473 = vweird.f32 %v1344
        %vm1474 = vweird.f32 %v1468
        %vm1475 = vmor %vm1473, %vm1474
        %v1476 = vsel %vm1475, %v1468, %v1472
        %v1477 = vand.u32 2147483647, %v1344
        %vm1478 = vcmp.eq.f32.partialorder %v1477, 8.507059e+37
        %v1479 = vand.u32 %v1344, 2147483648
        %v1480 = vor.u32 1.1754944e-38, %v1479
        %v1481 = vsel %vm1478, %v1480, %v1476
        %v1482 = vrcp.pop %v1347
        %v1483 = vmul.f32 %v1347, %v1482
        %v1484 = vsub.f32 1.0, %v1483
        %v1485 = vmul.f32 %v1482, %v1484
        %v1486 = vadd.f32 %v1482, %v1485
        %vm1487 = vweird.f32 %v1347
        %vm1488 = vweird.f32 %v1482
        %vm1489 = vmor %vm1487, %vm1488
        %v1490 = vsel %vm1489, %v1482, %v1486
        %v1491 = vand.u32 2147483647, %v1347
        %vm1492 = vcmp.eq.f32.partialorder %v1491, 8.507059e+37
        %v1493 = vand.u32 %v1347, 2147483648
        %v1494 = vor.u32 1.1754944e-38, %v1493
        %v1495 = vsel %vm1492, %v1494, %v1490
        %v1496 = vmul.f32 %v1369, %v1453
        %v1497 = vmul.f32 %v1392, %v1467
        %v1498 = vmul.f32 %v1415, %v1481
        %v1499 = vmul.f32 %v1438, %v1495
        %1500 = vrot.lane.b32.xlu0 %v669, 64
        %v1501 = vpop.permute.xlu0 %1500
        %1502 = vrot.lane.b32.xlu0 %v930, 64
        %v1503 = vpop.permute.xlu0 %1502
        %v1504 = vsel %vm1202, %v1501, 0
        %v1506 = vsel %vm1202, %v1503, 0
        %1508 = vmatpush.xpose.msra.mxu0 0.0
        %1509 = vmatpush.xpose.msra.mxu0 0.0
        %1510 = vmatpush.xpose.msra.mxu0 0.0
        %1511 = vmatpush.xpose.msra.mxu0 0.0
        %1512 = vmatpush.xpose.msra.mxu0 0.0
        %1513 = vmatpush.xpose.msra.mxu0 0.0
        %1514 = vmatpush.xpose.msra.mxu0 0.0
        %1515 = vmatpush.xpose.msra.mxu0 0.0
        %1516 = vmatpush.xpose.msra.mxu0 0.0
        %1517 = vmatpush.xpose.msra.mxu0 0.0
        %1518 = vmatpush.xpose.msra.mxu0 0.0
        %1519 = vmatpush.xpose.msra.mxu0 0.0
        %1520 = vmatpush.xpose.msra.mxu0 0.0
        %1521 = vmatpush.xpose.msra.mxu0 0.0
        %1522 = vmatpush.xpose.msra.mxu0 0.0
        %1523 = vmatpush.xpose.msra.mxu0 %v1506
        %1524 = vmatmul.f32.gmra.mxu0 %v1504
        %v1525 = vpop.f32.mrf.mxu0
        %v1526 = vadd.f32 0.0, %v1525
        %1527 = vdwg.mxu0
        %1528 = vrot.lane.b32.xlu0 %v672, 64
        %v1529 = vpop.permute.xlu0 %1528
        %1530 = vrot.lane.b32.xlu0 %v933, 64
        %v1531 = vpop.permute.xlu0 %1530
        %v1532 = vsel %vm1202, %v1529, 0
        %v1534 = vsel %vm1202, %v1531, 0
        %1536 = vmatpush.xpose.msra.mxu0 0.0
        %1537 = vmatpush.xpose.msra.mxu0 0.0
        %1538 = vmatpush.xpose.msra.mxu0 0.0
        %1539 = vmatpush.xpose.msra.mxu0 0.0
        %1540 = vmatpush.xpose.msra.mxu0 0.0
        %1541 = vmatpush.xpose.msra.mxu0 0.0
        %1542 = vmatpush.xpose.msra.mxu0 0.0
        %1543 = vmatpush.xpose.msra.mxu0 0.0
        %1544 = vmatpush.xpose.msra.mxu0 0.0
        %1545 = vmatpush.xpose.msra.mxu0 0.0
        %1546 = vmatpush.xpose.msra.mxu0 0.0
        %1547 = vmatpush.xpose.msra.mxu0 0.0
        %1548 = vmatpush.xpose.msra.mxu0 0.0
        %1549 = vmatpush.xpose.msra.mxu0 0.0
        %1550 = vmatpush.xpose.msra.mxu0 0.0
        %1551 = vmatpush.xpose.msra.mxu0 %v1534
        %1552 = vmatmul.f32.gmra.mxu0 %v1532
        %v1553 = vpop.f32.mrf.mxu0
        %v1554 = vadd.f32 0.0, %v1553
        %1555 = vdwg.mxu0
        %1556 = vrot.lane.b32.xlu0 %v675, 64
        %v1557 = vpop.permute.xlu0 %1556
        %1558 = vrot.lane.b32.xlu0 %v936, 64
        %v1559 = vpop.permute.xlu0 %1558
        %v1560 = vsel %vm1202, %v1557, 0
        %v1562 = vsel %vm1202, %v1559, 0
        %1564 = vmatpush.xpose.msra.mxu0 0.0
        %1565 = vmatpush.xpose.msra.mxu0 0.0
        %1566 = vmatpush.xpose.msra.mxu0 0.0
        %1567 = vmatpush.xpose.msra.mxu0 0.0
        %1568 = vmatpush.xpose.msra.mxu0 0.0
        %1569 = vmatpush.xpose.msra.mxu0 0.0
        %1570 = vmatpush.xpose.msra.mxu0 0.0
        %1571 = vmatpush.xpose.msra.mxu0 0.0
        %1572 = vmatpush.xpose.msra.mxu0 0.0
        %1573 = vmatpush.xpose.msra.mxu0 0.0
        %1574 = vmatpush.xpose.msra.mxu0 0.0
        %1575 = vmatpush.xpose.msra.mxu0 0.0
        %1576 = vmatpush.xpose.msra.mxu0 0.0
        %1577 = vmatpush.xpose.msra.mxu0 0.0
        %1578 = vmatpush.xpose.msra.mxu0 0.0
        %1579 = vmatpush.xpose.msra.mxu0 %v1562
        %1580 = vmatmul.f32.gmra.mxu0 %v1560
        %v1581 = vpop.f32.mrf.mxu0
        %v1582 = vadd.f32 0.0, %v1581
        %1583 = vdwg.mxu0
        %1584 = vrot.lane.b32.xlu0 %v678, 64
        %v1585 = vpop.permute.xlu0 %1584
        %1586 = vrot.lane.b32.xlu0 %v939, 64
        %v1587 = vpop.permute.xlu0 %1586
        %v1588 = vsel %vm1202, %v1585, 0
        %v1590 = vsel %vm1202, %v1587, 0
        %1592 = vmatpush.xpose.msra.mxu0 0.0
        %1593 = vmatpush.xpose.msra.mxu0 0.0
        %1594 = vmatpush.xpose.msra.mxu0 0.0
        %1595 = vmatpush.xpose.msra.mxu0 0.0
        %1596 = vmatpush.xpose.msra.mxu0 0.0
        %1597 = vmatpush.xpose.msra.mxu0 0.0
        %1598 = vmatpush.xpose.msra.mxu0 0.0
        %1599 = vmatpush.xpose.msra.mxu0 0.0
        %1600 = vmatpush.xpose.msra.mxu0 0.0
        %1601 = vmatpush.xpose.msra.mxu0 0.0
        %1602 = vmatpush.xpose.msra.mxu0 0.0
        %1603 = vmatpush.xpose.msra.mxu0 0.0
        %1604 = vmatpush.xpose.msra.mxu0 0.0
        %1605 = vmatpush.xpose.msra.mxu0 0.0
        %1606 = vmatpush.xpose.msra.mxu0 0.0
        %1607 = vmatpush.xpose.msra.mxu0 %v1590
        %1608 = vmatmul.f32.gmra.mxu0 %v1588
        %v1609 = vpop.f32.mrf.mxu0
        %v1610 = vadd.f32 0.0, %v1609
        %1611 = vdwg.mxu0
        %v1612 = vmul.f32 %v1526, 0.125
        %v1613 = vmul.f32 %v1554, 0.125
        %v1614 = vmul.f32 %v1582, 0.125
        %v1615 = vmul.f32 %v1610, 0.125
        %v1616 = vsel %vm1311, %v1612, -inf
        %1617 = vmax.xlane.f32.xlu0 %v1616
        %v1618 = vpop.xlane.xlu0 %1617
        %v1619 = vsel %vm1311, %v1613, -inf
        %1620 = vmax.xlane.f32.xlu0 %v1619
        %v1621 = vpop.xlane.xlu0 %1620
        %v1622 = vsel %vm1311, %v1614, -inf
        %1623 = vmax.xlane.f32.xlu0 %v1622
        %v1624 = vpop.xlane.xlu0 %1623
        %v1625 = vsel %vm1311, %v1615, -inf
        %1626 = vmax.xlane.f32.xlu0 %v1625
        %v1627 = vpop.xlane.xlu0 %1626
        %v1628 = vsub.f32 %v1612, %v1618
        %v1629 = vsub.f32 %v1613, %v1621
        %v1630 = vsub.f32 %v1614, %v1624
        %v1631 = vsub.f32 %v1615, %v1627
        %v1632 = vmul.f32 %v1628, 1.442695
        %v1633 = vpow.pop %v1632
        %v1634 = vmul.f32 %v1629, 1.442695
        %v1635 = vpow.pop %v1634
        %v1636 = vmul.f32 %v1630, 1.442695
        %v1637 = vpow.pop %v1636
        %v1638 = vmul.f32 %v1631, 1.442695
        %v1639 = vpow.pop %v1638
        %v1640 = vsel %vm1311, %v1633, 0.0
        %1641 = vadd.xlane.f32.xlu0 %v1640
        %v1642 = vpop.xlane.xlu0 %1641
        %v1643 = vsel %vm1311, %v1635, 0.0
        %1644 = vadd.xlane.f32.xlu0 %v1643
        %v1645 = vpop.xlane.xlu0 %1644
        %v1646 = vsel %vm1311, %v1637, 0.0
        %1647 = vadd.xlane.f32.xlu0 %v1646
        %v1648 = vpop.xlane.xlu0 %1647
        %v1649 = vsel %vm1311, %v1639, 0.0
        %1650 = vadd.xlane.f32.xlu0 %v1649
        %v1651 = vpop.xlane.xlu0 %1650
        %1653 = vrot.lane.b32.xlu0 %v1191, 112
        %v1654 = vpop.permute.xlu0 %1653
        %v1657 = vsel %vm1311, %v1633, 0
        %1659 = vmatpush.msra.mxu0 0.0
        %1660 = vmatpush.msra.mxu0 0.0
        %1661 = vmatpush.msra.mxu0 0.0
        %1662 = vmatpush.msra.mxu0 0.0
        %1663 = vmatpush.msra.mxu0 0.0
        %1664 = vmatpush.msra.mxu0 0.0
        %1665 = vmatpush.msra.mxu0 0.0
        %1666 = vmatpush.msra.mxu0 0.0
        %1667 = vmatpush.msra.mxu0 0.0
        %1668 = vmatpush.msra.mxu0 0.0
        %1669 = vmatpush.msra.mxu0 0.0
        %1670 = vmatpush.msra.mxu0 0.0
        %1671 = vmatpush.msra.mxu0 0.0
        %1672 = vmatpush.msra.mxu0 0.0
        %1673 = vmatpush.msra.mxu0 0.0
        %1674 = vmatpush.msra.mxu0 %v1654
        %1675 = vmatmul.f32.gmra.mxu0 %v1657
        %v1676 = vpop.f32.mrf.mxu0
        %v1677 = vadd.f32 0.0, %v1676
        %1678 = vdwg.mxu0
        %1680 = vrot.lane.b32.xlu0 %v1194, 112
        %v1681 = vpop.permute.xlu0 %1680
        %v1684 = vsel %vm1311, %v1635, 0
        %1686 = vmatpush.msra.mxu0 0.0
        %1687 = vmatpush.msra.mxu0 0.0
        %1688 = vmatpush.msra.mxu0 0.0
        %1689 = vmatpush.msra.mxu0 0.0
        %1690 = vmatpush.msra.mxu0 0.0
        %1691 = vmatpush.msra.mxu0 0.0
        %1692 = vmatpush.msra.mxu0 0.0
        %1693 = vmatpush.msra.mxu0 0.0
        %1694 = vmatpush.msra.mxu0 0.0
        %1695 = vmatpush.msra.mxu0 0.0
        %1696 = vmatpush.msra.mxu0 0.0
        %1697 = vmatpush.msra.mxu0 0.0
        %1698 = vmatpush.msra.mxu0 0.0
        %1699 = vmatpush.msra.mxu0 0.0
        %1700 = vmatpush.msra.mxu0 0.0
        %1701 = vmatpush.msra.mxu0 %v1681
        %1702 = vmatmul.f32.gmra.mxu0 %v1684
        %v1703 = vpop.f32.mrf.mxu0
        %v1704 = vadd.f32 0.0, %v1703
        %1705 = vdwg.mxu0
        %1707 = vrot.lane.b32.xlu0 %v1197, 112
        %v1708 = vpop.permute.xlu0 %1707
        %v1711 = vsel %vm1311, %v1637, 0
        %1713 = vmatpush.msra.mxu0 0.0
        %1714 = vmatpush.msra.mxu0 0.0
        %1715 = vmatpush.msra.mxu0 0.0
        %1716 = vmatpush.msra.mxu0 0.0
        %1717 = vmatpush.msra.mxu0 0.0
        %1718 = vmatpush.msra.mxu0 0.0
        %1719 = vmatpush.msra.mxu0 0.0
        %1720 = vmatpush.msra.mxu0 0.0
        %1721 = vmatpush.msra.mxu0 0.0
        %1722 = vmatpush.msra.mxu0 0.0
        %1723 = vmatpush.msra.mxu0 0.0
        %1724 = vmatpush.msra.mxu0 0.0
        %1725 = vmatpush.msra.mxu0 0.0
        %1726 = vmatpush.msra.mxu0 0.0
        %1727 = vmatpush.msra.mxu0 0.0
        %1728 = vmatpush.msra.mxu0 %v1708
        %1729 = vmatmul.f32.gmra.mxu0 %v1711
        %v1730 = vpop.f32.mrf.mxu0
        %v1731 = vadd.f32 0.0, %v1730
        %1732 = vdwg.mxu0
        %1734 = vrot.lane.b32.xlu0 %v1200, 112
        %v1735 = vpop.permute.xlu0 %1734
        %v1738 = vsel %vm1311, %v1639, 0
        %1740 = vmatpush.msra.mxu0 0.0
        %1741 = vmatpush.msra.mxu0 0.0
        %1742 = vmatpush.msra.mxu0 0.0
        %1743 = vmatpush.msra.mxu0 0.0
        %1744 = vmatpush.msra.mxu0 0.0
        %1745 = vmatpush.msra.mxu0 0.0
        %1746 = vmatpush.msra.mxu0 0.0
        %1747 = vmatpush.msra.mxu0 0.0
        %1748 = vmatpush.msra.mxu0 0.0
        %1749 = vmatpush.msra.mxu0 0.0
        %1750 = vmatpush.msra.mxu0 0.0
        %1751 = vmatpush.msra.mxu0 0.0
        %1752 = vmatpush.msra.mxu0 0.0
        %1753 = vmatpush.msra.mxu0 0.0
        %1754 = vmatpush.msra.mxu0 0.0
        %1755 = vmatpush.msra.mxu0 %v1735
        %1756 = vmatmul.f32.gmra.mxu0 %v1738
        %v1757 = vpop.f32.mrf.mxu0
        %v1758 = vadd.f32 0.0, %v1757
        %1759 = vdwg.mxu0
        %v1760 = vrcp.pop %v1642
        %v1761 = vmul.f32 %v1642, %v1760
        %v1762 = vsub.f32 1.0, %v1761
        %v1763 = vmul.f32 %v1760, %v1762
        %v1764 = vadd.f32 %v1760, %v1763
        %vm1765 = vweird.f32 %v1642
        %vm1766 = vweird.f32 %v1760
        %vm1767 = vmor %vm1765, %vm1766
        %v1768 = vsel %vm1767, %v1760, %v1764
        %v1769 = vand.u32 2147483647, %v1642
        %vm1770 = vcmp.eq.f32.partialorder %v1769, 8.507059e+37
        %v1771 = vand.u32 %v1642, 2147483648
        %v1772 = vor.u32 1.1754944e-38, %v1771
        %v1773 = vsel %vm1770, %v1772, %v1768
        %v1774 = vrcp.pop %v1645
        %v1775 = vmul.f32 %v1645, %v1774
        %v1776 = vsub.f32 1.0, %v1775
        %v1777 = vmul.f32 %v1774, %v1776
        %v1778 = vadd.f32 %v1774, %v1777
        %vm1779 = vweird.f32 %v1645
        %vm1780 = vweird.f32 %v1774
        %vm1781 = vmor %vm1779, %vm1780
        %v1782 = vsel %vm1781, %v1774, %v1778
        %v1783 = vand.u32 2147483647, %v1645
        %vm1784 = vcmp.eq.f32.partialorder %v1783, 8.507059e+37
        %v1785 = vand.u32 %v1645, 2147483648
        %v1786 = vor.u32 1.1754944e-38, %v1785
        %v1787 = vsel %vm1784, %v1786, %v1782
        %v1788 = vrcp.pop %v1648
        %v1789 = vmul.f32 %v1648, %v1788
        %v1790 = vsub.f32 1.0, %v1789
        %v1791 = vmul.f32 %v1788, %v1790
        %v1792 = vadd.f32 %v1788, %v1791
        %vm1793 = vweird.f32 %v1648
        %vm1794 = vweird.f32 %v1788
        %vm1795 = vmor %vm1793, %vm1794
        %v1796 = vsel %vm1795, %v1788, %v1792
        %v1797 = vand.u32 2147483647, %v1648
        %vm1798 = vcmp.eq.f32.partialorder %v1797, 8.507059e+37
        %v1799 = vand.u32 %v1648, 2147483648
        %v1800 = vor.u32 1.1754944e-38, %v1799
        %v1801 = vsel %vm1798, %v1800, %v1796
        %v1802 = vrcp.pop %v1651
        %v1803 = vmul.f32 %v1651, %v1802
        %v1804 = vsub.f32 1.0, %v1803
        %v1805 = vmul.f32 %v1802, %v1804
        %v1806 = vadd.f32 %v1802, %v1805
        %vm1807 = vweird.f32 %v1651
        %vm1808 = vweird.f32 %v1802
        %vm1809 = vmor %vm1807, %vm1808
        %v1810 = vsel %vm1809, %v1802, %v1806
        %v1811 = vand.u32 2147483647, %v1651
        %vm1812 = vcmp.eq.f32.partialorder %v1811, 8.507059e+37
        %v1813 = vand.u32 %v1651, 2147483648
        %v1814 = vor.u32 1.1754944e-38, %v1813
        %v1815 = vsel %vm1812, %v1814, %v1810
        %v1816 = vmul.f32 %v1677, %v1773
        %v1817 = vmul.f32 %v1704, %v1787
        %v1818 = vmul.f32 %v1731, %v1801
        %v1819 = vmul.f32 %v1758, %v1815
        %v1821 = vsel %vm1202, %v756, 0
        %v1824 = vsel %vm1202, %v1017, 0
        %1826 = vmatpush.xpose.msra.mxu0 0.0
        %1827 = vmatpush.xpose.msra.mxu0 0.0
        %1828 = vmatpush.xpose.msra.mxu0 0.0
        %1829 = vmatpush.xpose.msra.mxu0 0.0
        %1830 = vmatpush.xpose.msra.mxu0 0.0
        %1831 = vmatpush.xpose.msra.mxu0 0.0
        %1832 = vmatpush.xpose.msra.mxu0 0.0
        %1833 = vmatpush.xpose.msra.mxu0 0.0
        %1834 = vmatpush.xpose.msra.mxu0 0.0
        %1835 = vmatpush.xpose.msra.mxu0 0.0
        %1836 = vmatpush.xpose.msra.mxu0 0.0
        %1837 = vmatpush.xpose.msra.mxu0 0.0
        %1838 = vmatpush.xpose.msra.mxu0 0.0
        %1839 = vmatpush.xpose.msra.mxu0 0.0
        %1840 = vmatpush.xpose.msra.mxu0 0.0
        %1841 = vmatpush.xpose.msra.mxu0 %v1824
        %1842 = vmatmul.f32.gmra.mxu0 %v1821
        %v1843 = vpop.f32.mrf.mxu0
        %v1844 = vadd.f32 0.0, %v1843
        %1845 = vdwg.mxu0
        %v1847 = vsel %vm1202, %v759, 0
        %v1850 = vsel %vm1202, %v1020, 0
        %1852 = vmatpush.xpose.msra.mxu0 0.0
        %1853 = vmatpush.xpose.msra.mxu0 0.0
        %1854 = vmatpush.xpose.msra.mxu0 0.0
        %1855 = vmatpush.xpose.msra.mxu0 0.0
        %1856 = vmatpush.xpose.msra.mxu0 0.0
        %1857 = vmatpush.xpose.msra.mxu0 0.0
        %1858 = vmatpush.xpose.msra.mxu0 0.0
        %1859 = vmatpush.xpose.msra.mxu0 0.0
        %1860 = vmatpush.xpose.msra.mxu0 0.0
        %1861 = vmatpush.xpose.msra.mxu0 0.0
        %1862 = vmatpush.xpose.msra.mxu0 0.0
        %1863 = vmatpush.xpose.msra.mxu0 0.0
        %1864 = vmatpush.xpose.msra.mxu0 0.0
        %1865 = vmatpush.xpose.msra.mxu0 0.0
        %1866 = vmatpush.xpose.msra.mxu0 0.0
        %1867 = vmatpush.xpose.msra.mxu0 %v1850
        %1868 = vmatmul.f32.gmra.mxu0 %v1847
        %v1869 = vpop.f32.mrf.mxu0
        %v1870 = vadd.f32 0.0, %v1869
        %1871 = vdwg.mxu0
        %v1873 = vsel %vm1202, %v762, 0
        %v1876 = vsel %vm1202, %v1023, 0
        %1878 = vmatpush.xpose.msra.mxu0 0.0
        %1879 = vmatpush.xpose.msra.mxu0 0.0
        %1880 = vmatpush.xpose.msra.mxu0 0.0
        %1881 = vmatpush.xpose.msra.mxu0 0.0
        %1882 = vmatpush.xpose.msra.mxu0 0.0
        %1883 = vmatpush.xpose.msra.mxu0 0.0
        %1884 = vmatpush.xpose.msra.mxu0 0.0
        %1885 = vmatpush.xpose.msra.mxu0 0.0
        %1886 = vmatpush.xpose.msra.mxu0 0.0
        %1887 = vmatpush.xpose.msra.mxu0 0.0
        %1888 = vmatpush.xpose.msra.mxu0 0.0
        %1889 = vmatpush.xpose.msra.mxu0 0.0
        %1890 = vmatpush.xpose.msra.mxu0 0.0
        %1891 = vmatpush.xpose.msra.mxu0 0.0
        %1892 = vmatpush.xpose.msra.mxu0 0.0
        %1893 = vmatpush.xpose.msra.mxu0 %v1876
        %1894 = vmatmul.f32.gmra.mxu0 %v1873
        %v1895 = vpop.f32.mrf.mxu0
        %v1896 = vadd.f32 0.0, %v1895
        %1897 = vdwg.mxu0
        %v1899 = vsel %vm1202, %v765, 0
        %v1902 = vsel %vm1202, %v1026, 0
        %1904 = vmatpush.xpose.msra.mxu0 0.0
        %1905 = vmatpush.xpose.msra.mxu0 0.0
        %1906 = vmatpush.xpose.msra.mxu0 0.0
        %1907 = vmatpush.xpose.msra.mxu0 0.0
        %1908 = vmatpush.xpose.msra.mxu0 0.0
        %1909 = vmatpush.xpose.msra.mxu0 0.0
        %1910 = vmatpush.xpose.msra.mxu0 0.0
        %1911 = vmatpush.xpose.msra.mxu0 0.0
        %1912 = vmatpush.xpose.msra.mxu0 0.0
        %1913 = vmatpush.xpose.msra.mxu0 0.0
        %1914 = vmatpush.xpose.msra.mxu0 0.0
        %1915 = vmatpush.xpose.msra.mxu0 0.0
        %1916 = vmatpush.xpose.msra.mxu0 0.0
        %1917 = vmatpush.xpose.msra.mxu0 0.0
        %1918 = vmatpush.xpose.msra.mxu0 0.0
        %1919 = vmatpush.xpose.msra.mxu0 %v1902
        %1920 = vmatmul.f32.gmra.mxu0 %v1899
        %v1921 = vpop.f32.mrf.mxu0
        %v1922 = vadd.f32 0.0, %v1921
        %1923 = vdwg.mxu0
        %v1924 = vmul.f32 %v1844, 0.125
        %v1925 = vmul.f32 %v1870, 0.125
        %v1926 = vmul.f32 %v1896, 0.125
        %v1927 = vmul.f32 %v1922, 0.125
        %v1928 = vsel %vm1311, %v1924, -inf
        %1929 = vmax.xlane.f32.xlu0 %v1928
        %v1930 = vpop.xlane.xlu0 %1929
        %v1931 = vsel %vm1311, %v1925, -inf
        %1932 = vmax.xlane.f32.xlu0 %v1931
        %v1933 = vpop.xlane.xlu0 %1932
        %v1934 = vsel %vm1311, %v1926, -inf
        %1935 = vmax.xlane.f32.xlu0 %v1934
        %v1936 = vpop.xlane.xlu0 %1935
        %v1937 = vsel %vm1311, %v1927, -inf
        %1938 = vmax.xlane.f32.xlu0 %v1937
        %v1939 = vpop.xlane.xlu0 %1938
        %v1940 = vsub.f32 %v1924, %v1930
        %v1941 = vsub.f32 %v1925, %v1933
        %v1942 = vsub.f32 %v1926, %v1936
        %v1943 = vsub.f32 %v1927, %v1939
        %v1944 = vmul.f32 %v1940, 1.442695
        %v1945 = vpow.pop %v1944
        %v1946 = vmul.f32 %v1941, 1.442695
        %v1947 = vpow.pop %v1946
        %v1948 = vmul.f32 %v1942, 1.442695
        %v1949 = vpow.pop %v1948
        %v1950 = vmul.f32 %v1943, 1.442695
        %v1951 = vpow.pop %v1950
        %v1952 = vsel %vm1311, %v1945, 0.0
        %1953 = vadd.xlane.f32.xlu0 %v1952
        %v1954 = vpop.xlane.xlu0 %1953
        %v1955 = vsel %vm1311, %v1947, 0.0
        %1956 = vadd.xlane.f32.xlu0 %v1955
        %v1957 = vpop.xlane.xlu0 %1956
        %v1958 = vsel %vm1311, %v1949, 0.0
        %1959 = vadd.xlane.f32.xlu0 %v1958
        %v1960 = vpop.xlane.xlu0 %1959
        %v1961 = vsel %vm1311, %v1951, 0.0
        %1962 = vadd.xlane.f32.xlu0 %v1961
        %v1963 = vpop.xlane.xlu0 %1962
        %1964 = vrot.lane.b32.xlu0 %v1191, 96
        %v1965 = vpop.permute.xlu0 %1964
        %v1968 = vsel %vm1311, %v1945, 0
        %1970 = vmatpush.msra.mxu0 0.0
        %1971 = vmatpush.msra.mxu0 0.0
        %1972 = vmatpush.msra.mxu0 0.0
        %1973 = vmatpush.msra.mxu0 0.0
        %1974 = vmatpush.msra.mxu0 0.0
        %1975 = vmatpush.msra.mxu0 0.0
        %1976 = vmatpush.msra.mxu0 0.0
        %1977 = vmatpush.msra.mxu0 0.0
        %1978 = vmatpush.msra.mxu0 0.0
        %1979 = vmatpush.msra.mxu0 0.0
        %1980 = vmatpush.msra.mxu0 0.0
        %1981 = vmatpush.msra.mxu0 0.0
        %1982 = vmatpush.msra.mxu0 0.0
        %1983 = vmatpush.msra.mxu0 0.0
        %1984 = vmatpush.msra.mxu0 0.0
        %1985 = vmatpush.msra.mxu0 %v1965
        %1986 = vmatmul.f32.gmra.mxu0 %v1968
        %v1987 = vpop.f32.mrf.mxu0
        %v1988 = vadd.f32 0.0, %v1987
        %1989 = vdwg.mxu0
        %1990 = vrot.lane.b32.xlu0 %v1194, 96
        %v1991 = vpop.permute.xlu0 %1990
        %v1994 = vsel %vm1311, %v1947, 0
        %1996 = vmatpush.msra.mxu0 0.0
        %1997 = vmatpush.msra.mxu0 0.0
        %1998 = vmatpush.msra.mxu0 0.0
        %1999 = vmatpush.msra.mxu0 0.0
        %2000 = vmatpush.msra.mxu0 0.0
        %2001 = vmatpush.msra.mxu0 0.0
        %2002 = vmatpush.msra.mxu0 0.0
        %2003 = vmatpush.msra.mxu0 0.0
        %2004 = vmatpush.msra.mxu0 0.0
        %2005 = vmatpush.msra.mxu0 0.0
        %2006 = vmatpush.msra.mxu0 0.0
        %2007 = vmatpush.msra.mxu0 0.0
        %2008 = vmatpush.msra.mxu0 0.0
        %2009 = vmatpush.msra.mxu0 0.0
        %2010 = vmatpush.msra.mxu0 0.0
        %2011 = vmatpush.msra.mxu0 %v1991
        %2012 = vmatmul.f32.gmra.mxu0 %v1994
        %v2013 = vpop.f32.mrf.mxu0
        %v2014 = vadd.f32 0.0, %v2013
        %2015 = vdwg.mxu0
        %2016 = vrot.lane.b32.xlu0 %v1197, 96
        %v2017 = vpop.permute.xlu0 %2016
        %v2020 = vsel %vm1311, %v1949, 0
        %2022 = vmatpush.msra.mxu0 0.0
        %2023 = vmatpush.msra.mxu0 0.0
        %2024 = vmatpush.msra.mxu0 0.0
        %2025 = vmatpush.msra.mxu0 0.0
        %2026 = vmatpush.msra.mxu0 0.0
        %2027 = vmatpush.msra.mxu0 0.0
        %2028 = vmatpush.msra.mxu0 0.0
        %2029 = vmatpush.msra.mxu0 0.0
        %2030 = vmatpush.msra.mxu0 0.0
        %2031 = vmatpush.msra.mxu0 0.0
        %2032 = vmatpush.msra.mxu0 0.0
        %2033 = vmatpush.msra.mxu0 0.0
        %2034 = vmatpush.msra.mxu0 0.0
        %2035 = vmatpush.msra.mxu0 0.0
        %2036 = vmatpush.msra.mxu0 0.0
        %2037 = vmatpush.msra.mxu0 %v2017
        %2038 = vmatmul.f32.gmra.mxu0 %v2020
        %v2039 = vpop.f32.mrf.mxu0
        %v2040 = vadd.f32 0.0, %v2039
        %2041 = vdwg.mxu0
        %2042 = vrot.lane.b32.xlu0 %v1200, 96
        %v2043 = vpop.permute.xlu0 %2042
        %v2046 = vsel %vm1311, %v1951, 0
        %2048 = vmatpush.msra.mxu0 0.0
        %2049 = vmatpush.msra.mxu0 0.0
        %2050 = vmatpush.msra.mxu0 0.0
        %2051 = vmatpush.msra.mxu0 0.0
        %2052 = vmatpush.msra.mxu0 0.0
        %2053 = vmatpush.msra.mxu0 0.0
        %2054 = vmatpush.msra.mxu0 0.0
        %2055 = vmatpush.msra.mxu0 0.0
        %2056 = vmatpush.msra.mxu0 0.0
        %2057 = vmatpush.msra.mxu0 0.0
        %2058 = vmatpush.msra.mxu0 0.0
        %2059 = vmatpush.msra.mxu0 0.0
        %2060 = vmatpush.msra.mxu0 0.0
        %2061 = vmatpush.msra.mxu0 0.0
        %2062 = vmatpush.msra.mxu0 0.0
        %2063 = vmatpush.msra.mxu0 %v2043
        %2064 = vmatmul.f32.gmra.mxu0 %v2046
        %v2065 = vpop.f32.mrf.mxu0
        %v2066 = vadd.f32 0.0, %v2065
        %2067 = vdwg.mxu0
        %v2068 = vrcp.pop %v1954
        %v2069 = vmul.f32 %v1954, %v2068
        %v2070 = vsub.f32 1.0, %v2069
        %v2071 = vmul.f32 %v2068, %v2070
        %v2072 = vadd.f32 %v2068, %v2071
        %vm2073 = vweird.f32 %v1954
        %vm2074 = vweird.f32 %v2068
        %vm2075 = vmor %vm2073, %vm2074
        %v2076 = vsel %vm2075, %v2068, %v2072
        %v2077 = vand.u32 2147483647, %v1954
        %vm2078 = vcmp.eq.f32.partialorder %v2077, 8.507059e+37
        %v2079 = vand.u32 %v1954, 2147483648
        %v2080 = vor.u32 1.1754944e-38, %v2079
        %v2081 = vsel %vm2078, %v2080, %v2076
        %v2082 = vrcp.pop %v1957
        %v2083 = vmul.f32 %v1957, %v2082
        %v2084 = vsub.f32 1.0, %v2083
        %v2085 = vmul.f32 %v2082, %v2084
        %v2086 = vadd.f32 %v2082, %v2085
        %vm2087 = vweird.f32 %v1957
        %vm2088 = vweird.f32 %v2082
        %vm2089 = vmor %vm2087, %vm2088
        %v2090 = vsel %vm2089, %v2082, %v2086
        %v2091 = vand.u32 2147483647, %v1957
        %vm2092 = vcmp.eq.f32.partialorder %v2091, 8.507059e+37
        %v2093 = vand.u32 %v1957, 2147483648
        %v2094 = vor.u32 1.1754944e-38, %v2093
        %v2095 = vsel %vm2092, %v2094, %v2090
        %v2096 = vrcp.pop %v1960
        %v2097 = vmul.f32 %v1960, %v2096
        %v2098 = vsub.f32 1.0, %v2097
        %v2099 = vmul.f32 %v2096, %v2098
        %v2100 = vadd.f32 %v2096, %v2099
        %vm2101 = vweird.f32 %v1960
        %vm2102 = vweird.f32 %v2096
        %vm2103 = vmor %vm2101, %vm2102
        %v2104 = vsel %vm2103, %v2096, %v2100
        %v2105 = vand.u32 2147483647, %v1960
        %vm2106 = vcmp.eq.f32.partialorder %v2105, 8.507059e+37
        %v2107 = vand.u32 %v1960, 2147483648
        %v2108 = vor.u32 1.1754944e-38, %v2107
        %v2109 = vsel %vm2106, %v2108, %v2104
        %v2110 = vrcp.pop %v1963
        %v2111 = vmul.f32 %v1963, %v2110
        %v2112 = vsub.f32 1.0, %v2111
        %v2113 = vmul.f32 %v2110, %v2112
        %v2114 = vadd.f32 %v2110, %v2113
        %vm2115 = vweird.f32 %v1963
        %vm2116 = vweird.f32 %v2110
        %vm2117 = vmor %vm2115, %vm2116
        %v2118 = vsel %vm2117, %v2110, %v2114
        %v2119 = vand.u32 2147483647, %v1963
        %vm2120 = vcmp.eq.f32.partialorder %v2119, 8.507059e+37
        %v2121 = vand.u32 %v1963, 2147483648
        %v2122 = vor.u32 1.1754944e-38, %v2121
        %v2123 = vsel %vm2120, %v2122, %v2118
        %v2124 = vmul.f32 %v1988, %v2081
        %v2125 = vmul.f32 %v2014, %v2095
        %v2126 = vmul.f32 %v2040, %v2109
        %v2127 = vmul.f32 %v2066, %v2123
        %2128 = vrot.lane.b32.xlu0 %v756, 64
        %v2129 = vpop.permute.xlu0 %2128
        %2130 = vrot.lane.b32.xlu0 %v1017, 64
        %v2131 = vpop.permute.xlu0 %2130
        %v2132 = vsel %vm1202, %v2129, 0
        %v2134 = vsel %vm1202, %v2131, 0
        %2136 = vmatpush.xpose.msra.mxu0 0.0
        %2137 = vmatpush.xpose.msra.mxu0 0.0
        %2138 = vmatpush.xpose.msra.mxu0 0.0
        %2139 = vmatpush.xpose.msra.mxu0 0.0
        %2140 = vmatpush.xpose.msra.mxu0 0.0
        %2141 = vmatpush.xpose.msra.mxu0 0.0
        %2142 = vmatpush.xpose.msra.mxu0 0.0
        %2143 = vmatpush.xpose.msra.mxu0 0.0
        %2144 = vmatpush.xpose.msra.mxu0 0.0
        %2145 = vmatpush.xpose.msra.mxu0 0.0
        %2146 = vmatpush.xpose.msra.mxu0 0.0
        %2147 = vmatpush.xpose.msra.mxu0 0.0
        %2148 = vmatpush.xpose.msra.mxu0 0.0
        %2149 = vmatpush.xpose.msra.mxu0 0.0
        %2150 = vmatpush.xpose.msra.mxu0 0.0
        %2151 = vmatpush.xpose.msra.mxu0 %v2134
        %2152 = vmatmul.f32.gmra.mxu0 %v2132
        %v2153 = vpop.f32.mrf.mxu0
        %v2154 = vadd.f32 0.0, %v2153
        %2155 = vdwg.mxu0
        %2156 = vrot.lane.b32.xlu0 %v759, 64
        %v2157 = vpop.permute.xlu0 %2156
        %2158 = vrot.lane.b32.xlu0 %v1020, 64
        %v2159 = vpop.permute.xlu0 %2158
        %v2160 = vsel %vm1202, %v2157, 0
        %v2162 = vsel %vm1202, %v2159, 0
        %2164 = vmatpush.xpose.msra.mxu0 0.0
        %2165 = vmatpush.xpose.msra.mxu0 0.0
        %2166 = vmatpush.xpose.msra.mxu0 0.0
        %2167 = vmatpush.xpose.msra.mxu0 0.0
        %2168 = vmatpush.xpose.msra.mxu0 0.0
        %2169 = vmatpush.xpose.msra.mxu0 0.0
        %2170 = vmatpush.xpose.msra.mxu0 0.0
        %2171 = vmatpush.xpose.msra.mxu0 0.0
        %2172 = vmatpush.xpose.msra.mxu0 0.0
        %2173 = vmatpush.xpose.msra.mxu0 0.0
        %2174 = vmatpush.xpose.msra.mxu0 0.0
        %2175 = vmatpush.xpose.msra.mxu0 0.0
        %2176 = vmatpush.xpose.msra.mxu0 0.0
        %2177 = vmatpush.xpose.msra.mxu0 0.0
        %2178 = vmatpush.xpose.msra.mxu0 0.0
        %2179 = vmatpush.xpose.msra.mxu0 %v2162
        %2180 = vmatmul.f32.gmra.mxu0 %v2160
        %v2181 = vpop.f32.mrf.mxu0
        %v2182 = vadd.f32 0.0, %v2181
        %2183 = vdwg.mxu0
        %2184 = vrot.lane.b32.xlu0 %v762, 64
        %v2185 = vpop.permute.xlu0 %2184
        %2186 = vrot.lane.b32.xlu0 %v1023, 64
        %v2187 = vpop.permute.xlu0 %2186
        %v2188 = vsel %vm1202, %v2185, 0
        %v2190 = vsel %vm1202, %v2187, 0
        %2192 = vmatpush.xpose.msra.mxu0 0.0
        %2193 = vmatpush.xpose.msra.mxu0 0.0
        %2194 = vmatpush.xpose.msra.mxu0 0.0
        %2195 = vmatpush.xpose.msra.mxu0 0.0
        %2196 = vmatpush.xpose.msra.mxu0 0.0
        %2197 = vmatpush.xpose.msra.mxu0 0.0
        %2198 = vmatpush.xpose.msra.mxu0 0.0
        %2199 = vmatpush.xpose.msra.mxu0 0.0
        %2200 = vmatpush.xpose.msra.mxu0 0.0
        %2201 = vmatpush.xpose.msra.mxu0 0.0
        %2202 = vmatpush.xpose.msra.mxu0 0.0
        %2203 = vmatpush.xpose.msra.mxu0 0.0
        %2204 = vmatpush.xpose.msra.mxu0 0.0
        %2205 = vmatpush.xpose.msra.mxu0 0.0
        %2206 = vmatpush.xpose.msra.mxu0 0.0
        %2207 = vmatpush.xpose.msra.mxu0 %v2190
        %2208 = vmatmul.f32.gmra.mxu0 %v2188
        %v2209 = vpop.f32.mrf.mxu0
        %v2210 = vadd.f32 0.0, %v2209
        %2211 = vdwg.mxu0
        %2212 = vrot.lane.b32.xlu0 %v765, 64
        %v2213 = vpop.permute.xlu0 %2212
        %2214 = vrot.lane.b32.xlu0 %v1026, 64
        %v2215 = vpop.permute.xlu0 %2214
        %v2216 = vsel %vm1202, %v2213, 0
        %v2218 = vsel %vm1202, %v2215, 0
        %2220 = vmatpush.xpose.msra.mxu0 0.0
        %2221 = vmatpush.xpose.msra.mxu0 0.0
        %2222 = vmatpush.xpose.msra.mxu0 0.0
        %2223 = vmatpush.xpose.msra.mxu0 0.0
        %2224 = vmatpush.xpose.msra.mxu0 0.0
        %2225 = vmatpush.xpose.msra.mxu0 0.0
        %2226 = vmatpush.xpose.msra.mxu0 0.0
        %2227 = vmatpush.xpose.msra.mxu0 0.0
        %2228 = vmatpush.xpose.msra.mxu0 0.0
        %2229 = vmatpush.xpose.msra.mxu0 0.0
        %2230 = vmatpush.xpose.msra.mxu0 0.0
        %2231 = vmatpush.xpose.msra.mxu0 0.0
        %2232 = vmatpush.xpose.msra.mxu0 0.0
        %2233 = vmatpush.xpose.msra.mxu0 0.0
        %2234 = vmatpush.xpose.msra.mxu0 0.0
        %2235 = vmatpush.xpose.msra.mxu0 %v2218
        %2236 = vmatmul.f32.gmra.mxu0 %v2216
        %v2237 = vpop.f32.mrf.mxu0
        %v2238 = vadd.f32 0.0, %v2237
        %2239 = vdwg.mxu0
        %v2240 = vmul.f32 %v2154, 0.125
        %v2241 = vmul.f32 %v2182, 0.125
        %v2242 = vmul.f32 %v2210, 0.125
        %v2243 = vmul.f32 %v2238, 0.125
        %v2244 = vsel %vm1311, %v2240, -inf
        %2245 = vmax.xlane.f32.xlu0 %v2244
        %v2246 = vpop.xlane.xlu0 %2245
        %v2247 = vsel %vm1311, %v2241, -inf
        %2248 = vmax.xlane.f32.xlu0 %v2247
        %v2249 = vpop.xlane.xlu0 %2248
        %v2250 = vsel %vm1311, %v2242, -inf
        %2251 = vmax.xlane.f32.xlu0 %v2250
        %v2252 = vpop.xlane.xlu0 %2251
        %v2253 = vsel %vm1311, %v2243, -inf
        %2254 = vmax.xlane.f32.xlu0 %v2253
        %v2255 = vpop.xlane.xlu0 %2254
        %v2256 = vsub.f32 %v2240, %v2246
        %v2257 = vsub.f32 %v2241, %v2249
        %v2258 = vsub.f32 %v2242, %v2252
        %v2259 = vsub.f32 %v2243, %v2255
        %v2260 = vmul.f32 %v2256, 1.442695
        %v2261 = vpow.pop %v2260
        %v2262 = vmul.f32 %v2257, 1.442695
        %v2263 = vpow.pop %v2262
        %v2264 = vmul.f32 %v2258, 1.442695
        %v2265 = vpow.pop %v2264
        %v2266 = vmul.f32 %v2259, 1.442695
        %v2267 = vpow.pop %v2266
        %v2268 = vsel %vm1311, %v2261, 0.0
        %2269 = vadd.xlane.f32.xlu0 %v2268
        %v2270 = vpop.xlane.xlu0 %2269
        %v2271 = vsel %vm1311, %v2263, 0.0
        %2272 = vadd.xlane.f32.xlu0 %v2271
        %v2273 = vpop.xlane.xlu0 %2272
        %v2274 = vsel %vm1311, %v2265, 0.0
        %2275 = vadd.xlane.f32.xlu0 %v2274
        %v2276 = vpop.xlane.xlu0 %2275
        %v2277 = vsel %vm1311, %v2267, 0.0
        %2278 = vadd.xlane.f32.xlu0 %v2277
        %v2279 = vpop.xlane.xlu0 %2278
        %2280 = vrot.lane.b32.xlu0 %v1191, 80
        %v2281 = vpop.permute.xlu0 %2280
        %v2284 = vsel %vm1311, %v2261, 0
        %2286 = vmatpush.msra.mxu0 0.0
        %2287 = vmatpush.msra.mxu0 0.0
        %2288 = vmatpush.msra.mxu0 0.0
        %2289 = vmatpush.msra.mxu0 0.0
        %2290 = vmatpush.msra.mxu0 0.0
        %2291 = vmatpush.msra.mxu0 0.0
        %2292 = vmatpush.msra.mxu0 0.0
        %2293 = vmatpush.msra.mxu0 0.0
        %2294 = vmatpush.msra.mxu0 0.0
        %2295 = vmatpush.msra.mxu0 0.0
        %2296 = vmatpush.msra.mxu0 0.0
        %2297 = vmatpush.msra.mxu0 0.0
        %2298 = vmatpush.msra.mxu0 0.0
        %2299 = vmatpush.msra.mxu0 0.0
        %2300 = vmatpush.msra.mxu0 0.0
        %2301 = vmatpush.msra.mxu0 %v2281
        %2302 = vmatmul.f32.gmra.mxu0 %v2284
        %v2303 = vpop.f32.mrf.mxu0
        %v2304 = vadd.f32 0.0, %v2303
        %2305 = vdwg.mxu0
        %2306 = vrot.lane.b32.xlu0 %v1194, 80
        %v2307 = vpop.permute.xlu0 %2306
        %v2310 = vsel %vm1311, %v2263, 0
        %2312 = vmatpush.msra.mxu0 0.0
        %2313 = vmatpush.msra.mxu0 0.0
        %2314 = vmatpush.msra.mxu0 0.0
        %2315 = vmatpush.msra.mxu0 0.0
        %2316 = vmatpush.msra.mxu0 0.0
        %2317 = vmatpush.msra.mxu0 0.0
        %2318 = vmatpush.msra.mxu0 0.0
        %2319 = vmatpush.msra.mxu0 0.0
        %2320 = vmatpush.msra.mxu0 0.0
        %2321 = vmatpush.msra.mxu0 0.0
        %2322 = vmatpush.msra.mxu0 0.0
        %2323 = vmatpush.msra.mxu0 0.0
        %2324 = vmatpush.msra.mxu0 0.0
        %2325 = vmatpush.msra.mxu0 0.0
        %2326 = vmatpush.msra.mxu0 0.0
        %2327 = vmatpush.msra.mxu0 %v2307
        %2328 = vmatmul.f32.gmra.mxu0 %v2310
        %v2329 = vpop.f32.mrf.mxu0
        %v2330 = vadd.f32 0.0, %v2329
        %2331 = vdwg.mxu0
        %2332 = vrot.lane.b32.xlu0 %v1197, 80
        %v2333 = vpop.permute.xlu0 %2332
        %v2336 = vsel %vm1311, %v2265, 0
        %2338 = vmatpush.msra.mxu0 0.0
        %2339 = vmatpush.msra.mxu0 0.0
        %2340 = vmatpush.msra.mxu0 0.0
        %2341 = vmatpush.msra.mxu0 0.0
        %2342 = vmatpush.msra.mxu0 0.0
        %2343 = vmatpush.msra.mxu0 0.0
        %2344 = vmatpush.msra.mxu0 0.0
        %2345 = vmatpush.msra.mxu0 0.0
        %2346 = vmatpush.msra.mxu0 0.0
        %2347 = vmatpush.msra.mxu0 0.0
        %2348 = vmatpush.msra.mxu0 0.0
        %2349 = vmatpush.msra.mxu0 0.0
        %2350 = vmatpush.msra.mxu0 0.0
        %2351 = vmatpush.msra.mxu0 0.0
        %2352 = vmatpush.msra.mxu0 0.0
        %2353 = vmatpush.msra.mxu0 %v2333
        %2354 = vmatmul.f32.gmra.mxu0 %v2336
        %v2355 = vpop.f32.mrf.mxu0
        %v2356 = vadd.f32 0.0, %v2355
        %2357 = vdwg.mxu0
        %2358 = vrot.lane.b32.xlu0 %v1200, 80
        %v2359 = vpop.permute.xlu0 %2358
        %v2362 = vsel %vm1311, %v2267, 0
        %2364 = vmatpush.msra.mxu0 0.0
        %2365 = vmatpush.msra.mxu0 0.0
        %2366 = vmatpush.msra.mxu0 0.0
        %2367 = vmatpush.msra.mxu0 0.0
        %2368 = vmatpush.msra.mxu0 0.0
        %2369 = vmatpush.msra.mxu0 0.0
        %2370 = vmatpush.msra.mxu0 0.0
        %2371 = vmatpush.msra.mxu0 0.0
        %2372 = vmatpush.msra.mxu0 0.0
        %2373 = vmatpush.msra.mxu0 0.0
        %2374 = vmatpush.msra.mxu0 0.0
        %2375 = vmatpush.msra.mxu0 0.0
        %2376 = vmatpush.msra.mxu0 0.0
        %2377 = vmatpush.msra.mxu0 0.0
        %2378 = vmatpush.msra.mxu0 0.0
        %2379 = vmatpush.msra.mxu0 %v2359
        %2380 = vmatmul.f32.gmra.mxu0 %v2362
        %v2381 = vpop.f32.mrf.mxu0
        %v2382 = vadd.f32 0.0, %v2381
        %2383 = vdwg.mxu0
        %v2384 = vrcp.pop %v2270
        %v2385 = vmul.f32 %v2270, %v2384
        %v2386 = vsub.f32 1.0, %v2385
        %v2387 = vmul.f32 %v2384, %v2386
        %v2388 = vadd.f32 %v2384, %v2387
        %vm2389 = vweird.f32 %v2270
        %vm2390 = vweird.f32 %v2384
        %vm2391 = vmor %vm2389, %vm2390
        %v2392 = vsel %vm2391, %v2384, %v2388
        %v2393 = vand.u32 2147483647, %v2270
        %vm2394 = vcmp.eq.f32.partialorder %v2393, 8.507059e+37
        %v2395 = vand.u32 %v2270, 2147483648
        %v2396 = vor.u32 1.1754944e-38, %v2395
        %v2397 = vsel %vm2394, %v2396, %v2392
        %v2398 = vrcp.pop %v2273
        %v2399 = vmul.f32 %v2273, %v2398
        %v2400 = vsub.f32 1.0, %v2399
        %v2401 = vmul.f32 %v2398, %v2400
        %v2402 = vadd.f32 %v2398, %v2401
        %vm2403 = vweird.f32 %v2273
        %vm2404 = vweird.f32 %v2398
        %vm2405 = vmor %vm2403, %vm2404
        %v2406 = vsel %vm2405, %v2398, %v2402
        %v2407 = vand.u32 2147483647, %v2273
        %vm2408 = vcmp.eq.f32.partialorder %v2407, 8.507059e+37
        %v2409 = vand.u32 %v2273, 2147483648
        %v2410 = vor.u32 1.1754944e-38, %v2409
        %v2411 = vsel %vm2408, %v2410, %v2406
        %v2412 = vrcp.pop %v2276
        %v2413 = vmul.f32 %v2276, %v2412
        %v2414 = vsub.f32 1.0, %v2413
        %v2415 = vmul.f32 %v2412, %v2414
        %v2416 = vadd.f32 %v2412, %v2415
        %vm2417 = vweird.f32 %v2276
        %vm2418 = vweird.f32 %v2412
        %vm2419 = vmor %vm2417, %vm2418
        %v2420 = vsel %vm2419, %v2412, %v2416
        %v2421 = vand.u32 2147483647, %v2276
        %vm2422 = vcmp.eq.f32.partialorder %v2421, 8.507059e+37
        %v2423 = vand.u32 %v2276, 2147483648
        %v2424 = vor.u32 1.1754944e-38, %v2423
        %v2425 = vsel %vm2422, %v2424, %v2420
        %v2426 = vrcp.pop %v2279
        %v2427 = vmul.f32 %v2279, %v2426
        %v2428 = vsub.f32 1.0, %v2427
        %v2429 = vmul.f32 %v2426, %v2428
        %v2430 = vadd.f32 %v2426, %v2429
        %vm2431 = vweird.f32 %v2279
        %vm2432 = vweird.f32 %v2426
        %vm2433 = vmor %vm2431, %vm2432
        %v2434 = vsel %vm2433, %v2426, %v2430
        %v2435 = vand.u32 2147483647, %v2279
        %vm2436 = vcmp.eq.f32.partialorder %v2435, 8.507059e+37
        %v2437 = vand.u32 %v2279, 2147483648
        %v2438 = vor.u32 1.1754944e-38, %v2437
        %v2439 = vsel %vm2436, %v2438, %v2434
        %v2440 = vmul.f32 %v2304, %v2397
        %v2441 = vmul.f32 %v2330, %v2411
        %v2442 = vmul.f32 %v2356, %v2425
        %v2443 = vmul.f32 %v2382, %v2439
        %v2445 = vsel %vm1202, %v843, 0
        %v2448 = vsel %vm1202, %v1104, 0
        %2450 = vmatpush.xpose.msra.mxu0 0.0
        %2451 = vmatpush.xpose.msra.mxu0 0.0
        %2452 = vmatpush.xpose.msra.mxu0 0.0
        %2453 = vmatpush.xpose.msra.mxu0 0.0
        %2454 = vmatpush.xpose.msra.mxu0 0.0
        %2455 = vmatpush.xpose.msra.mxu0 0.0
        %2456 = vmatpush.xpose.msra.mxu0 0.0
        %2457 = vmatpush.xpose.msra.mxu0 0.0
        %2458 = vmatpush.xpose.msra.mxu0 0.0
        %2459 = vmatpush.xpose.msra.mxu0 0.0
        %2460 = vmatpush.xpose.msra.mxu0 0.0
        %2461 = vmatpush.xpose.msra.mxu0 0.0
        %2462 = vmatpush.xpose.msra.mxu0 0.0
        %2463 = vmatpush.xpose.msra.mxu0 0.0
        %2464 = vmatpush.xpose.msra.mxu0 0.0
        %2465 = vmatpush.xpose.msra.mxu0 %v2448
        %2466 = vmatmul.f32.gmra.mxu0 %v2445
        %v2467 = vpop.f32.mrf.mxu0
        %v2468 = vadd.f32 0.0, %v2467
        %2469 = vdwg.mxu0
        %v2471 = vsel %vm1202, %v846, 0
        %v2474 = vsel %vm1202, %v1107, 0
        %2476 = vmatpush.xpose.msra.mxu0 0.0
        %2477 = vmatpush.xpose.msra.mxu0 0.0
        %2478 = vmatpush.xpose.msra.mxu0 0.0
        %2479 = vmatpush.xpose.msra.mxu0 0.0
        %2480 = vmatpush.xpose.msra.mxu0 0.0
        %2481 = vmatpush.xpose.msra.mxu0 0.0
        %2482 = vmatpush.xpose.msra.mxu0 0.0
        %2483 = vmatpush.xpose.msra.mxu0 0.0
        %2484 = vmatpush.xpose.msra.mxu0 0.0
        %2485 = vmatpush.xpose.msra.mxu0 0.0
        %2486 = vmatpush.xpose.msra.mxu0 0.0
        %2487 = vmatpush.xpose.msra.mxu0 0.0
        %2488 = vmatpush.xpose.msra.mxu0 0.0
        %2489 = vmatpush.xpose.msra.mxu0 0.0
        %2490 = vmatpush.xpose.msra.mxu0 0.0
        %2491 = vmatpush.xpose.msra.mxu0 %v2474
        %2492 = vmatmul.f32.gmra.mxu0 %v2471
        %v2493 = vpop.f32.mrf.mxu0
        %v2494 = vadd.f32 0.0, %v2493
        %2495 = vdwg.mxu0
        %v2497 = vsel %vm1202, %v849, 0
        %v2500 = vsel %vm1202, %v1110, 0
        %2502 = vmatpush.xpose.msra.mxu0 0.0
        %2503 = vmatpush.xpose.msra.mxu0 0.0
        %2504 = vmatpush.xpose.msra.mxu0 0.0
        %2505 = vmatpush.xpose.msra.mxu0 0.0
        %2506 = vmatpush.xpose.msra.mxu0 0.0
        %2507 = vmatpush.xpose.msra.mxu0 0.0
        %2508 = vmatpush.xpose.msra.mxu0 0.0
        %2509 = vmatpush.xpose.msra.mxu0 0.0
        %2510 = vmatpush.xpose.msra.mxu0 0.0
        %2511 = vmatpush.xpose.msra.mxu0 0.0
        %2512 = vmatpush.xpose.msra.mxu0 0.0
        %2513 = vmatpush.xpose.msra.mxu0 0.0
        %2514 = vmatpush.xpose.msra.mxu0 0.0
        %2515 = vmatpush.xpose.msra.mxu0 0.0
        %2516 = vmatpush.xpose.msra.mxu0 0.0
        %2517 = vmatpush.xpose.msra.mxu0 %v2500
        %2518 = vmatmul.f32.gmra.mxu0 %v2497
        %v2519 = vpop.f32.mrf.mxu0
        %v2520 = vadd.f32 0.0, %v2519
        %2521 = vdwg.mxu0
        %v2523 = vsel %vm1202, %v852, 0
        %v2526 = vsel %vm1202, %v1113, 0
        %2528 = vmatpush.xpose.msra.mxu0 0.0
        %2529 = vmatpush.xpose.msra.mxu0 0.0
        %2530 = vmatpush.xpose.msra.mxu0 0.0
        %2531 = vmatpush.xpose.msra.mxu0 0.0
        %2532 = vmatpush.xpose.msra.mxu0 0.0
        %2533 = vmatpush.xpose.msra.mxu0 0.0
        %2534 = vmatpush.xpose.msra.mxu0 0.0
        %2535 = vmatpush.xpose.msra.mxu0 0.0
        %2536 = vmatpush.xpose.msra.mxu0 0.0
        %2537 = vmatpush.xpose.msra.mxu0 0.0
        %2538 = vmatpush.xpose.msra.mxu0 0.0
        %2539 = vmatpush.xpose.msra.mxu0 0.0
        %2540 = vmatpush.xpose.msra.mxu0 0.0
        %2541 = vmatpush.xpose.msra.mxu0 0.0
        %2542 = vmatpush.xpose.msra.mxu0 0.0
        %2543 = vmatpush.xpose.msra.mxu0 %v2526
        %2544 = vmatmul.f32.gmra.mxu0 %v2523
        %v2545 = vpop.f32.mrf.mxu0
        %v2546 = vadd.f32 0.0, %v2545
        %2547 = vdwg.mxu0
        %v2548 = vmul.f32 %v2468, 0.125
        %v2549 = vmul.f32 %v2494, 0.125
        %v2550 = vmul.f32 %v2520, 0.125
        %v2551 = vmul.f32 %v2546, 0.125
        %v2552 = vsel %vm1311, %v2548, -inf
        %2553 = vmax.xlane.f32.xlu0 %v2552
        %v2554 = vpop.xlane.xlu0 %2553
        %v2555 = vsel %vm1311, %v2549, -inf
        %2556 = vmax.xlane.f32.xlu0 %v2555
        %v2557 = vpop.xlane.xlu0 %2556
        %v2558 = vsel %vm1311, %v2550, -inf
        %2559 = vmax.xlane.f32.xlu0 %v2558
        %v2560 = vpop.xlane.xlu0 %2559
        %v2561 = vsel %vm1311, %v2551, -inf
        %2562 = vmax.xlane.f32.xlu0 %v2561
        %v2563 = vpop.xlane.xlu0 %2562
        %v2564 = vsub.f32 %v2548, %v2554
        %v2565 = vsub.f32 %v2549, %v2557
        %v2566 = vsub.f32 %v2550, %v2560
        %v2567 = vsub.f32 %v2551, %v2563
        %v2568 = vmul.f32 %v2564, 1.442695
        %v2569 = vpow.pop %v2568
        %v2570 = vmul.f32 %v2565, 1.442695
        %v2571 = vpow.pop %v2570
        %v2572 = vmul.f32 %v2566, 1.442695
        %v2573 = vpow.pop %v2572
        %v2574 = vmul.f32 %v2567, 1.442695
        %v2575 = vpow.pop %v2574
        %v2576 = vsel %vm1311, %v2569, 0.0
        %2577 = vadd.xlane.f32.xlu0 %v2576
        %v2578 = vpop.xlane.xlu0 %2577
        %v2579 = vsel %vm1311, %v2571, 0.0
        %2580 = vadd.xlane.f32.xlu0 %v2579
        %v2581 = vpop.xlane.xlu0 %2580
        %v2582 = vsel %vm1311, %v2573, 0.0
        %2583 = vadd.xlane.f32.xlu0 %v2582
        %v2584 = vpop.xlane.xlu0 %2583
        %v2585 = vsel %vm1311, %v2575, 0.0
        %2586 = vadd.xlane.f32.xlu0 %v2585
        %v2587 = vpop.xlane.xlu0 %2586
        %2588 = vrot.lane.b32.xlu0 %v1191, 64
        %v2589 = vpop.permute.xlu0 %2588
        %v2592 = vsel %vm1311, %v2569, 0
        %2594 = vmatpush.msra.mxu0 0.0
        %2595 = vmatpush.msra.mxu0 0.0
        %2596 = vmatpush.msra.mxu0 0.0
        %2597 = vmatpush.msra.mxu0 0.0
        %2598 = vmatpush.msra.mxu0 0.0
        %2599 = vmatpush.msra.mxu0 0.0
        %2600 = vmatpush.msra.mxu0 0.0
        %2601 = vmatpush.msra.mxu0 0.0
        %2602 = vmatpush.msra.mxu0 0.0
        %2603 = vmatpush.msra.mxu0 0.0
        %2604 = vmatpush.msra.mxu0 0.0
        %2605 = vmatpush.msra.mxu0 0.0
        %2606 = vmatpush.msra.mxu0 0.0
        %2607 = vmatpush.msra.mxu0 0.0
        %2608 = vmatpush.msra.mxu0 0.0
        %2609 = vmatpush.msra.mxu0 %v2589
        %2610 = vmatmul.f32.gmra.mxu0 %v2592
        %v2611 = vpop.f32.mrf.mxu0
        %v2612 = vadd.f32 0.0, %v2611
        %2613 = vdwg.mxu0
        %2614 = vrot.lane.b32.xlu0 %v1194, 64
        %v2615 = vpop.permute.xlu0 %2614
        %v2618 = vsel %vm1311, %v2571, 0
        %2620 = vmatpush.msra.mxu0 0.0
        %2621 = vmatpush.msra.mxu0 0.0
        %2622 = vmatpush.msra.mxu0 0.0
        %2623 = vmatpush.msra.mxu0 0.0
        %2624 = vmatpush.msra.mxu0 0.0
        %2625 = vmatpush.msra.mxu0 0.0
        %2626 = vmatpush.msra.mxu0 0.0
        %2627 = vmatpush.msra.mxu0 0.0
        %2628 = vmatpush.msra.mxu0 0.0
        %2629 = vmatpush.msra.mxu0 0.0
        %2630 = vmatpush.msra.mxu0 0.0
        %2631 = vmatpush.msra.mxu0 0.0
        %2632 = vmatpush.msra.mxu0 0.0
        %2633 = vmatpush.msra.mxu0 0.0
        %2634 = vmatpush.msra.mxu0 0.0
        %2635 = vmatpush.msra.mxu0 %v2615
        %2636 = vmatmul.f32.gmra.mxu0 %v2618
        %v2637 = vpop.f32.mrf.mxu0
        %v2638 = vadd.f32 0.0, %v2637
        %2639 = vdwg.mxu0
        %2640 = vrot.lane.b32.xlu0 %v1197, 64
        %v2641 = vpop.permute.xlu0 %2640
        %v2644 = vsel %vm1311, %v2573, 0
        %2646 = vmatpush.msra.mxu0 0.0
        %2647 = vmatpush.msra.mxu0 0.0
        %2648 = vmatpush.msra.mxu0 0.0
        %2649 = vmatpush.msra.mxu0 0.0
        %2650 = vmatpush.msra.mxu0 0.0
        %2651 = vmatpush.msra.mxu0 0.0
        %2652 = vmatpush.msra.mxu0 0.0
        %2653 = vmatpush.msra.mxu0 0.0
        %2654 = vmatpush.msra.mxu0 0.0
        %2655 = vmatpush.msra.mxu0 0.0
        %2656 = vmatpush.msra.mxu0 0.0
        %2657 = vmatpush.msra.mxu0 0.0
        %2658 = vmatpush.msra.mxu0 0.0
        %2659 = vmatpush.msra.mxu0 0.0
        %2660 = vmatpush.msra.mxu0 0.0
        %2661 = vmatpush.msra.mxu0 %v2641
        %2662 = vmatmul.f32.gmra.mxu0 %v2644
        %v2663 = vpop.f32.mrf.mxu0
        %v2664 = vadd.f32 0.0, %v2663
        %2665 = vdwg.mxu0
        %2666 = vrot.lane.b32.xlu0 %v1200, 64
        %v2667 = vpop.permute.xlu0 %2666
        %v2670 = vsel %vm1311, %v2575, 0
        %2672 = vmatpush.msra.mxu0 0.0
        %2673 = vmatpush.msra.mxu0 0.0
        %2674 = vmatpush.msra.mxu0 0.0
        %2675 = vmatpush.msra.mxu0 0.0
        %2676 = vmatpush.msra.mxu0 0.0
        %2677 = vmatpush.msra.mxu0 0.0
        %2678 = vmatpush.msra.mxu0 0.0
        %2679 = vmatpush.msra.mxu0 0.0
        %2680 = vmatpush.msra.mxu0 0.0
        %2681 = vmatpush.msra.mxu0 0.0
        %2682 = vmatpush.msra.mxu0 0.0
        %2683 = vmatpush.msra.mxu0 0.0
        %2684 = vmatpush.msra.mxu0 0.0
        %2685 = vmatpush.msra.mxu0 0.0
        %2686 = vmatpush.msra.mxu0 0.0
        %2687 = vmatpush.msra.mxu0 %v2667
        %2688 = vmatmul.f32.gmra.mxu0 %v2670
        %v2689 = vpop.f32.mrf.mxu0
        %v2690 = vadd.f32 0.0, %v2689
        %2691 = vdwg.mxu0
        %v2692 = vrcp.pop %v2578
        %v2693 = vmul.f32 %v2578, %v2692
        %v2694 = vsub.f32 1.0, %v2693
        %v2695 = vmul.f32 %v2692, %v2694
        %v2696 = vadd.f32 %v2692, %v2695
        %vm2697 = vweird.f32 %v2578
        %vm2698 = vweird.f32 %v2692
        %vm2699 = vmor %vm2697, %vm2698
        %v2700 = vsel %vm2699, %v2692, %v2696
        %v2701 = vand.u32 2147483647, %v2578
        %vm2702 = vcmp.eq.f32.partialorder %v2701, 8.507059e+37
        %v2703 = vand.u32 %v2578, 2147483648
        %v2704 = vor.u32 1.1754944e-38, %v2703
        %v2705 = vsel %vm2702, %v2704, %v2700
        %v2706 = vrcp.pop %v2581
        %v2707 = vmul.f32 %v2581, %v2706
        %v2708 = vsub.f32 1.0, %v2707
        %v2709 = vmul.f32 %v2706, %v2708
        %v2710 = vadd.f32 %v2706, %v2709
        %vm2711 = vweird.f32 %v2581
        %vm2712 = vweird.f32 %v2706
        %vm2713 = vmor %vm2711, %vm2712
        %v2714 = vsel %vm2713, %v2706, %v2710
        %v2715 = vand.u32 2147483647, %v2581
        %vm2716 = vcmp.eq.f32.partialorder %v2715, 8.507059e+37
        %v2717 = vand.u32 %v2581, 2147483648
        %v2718 = vor.u32 1.1754944e-38, %v2717
        %v2719 = vsel %vm2716, %v2718, %v2714
        %v2720 = vrcp.pop %v2584
        %v2721 = vmul.f32 %v2584, %v2720
        %v2722 = vsub.f32 1.0, %v2721
        %v2723 = vmul.f32 %v2720, %v2722
        %v2724 = vadd.f32 %v2720, %v2723
        %vm2725 = vweird.f32 %v2584
        %vm2726 = vweird.f32 %v2720
        %vm2727 = vmor %vm2725, %vm2726
        %v2728 = vsel %vm2727, %v2720, %v2724
        %v2729 = vand.u32 2147483647, %v2584
        %vm2730 = vcmp.eq.f32.partialorder %v2729, 8.507059e+37
        %v2731 = vand.u32 %v2584, 2147483648
        %v2732 = vor.u32 1.1754944e-38, %v2731
        %v2733 = vsel %vm2730, %v2732, %v2728
        %v2734 = vrcp.pop %v2587
        %v2735 = vmul.f32 %v2587, %v2734
        %v2736 = vsub.f32 1.0, %v2735
        %v2737 = vmul.f32 %v2734, %v2736
        %v2738 = vadd.f32 %v2734, %v2737
        %vm2739 = vweird.f32 %v2587
        %vm2740 = vweird.f32 %v2734
        %vm2741 = vmor %vm2739, %vm2740
        %v2742 = vsel %vm2741, %v2734, %v2738
        %v2743 = vand.u32 2147483647, %v2587
        %vm2744 = vcmp.eq.f32.partialorder %v2743, 8.507059e+37
        %v2745 = vand.u32 %v2587, 2147483648
        %v2746 = vor.u32 1.1754944e-38, %v2745
        %v2747 = vsel %vm2744, %v2746, %v2742
        %v2748 = vmul.f32 %v2612, %v2705
        %v2749 = vmul.f32 %v2638, %v2719
        %v2750 = vmul.f32 %v2664, %v2733
        %v2751 = vmul.f32 %v2690, %v2747
        %2752 = vrot.lane.b32.xlu0 %v843, 64
        %v2753 = vpop.permute.xlu0 %2752
        %2754 = vrot.lane.b32.xlu0 %v1104, 64
        %v2755 = vpop.permute.xlu0 %2754
        %v2756 = vsel %vm1202, %v2753, 0
        %v2758 = vsel %vm1202, %v2755, 0
        %2760 = vmatpush.xpose.msra.mxu0 0.0
        %2761 = vmatpush.xpose.msra.mxu0 0.0
        %2762 = vmatpush.xpose.msra.mxu0 0.0
        %2763 = vmatpush.xpose.msra.mxu0 0.0
        %2764 = vmatpush.xpose.msra.mxu0 0.0
        %2765 = vmatpush.xpose.msra.mxu0 0.0
        %2766 = vmatpush.xpose.msra.mxu0 0.0
        %2767 = vmatpush.xpose.msra.mxu0 0.0
        %2768 = vmatpush.xpose.msra.mxu0 0.0
        %2769 = vmatpush.xpose.msra.mxu0 0.0
        %2770 = vmatpush.xpose.msra.mxu0 0.0
        %2771 = vmatpush.xpose.msra.mxu0 0.0
        %2772 = vmatpush.xpose.msra.mxu0 0.0
        %2773 = vmatpush.xpose.msra.mxu0 0.0
        %2774 = vmatpush.xpose.msra.mxu0 0.0
        %2775 = vmatpush.xpose.msra.mxu0 %v2758
        %2776 = vmatmul.f32.gmra.mxu0 %v2756
        %v2777 = vpop.f32.mrf.mxu0
        %v2778 = vadd.f32 0.0, %v2777
        %2779 = vdwg.mxu0
        %2780 = vrot.lane.b32.xlu0 %v846, 64
        %v2781 = vpop.permute.xlu0 %2780
        %2782 = vrot.lane.b32.xlu0 %v1107, 64
        %v2783 = vpop.permute.xlu0 %2782
        %v2784 = vsel %vm1202, %v2781, 0
        %v2786 = vsel %vm1202, %v2783, 0
        %2788 = vmatpush.xpose.msra.mxu0 0.0
        %2789 = vmatpush.xpose.msra.mxu0 0.0
        %2790 = vmatpush.xpose.msra.mxu0 0.0
        %2791 = vmatpush.xpose.msra.mxu0 0.0
        %2792 = vmatpush.xpose.msra.mxu0 0.0
        %2793 = vmatpush.xpose.msra.mxu0 0.0
        %2794 = vmatpush.xpose.msra.mxu0 0.0
        %2795 = vmatpush.xpose.msra.mxu0 0.0
        %2796 = vmatpush.xpose.msra.mxu0 0.0
        %2797 = vmatpush.xpose.msra.mxu0 0.0
        %2798 = vmatpush.xpose.msra.mxu0 0.0
        %2799 = vmatpush.xpose.msra.mxu0 0.0
        %2800 = vmatpush.xpose.msra.mxu0 0.0
        %2801 = vmatpush.xpose.msra.mxu0 0.0
        %2802 = vmatpush.xpose.msra.mxu0 0.0
        %2803 = vmatpush.xpose.msra.mxu0 %v2786
        %2804 = vmatmul.f32.gmra.mxu0 %v2784
        %v2805 = vpop.f32.mrf.mxu0
        %v2806 = vadd.f32 0.0, %v2805
        %2807 = vdwg.mxu0
        %2808 = vrot.lane.b32.xlu0 %v849, 64
        %v2809 = vpop.permute.xlu0 %2808
        %2810 = vrot.lane.b32.xlu0 %v1110, 64
        %v2811 = vpop.permute.xlu0 %2810
        %v2812 = vsel %vm1202, %v2809, 0
        %v2814 = vsel %vm1202, %v2811, 0
        %2816 = vmatpush.xpose.msra.mxu0 0.0
        %2817 = vmatpush.xpose.msra.mxu0 0.0
        %2818 = vmatpush.xpose.msra.mxu0 0.0
        %2819 = vmatpush.xpose.msra.mxu0 0.0
        %2820 = vmatpush.xpose.msra.mxu0 0.0
        %2821 = vmatpush.xpose.msra.mxu0 0.0
        %2822 = vmatpush.xpose.msra.mxu0 0.0
        %2823 = vmatpush.xpose.msra.mxu0 0.0
        %2824 = vmatpush.xpose.msra.mxu0 0.0
        %2825 = vmatpush.xpose.msra.mxu0 0.0
        %2826 = vmatpush.xpose.msra.mxu0 0.0
        %2827 = vmatpush.xpose.msra.mxu0 0.0
        %2828 = vmatpush.xpose.msra.mxu0 0.0
        %2829 = vmatpush.xpose.msra.mxu0 0.0
        %2830 = vmatpush.xpose.msra.mxu0 0.0
        %2831 = vmatpush.xpose.msra.mxu0 %v2814
        %2832 = vmatmul.f32.gmra.mxu0 %v2812
        %v2833 = vpop.f32.mrf.mxu0
        %v2834 = vadd.f32 0.0, %v2833
        %2835 = vdwg.mxu0
        %2836 = vrot.lane.b32.xlu0 %v852, 64
        %v2837 = vpop.permute.xlu0 %2836
        %2838 = vrot.lane.b32.xlu0 %v1113, 64
        %v2839 = vpop.permute.xlu0 %2838
        %v2840 = vsel %vm1202, %v2837, 0
        %v2842 = vsel %vm1202, %v2839, 0
        %2844 = vmatpush.xpose.msra.mxu0 0.0
        %2845 = vmatpush.xpose.msra.mxu0 0.0
        %2846 = vmatpush.xpose.msra.mxu0 0.0
        %2847 = vmatpush.xpose.msra.mxu0 0.0
        %2848 = vmatpush.xpose.msra.mxu0 0.0
        %2849 = vmatpush.xpose.msra.mxu0 0.0
        %2850 = vmatpush.xpose.msra.mxu0 0.0
        %2851 = vmatpush.xpose.msra.mxu0 0.0
        %2852 = vmatpush.xpose.msra.mxu0 0.0
        %2853 = vmatpush.xpose.msra.mxu0 0.0
        %2854 = vmatpush.xpose.msra.mxu0 0.0
        %2855 = vmatpush.xpose.msra.mxu0 0.0
        %2856 = vmatpush.xpose.msra.mxu0 0.0
        %2857 = vmatpush.xpose.msra.mxu0 0.0
        %2858 = vmatpush.xpose.msra.mxu0 0.0
        %2859 = vmatpush.xpose.msra.mxu0 %v2842
        %2860 = vmatmul.f32.gmra.mxu0 %v2840
        %v2861 = vpop.f32.mrf.mxu0
        %v2862 = vadd.f32 0.0, %v2861
        %2863 = vdwg.mxu0
        %v2864 = vmul.f32 %v2778, 0.125
        %v2865 = vmul.f32 %v2806, 0.125
        %v2866 = vmul.f32 %v2834, 0.125
        %v2867 = vmul.f32 %v2862, 0.125
        %v2868 = vsel %vm1311, %v2864, -inf
        %2869 = vmax.xlane.f32.xlu0 %v2868
        %v2870 = vpop.xlane.xlu0 %2869
        %v2871 = vsel %vm1311, %v2865, -inf
        %2872 = vmax.xlane.f32.xlu0 %v2871
        %v2873 = vpop.xlane.xlu0 %2872
        %v2874 = vsel %vm1311, %v2866, -inf
        %2875 = vmax.xlane.f32.xlu0 %v2874
        %v2876 = vpop.xlane.xlu0 %2875
        %v2877 = vsel %vm1311, %v2867, -inf
        %2878 = vmax.xlane.f32.xlu0 %v2877
        %v2879 = vpop.xlane.xlu0 %2878
        %v2880 = vsub.f32 %v2864, %v2870
        %v2881 = vsub.f32 %v2865, %v2873
        %v2882 = vsub.f32 %v2866, %v2876
        %v2883 = vsub.f32 %v2867, %v2879
        %v2884 = vmul.f32 %v2880, 1.442695
        %v2885 = vpow.pop %v2884
        %v2886 = vmul.f32 %v2881, 1.442695
        %v2887 = vpow.pop %v2886
        %v2888 = vmul.f32 %v2882, 1.442695
        %v2889 = vpow.pop %v2888
        %v2890 = vmul.f32 %v2883, 1.442695
        %v2891 = vpow.pop %v2890
        %v2892 = vsel %vm1311, %v2885, 0.0
        %2893 = vadd.xlane.f32.xlu0 %v2892
        %v2894 = vpop.xlane.xlu0 %2893
        %v2895 = vsel %vm1311, %v2887, 0.0
        %2896 = vadd.xlane.f32.xlu0 %v2895
        %v2897 = vpop.xlane.xlu0 %2896
        %v2898 = vsel %vm1311, %v2889, 0.0
        %2899 = vadd.xlane.f32.xlu0 %v2898
        %v2900 = vpop.xlane.xlu0 %2899
        %v2901 = vsel %vm1311, %v2891, 0.0
        %2902 = vadd.xlane.f32.xlu0 %v2901
        %v2903 = vpop.xlane.xlu0 %2902
        %2904 = vrot.lane.b32.xlu0 %v1191, 48
        %v2905 = vpop.permute.xlu0 %2904
        %v2908 = vsel %vm1311, %v2885, 0
        %2910 = vmatpush.msra.mxu0 0.0
        %2911 = vmatpush.msra.mxu0 0.0
        %2912 = vmatpush.msra.mxu0 0.0
        %2913 = vmatpush.msra.mxu0 0.0
        %2914 = vmatpush.msra.mxu0 0.0
        %2915 = vmatpush.msra.mxu0 0.0
        %2916 = vmatpush.msra.mxu0 0.0
        %2917 = vmatpush.msra.mxu0 0.0
        %2918 = vmatpush.msra.mxu0 0.0
        %2919 = vmatpush.msra.mxu0 0.0
        %2920 = vmatpush.msra.mxu0 0.0
        %2921 = vmatpush.msra.mxu0 0.0
        %2922 = vmatpush.msra.mxu0 0.0
        %2923 = vmatpush.msra.mxu0 0.0
        %2924 = vmatpush.msra.mxu0 0.0
        %2925 = vmatpush.msra.mxu0 %v2905
        %2926 = vmatmul.f32.gmra.mxu0 %v2908
        %v2927 = vpop.f32.mrf.mxu0
        %v2928 = vadd.f32 0.0, %v2927
        %2929 = vdwg.mxu0
        %2930 = vrot.lane.b32.xlu0 %v1194, 48
        %v2931 = vpop.permute.xlu0 %2930
        %v2934 = vsel %vm1311, %v2887, 0
        %2936 = vmatpush.msra.mxu0 0.0
        %2937 = vmatpush.msra.mxu0 0.0
        %2938 = vmatpush.msra.mxu0 0.0
        %2939 = vmatpush.msra.mxu0 0.0
        %2940 = vmatpush.msra.mxu0 0.0
        %2941 = vmatpush.msra.mxu0 0.0
        %2942 = vmatpush.msra.mxu0 0.0
        %2943 = vmatpush.msra.mxu0 0.0
        %2944 = vmatpush.msra.mxu0 0.0
        %2945 = vmatpush.msra.mxu0 0.0
        %2946 = vmatpush.msra.mxu0 0.0
        %2947 = vmatpush.msra.mxu0 0.0
        %2948 = vmatpush.msra.mxu0 0.0
        %2949 = vmatpush.msra.mxu0 0.0
        %2950 = vmatpush.msra.mxu0 0.0
        %2951 = vmatpush.msra.mxu0 %v2931
        %2952 = vmatmul.f32.gmra.mxu0 %v2934
        %v2953 = vpop.f32.mrf.mxu0
        %v2954 = vadd.f32 0.0, %v2953
        %2955 = vdwg.mxu0
        %2956 = vrot.lane.b32.xlu0 %v1197, 48
        %v2957 = vpop.permute.xlu0 %2956
        %v2960 = vsel %vm1311, %v2889, 0
        %2962 = vmatpush.msra.mxu0 0.0
        %2963 = vmatpush.msra.mxu0 0.0
        %2964 = vmatpush.msra.mxu0 0.0
        %2965 = vmatpush.msra.mxu0 0.0
        %2966 = vmatpush.msra.mxu0 0.0
        %2967 = vmatpush.msra.mxu0 0.0
        %2968 = vmatpush.msra.mxu0 0.0
        %2969 = vmatpush.msra.mxu0 0.0
        %2970 = vmatpush.msra.mxu0 0.0
        %2971 = vmatpush.msra.mxu0 0.0
        %2972 = vmatpush.msra.mxu0 0.0
        %2973 = vmatpush.msra.mxu0 0.0
        %2974 = vmatpush.msra.mxu0 0.0
        %2975 = vmatpush.msra.mxu0 0.0
        %2976 = vmatpush.msra.mxu0 0.0
        %2977 = vmatpush.msra.mxu0 %v2957
        %2978 = vmatmul.f32.gmra.mxu0 %v2960
        %v2979 = vpop.f32.mrf.mxu0
        %v2980 = vadd.f32 0.0, %v2979
        %2981 = vdwg.mxu0
        %2982 = vrot.lane.b32.xlu0 %v1200, 48
        %v2983 = vpop.permute.xlu0 %2982
        %v2986 = vsel %vm1311, %v2891, 0
        %2988 = vmatpush.msra.mxu0 0.0
        %2989 = vmatpush.msra.mxu0 0.0
        %2990 = vmatpush.msra.mxu0 0.0
        %2991 = vmatpush.msra.mxu0 0.0
        %2992 = vmatpush.msra.mxu0 0.0
        %2993 = vmatpush.msra.mxu0 0.0
        %2994 = vmatpush.msra.mxu0 0.0
        %2995 = vmatpush.msra.mxu0 0.0
        %2996 = vmatpush.msra.mxu0 0.0
        %2997 = vmatpush.msra.mxu0 0.0
        %2998 = vmatpush.msra.mxu0 0.0
        %2999 = vmatpush.msra.mxu0 0.0
        %3000 = vmatpush.msra.mxu0 0.0
        %3001 = vmatpush.msra.mxu0 0.0
        %3002 = vmatpush.msra.mxu0 0.0
        %3003 = vmatpush.msra.mxu0 %v2983
        %3004 = vmatmul.f32.gmra.mxu0 %v2986
        %v3005 = vpop.f32.mrf.mxu0
        %v3006 = vadd.f32 0.0, %v3005
        %3007 = vdwg.mxu0
        %v3008 = vrcp.pop %v2894
        %v3009 = vmul.f32 %v2894, %v3008
        %v3010 = vsub.f32 1.0, %v3009
        %v3011 = vmul.f32 %v3008, %v3010
        %v3012 = vadd.f32 %v3008, %v3011
        %vm3013 = vweird.f32 %v2894
        %vm3014 = vweird.f32 %v3008
        %vm3015 = vmor %vm3013, %vm3014
        %v3016 = vsel %vm3015, %v3008, %v3012
        %v3017 = vand.u32 2147483647, %v2894
        %vm3018 = vcmp.eq.f32.partialorder %v3017, 8.507059e+37
        %v3019 = vand.u32 %v2894, 2147483648
        %v3020 = vor.u32 1.1754944e-38, %v3019
        %v3021 = vsel %vm3018, %v3020, %v3016
        %v3022 = vrcp.pop %v2897
        %v3023 = vmul.f32 %v2897, %v3022
        %v3024 = vsub.f32 1.0, %v3023
        %v3025 = vmul.f32 %v3022, %v3024
        %v3026 = vadd.f32 %v3022, %v3025
        %vm3027 = vweird.f32 %v2897
        %vm3028 = vweird.f32 %v3022
        %vm3029 = vmor %vm3027, %vm3028
        %v3030 = vsel %vm3029, %v3022, %v3026
        %v3031 = vand.u32 2147483647, %v2897
        %vm3032 = vcmp.eq.f32.partialorder %v3031, 8.507059e+37
        %v3033 = vand.u32 %v2897, 2147483648
        %v3034 = vor.u32 1.1754944e-38, %v3033
        %v3035 = vsel %vm3032, %v3034, %v3030
        %v3036 = vrcp.pop %v2900
        %v3037 = vmul.f32 %v2900, %v3036
        %v3038 = vsub.f32 1.0, %v3037
        %v3039 = vmul.f32 %v3036, %v3038
        %v3040 = vadd.f32 %v3036, %v3039
        %vm3041 = vweird.f32 %v2900
        %vm3042 = vweird.f32 %v3036
        %vm3043 = vmor %vm3041, %vm3042
        %v3044 = vsel %vm3043, %v3036, %v3040
        %v3045 = vand.u32 2147483647, %v2900
        %vm3046 = vcmp.eq.f32.partialorder %v3045, 8.507059e+37
        %v3047 = vand.u32 %v2900, 2147483648
        %v3048 = vor.u32 1.1754944e-38, %v3047
        %v3049 = vsel %vm3046, %v3048, %v3044
        %v3050 = vrcp.pop %v2903
        %v3051 = vmul.f32 %v2903, %v3050
        %v3052 = vsub.f32 1.0, %v3051
        %v3053 = vmul.f32 %v3050, %v3052
        %v3054 = vadd.f32 %v3050, %v3053
        %vm3055 = vweird.f32 %v2903
        %vm3056 = vweird.f32 %v3050
        %vm3057 = vmor %vm3055, %vm3056
        %v3058 = vsel %vm3057, %v3050, %v3054
        %v3059 = vand.u32 2147483647, %v2903
        %vm3060 = vcmp.eq.f32.partialorder %v3059, 8.507059e+37
        %v3061 = vand.u32 %v2903, 2147483648
        %v3062 = vor.u32 1.1754944e-38, %v3061
        %v3063 = vsel %vm3060, %v3062, %v3058
        %v3064 = vmul.f32 %v2928, %v3021
        %v3065 = vmul.f32 %v2954, %v3035
        %v3066 = vmul.f32 %v2980, %v3049
        %v3067 = vmul.f32 %v3006, %v3063
        %3072 = vrot.lane.b32.xlu0 %v1816, 16
        %v3073 = vpop.permute.xlu0 %3072
        %3074 = vrot.lane.b32.xlu0 %v1817, 16
        %v3075 = vpop.permute.xlu0 %3074
        %3076 = vrot.lane.b32.xlu0 %v1818, 16
        %v3077 = vpop.permute.xlu0 %3076
        %3078 = vrot.lane.b32.xlu0 %v1819, 16
        %v3079 = vpop.permute.xlu0 %3078
        %3088 = vrot.lane.b32.xlu0 %v2124, 32
        %v3089 = vpop.permute.xlu0 %3088
        %3090 = vrot.lane.b32.xlu0 %v2125, 32
        %v3091 = vpop.permute.xlu0 %3090
        %3092 = vrot.lane.b32.xlu0 %v2126, 32
        %v3093 = vpop.permute.xlu0 %3092
        %3094 = vrot.lane.b32.xlu0 %v2127, 32
        %v3095 = vpop.permute.xlu0 %3094
        %3104 = vrot.lane.b32.xlu0 %v2440, 48
        %v3105 = vpop.permute.xlu0 %3104
        %3106 = vrot.lane.b32.xlu0 %v2441, 48
        %v3107 = vpop.permute.xlu0 %3106
        %3108 = vrot.lane.b32.xlu0 %v2442, 48
        %v3109 = vpop.permute.xlu0 %3108
        %3110 = vrot.lane.b32.xlu0 %v2443, 48
        %v3111 = vpop.permute.xlu0 %3110
        %3120 = vrot.lane.b32.xlu0 %v2748, 64
        %v3121 = vpop.permute.xlu0 %3120
        %3122 = vrot.lane.b32.xlu0 %v2749, 64
        %v3123 = vpop.permute.xlu0 %3122
        %3124 = vrot.lane.b32.xlu0 %v2750, 64
        %v3125 = vpop.permute.xlu0 %3124
        %3126 = vrot.lane.b32.xlu0 %v2751, 64
        %v3127 = vpop.permute.xlu0 %3126
        %3136 = vrot.lane.b32.xlu0 %v3064, 80
        %v3137 = vpop.permute.xlu0 %3136
        %3138 = vrot.lane.b32.xlu0 %v3065, 80
        %v3139 = vpop.permute.xlu0 %3138
        %3140 = vrot.lane.b32.xlu0 %v3066, 80
        %v3141 = vpop.permute.xlu0 %3140
        %3142 = vrot.lane.b32.xlu0 %v3067, 80
        %v3143 = vpop.permute.xlu0 %3142
        %vm3148 = vcmask 130048
        %v3149 = vsel %vm3148, %v1496, %v3073
        %v3150 = vsel %vm3148, %v1497, %v3075
        %v3151 = vsel %vm3148, %v1498, %v3077
        %v3152 = vsel %vm3148, %v1499, %v3079
        %vm3153 = vcmask 261120
        %v3154 = vsel %vm3153, %v3149, %v3089
        %v3155 = vsel %vm3153, %v3150, %v3091
        %v3156 = vsel %vm3153, %v3151, %v3093
        %v3157 = vsel %vm3153, %v3152, %v3095
        %vm3158 = vcmask 392192
        %v3159 = vsel %vm3158, %v3154, %v3105
        %v3160 = vsel %vm3158, %v3155, %v3107
        %v3161 = vsel %vm3158, %v3156, %v3109
        %v3162 = vsel %vm3158, %v3157, %v3111
        %v3163 = vsel %vm1202, %v3159, %v3121
        %v3164 = vsel %vm1202, %v3160, %v3123
        %v3165 = vsel %vm1202, %v3161, %v3125
        %v3166 = vsel %vm1202, %v3162, %v3127
        %vm3167 = vcmask 654336
        %v3168 = vsel %vm3167, %v3163, %v3137
        %v3169 = vsel %vm3167, %v3164, %v3139
        %v3170 = vsel %vm3167, %v3165, %v3141
        %v3171 = vsel %vm3167, %v3166, %v3143
        %v3172 = vld [vmem:[%s3] sm:$0xff]
        %v3173 = vld [vmem:[%s3 + $0x8] sm:$0xff]
        %v3174 = vld [vmem:[%s3 + $0x10] sm:$0xff]
        %v3175 = vld [vmem:[%s3 + $0x18] sm:$0xff]
        %v3176 = vld [vmem:[%s3 + $0x20] sm:$0xff]
        %v3177 = vld [vmem:[%s3 + $0x28] sm:$0xff]
        %v3178 = vld [vmem:[%s3 + $0x30] sm:$0xff]
        %v3179 = vld [vmem:[%s3 + $0x38] sm:$0xff]
        %v3180 = vld [vmem:[%s3 + $0x40] sm:$0xff]
        %v3181 = vld [vmem:[%s3 + $0x48] sm:$0xff]
        %v3182 = vld [vmem:[%s3 + $0x50] sm:$0xff]
        %v3183 = vld [vmem:[%s3 + $0x58] sm:$0xff]
        %v3184 = vld [vmem:[%s3 + $0x60] sm:$0xff]
        %v3185 = vld [vmem:[%s3 + $0x68] sm:$0xff]
        %v3186 = vld [vmem:[%s3 + $0x70] sm:$0xff]
        %v3187 = vld [vmem:[%s3 + $0x78] sm:$0xff]
        %v3188 = vld [vmem:[%s3 + $0x80] sm:$0xff]
        %v3189 = vld [vmem:[%s3 + $0x88] sm:$0xff]
        %v3190 = vld [vmem:[%s3 + $0x90] sm:$0xff]
        %v3191 = vld [vmem:[%s3 + $0x98] sm:$0xff]
        %v3192 = vld [vmem:[%s3 + $0xa0] sm:$0xff]
        %v3193 = vld [vmem:[%s3 + $0xa8] sm:$0xff]
        %v3194 = vld [vmem:[%s3 + $0xb0] sm:$0xff]
        %v3195 = vld [vmem:[%s3 + $0xb8] sm:$0xff]
        %v3196 = vld [vmem:[%s3 + $0xc0] sm:$0xff]
        %v3197 = vld [vmem:[%s3 + $0xc8] sm:$0xff]
        %v3198 = vld [vmem:[%s3 + $0xd0] sm:$0xff]
        %v3199 = vld [vmem:[%s3 + $0xd8] sm:$0xff]
        %v3200 = vld [vmem:[%s3 + $0xe0] sm:$0xff]
        %v3201 = vld [vmem:[%s3 + $0xe8] sm:$0xff]
        %v3202 = vld [vmem:[%s3 + $0xf0] sm:$0xff]
        %v3203 = vld [vmem:[%s3 + $0xf8] sm:$0xff]
        %v3204 = vld [vmem:[%s3 + $0x100] sm:$0xff]
        %v3205 = vld [vmem:[%s3 + $0x108] sm:$0xff]
        %v3206 = vld [vmem:[%s3 + $0x110] sm:$0xff]
        %v3207 = vld [vmem:[%s3 + $0x118] sm:$0xff]
        %v3208 = vld [vmem:[%s4] sm:$0x7]
        %v3210 = vperm.slane %v3208, 0
        %v3211 = vperm.slane %v3208, 1
        %v3212 = vperm.slane %v3208, 2
        %vm3216 = vcmask 785408
        %v3218 = vsel %vm3216, %v3168, 0
        %v3221 = vsel %vm3216, %v3169, 0
        %v3224 = vsel %vm3216, %v3170, 0
        %v3227 = vsel %vm3216, %v3171, 0
        %3229 = vmatpush.msra.mxu0 0.0
        %3230 = vmatpush.msra.mxu0 0.0
        %3231 = vmatpush.msra.mxu0 0.0
        %3232 = vmatpush.msra.mxu0 0.0
        %3233 = vmatpush.msra.mxu0 %v3205
        %3234 = vmatpush.msra.mxu0 %v3202
        %3235 = vmatpush.msra.mxu0 %v3199
        %3236 = vmatpush.msra.mxu0 %v3196
        %3237 = vmatpush.msra.mxu0 %v3193
        %3238 = vmatpush.msra.mxu0 %v3190
        %3239 = vmatpush.msra.mxu0 %v3187
        %3240 = vmatpush.msra.mxu0 %v3184
        %3241 = vmatpush.msra.mxu0 %v3181
        %3242 = vmatpush.msra.mxu0 %v3178
        %3243 = vmatpush.msra.mxu0 %v3175
        %3244 = vmatpush.msra.mxu0 %v3172
        %3245 = vmatmul.f32.gmra.mxu0 %v3218
        %v3246 = vpop.f32.mrf.mxu0
        %v3247 = vadd.f32 %v3210, %v3246
        %3248 = vmatmul.f32.gmra.mxu0 %v3221
        %v3249 = vpop.f32.mrf.mxu0
        %v3250 = vadd.f32 %v3210, %v3249
        %3251 = vmatmul.f32.gmra.mxu0 %v3224
        %v3252 = vpop.f32.mrf.mxu0
        %v3253 = vadd.f32 %v3210, %v3252
        %3254 = vmatmul.f32.gmra.mxu0 %v3227
        %v3255 = vpop.f32.mrf.mxu0
        %v3256 = vadd.f32 %v3210, %v3255
        %3257 = vdwg.mxu0
        %3258 = vmatpush.msra.mxu0 0.0
        %3259 = vmatpush.msra.mxu0 0.0
        %3260 = vmatpush.msra.mxu0 0.0
        %3261 = vmatpush.msra.mxu0 0.0
        %3262 = vmatpush.msra.mxu0 %v3206
        %3263 = vmatpush.msra.mxu0 %v3203
        %3264 = vmatpush.msra.mxu0 %v3200
        %3265 = vmatpush.msra.mxu0 %v3197
        %3266 = vmatpush.msra.mxu0 %v3194
        %3267 = vmatpush.msra.mxu0 %v3191
        %3268 = vmatpush.msra.mxu0 %v3188
        %3269 = vmatpush.msra.mxu0 %v3185
        %3270 = vmatpush.msra.mxu0 %v3182
        %3271 = vmatpush.msra.mxu0 %v3179
        %3272 = vmatpush.msra.mxu0 %v3176
        %3273 = vmatpush.msra.mxu0 %v3173
        %3274 = vmatmul.f32.gmra.mxu0 %v3218
        %v3275 = vpop.f32.mrf.mxu0
        %v3276 = vadd.f32 %v3211, %v3275
        %3277 = vmatmul.f32.gmra.mxu0 %v3221
        %v3278 = vpop.f32.mrf.mxu0
        %v3279 = vadd.f32 %v3211, %v3278
        %3280 = vmatmul.f32.gmra.mxu0 %v3224
        %v3281 = vpop.f32.mrf.mxu0
        %v3282 = vadd.f32 %v3211, %v3281
        %3283 = vmatmul.f32.gmra.mxu0 %v3227
        %v3284 = vpop.f32.mrf.mxu0
        %v3285 = vadd.f32 %v3211, %v3284
        %3286 = vdwg.mxu0
        %3287 = vmatpush.msra.mxu0 0.0
        %3288 = vmatpush.msra.mxu0 0.0
        %3289 = vmatpush.msra.mxu0 0.0
        %3290 = vmatpush.msra.mxu0 0.0
        %3291 = vmatpush.msra.mxu0 %v3207
        %3292 = vmatpush.msra.mxu0 %v3204
        %3293 = vmatpush.msra.mxu0 %v3201
        %3294 = vmatpush.msra.mxu0 %v3198
        %3295 = vmatpush.msra.mxu0 %v3195
        %3296 = vmatpush.msra.mxu0 %v3192
        %3297 = vmatpush.msra.mxu0 %v3189
        %3298 = vmatpush.msra.mxu0 %v3186
        %3299 = vmatpush.msra.mxu0 %v3183
        %3300 = vmatpush.msra.mxu0 %v3180
        %3301 = vmatpush.msra.mxu0 %v3177
        %3302 = vmatpush.msra.mxu0 %v3174
        %3303 = vmatmul.f32.gmra.mxu0 %v3218
        %v3304 = vpop.f32.mrf.mxu0
        %v3305 = vadd.f32 %v3212, %v3304
        %3306 = vmatmul.f32.gmra.mxu0 %v3221
        %v3307 = vpop.f32.mrf.mxu0
        %v3308 = vadd.f32 %v3212, %v3307
        %3309 = vmatmul.f32.gmra.mxu0 %v3224
        %v3310 = vpop.f32.mrf.mxu0
        %v3311 = vadd.f32 %v3212, %v3310
        %3312 = vmatmul.f32.gmra.mxu0 %v3227
        %v3313 = vpop.f32.mrf.mxu0
        %v3314 = vadd.f32 %v3212, %v3313
        %3315 = vdwg.mxu0
        %3316 = vst [vmem:[%s220] sm:$0xff] %v3247
        %3317 = vst [vmem:[%s220 + $0x8] sm:$0xff] %v3276
        %3318 = vst [vmem:[%s220 + $0x10] sm:$0xff] %v3305
        %3319 = vst [vmem:[%s220 + $0x18] sm:$0xff] %v3250
        %3320 = vst [vmem:[%s220 + $0x20] sm:$0xff] %v3279
        %3321 = vst [vmem:[%s220 + $0x28] sm:$0xff] %v3308
        %3322 = vst [vmem:[%s220 + $0x30] sm:$0xff] %v3253
        %3323 = vst [vmem:[%s220 + $0x38] sm:$0xff] %v3282
        %3324 = vst [vmem:[%s220 + $0x40] sm:$0xff] %v3311
        %3325 = vst [vmem:[%s220 + $0x48] sm:$0xff] %v3256
        %3326 = vst [vmem:[%s220 + $0x50] sm:$0xff] %v3285
        %3327 = vst [vmem:[%s220 + $0x58] sm:$0xff] %v3314
        %s3328 = sand.u32 %s137, 1
        %s3329 = scalar_lea.sflag [#allocation3], %s3328
        %s3330 = sand.u32 %s137, 1
        %s3331 = smul.addr %s3330, 96
        %s3332 = scalar_lea.vmem [#allocation2], %s3331
        // Predicated region
        $region41: #{tpu_custom_call.1} parent=39 // pred_check
          %p3333 = pneg %p147
        $region42: #{tpu_custom_call.1} parent=39 // pred_check_branch
          %3335 = sbr.rel (%p3333) target = $region44
        $region43: #{tpu_custom_call.1} parent=39 // pred_region
          %s3336 = smul.u32 4, %s19
          %3338 = vsyncadd %s3329, 0
          %s3339 = smul.addr %s3336, 3
          %s3340 = smul.addr %s3339, 8
          %s3341 = scalar_lea.hbm %s5, %s3340
          %s3342 = sshll.u32 %s3332, 4
          %s3343 = int_to_ptr.vmem [resolvable:$true] %s3342
          %s3344 = sshll.u32 %s3341, 4
          %s3345 = int_to_ptr.hbm [resolvable:$true] %s3344
          %3350 = dma.vmem_to_hbm [thread:$0]  %s3343, 1536, %s3345, %s3329, 384, 384, 24
        $region44: #{tpu_custom_call.1} parent=39 // pred_fallthru
          _
      $region40: #{tpu_custom_call.1} parent=5 // pred_fallthru
        _
      %p3351 = scmp.le.s32.totalorder 2, %s14
      // Predicated region
      $region45: #{tpu_custom_call.1} parent=5 // pred_check
        %p3352 = pneg %p3351
      $region46: #{tpu_custom_call.1} parent=5 // pred_check_branch
        %3354 = sbr.rel (%p3352) target = $region48
      $region47: #{tpu_custom_call.1} parent=5 // pred_region
        %s3355 = ssub.s32 %s14, 2
        // Predicated region
        $region49: #{tpu_custom_call.1} parent=47 // pred_check
          %p3356 = pneg %p153
        $region50: #{tpu_custom_call.1} parent=47 // pred_check_branch
          %3358 = sbr.rel (%p3356) target = $region52
        $region51: #{tpu_custom_call.1} parent=47 // pred_region
          %s3359 = sand.u32 %s138, 1
          %s3360 = scalar_lea.sflag [#allocation3], %s3359
          %s3361 = sand.u32 %s138, 1
          %s3362 = smul.addr %s3361, 96
          %s3363 = scalar_lea.vmem [#allocation2], %s3362
          %3365 = dma.done %s3360, 1536
        $region52: #{tpu_custom_call.1} parent=47 // pred_fallthru
          _
      $region48: #{tpu_custom_call.1} parent=5 // pred_fallthru
        _
    $region6: #{tpu_custom_call.1} parent=1 // loop_footer
      %s18 = sadd.s32 1, %s14
    $region7: #{tpu_custom_call.1} parent=1 // loop_footer_branch
      %13 = sbr.rel target = $region3
    $region8: #{tpu_custom_call.1} parent=1 // loop_exit
      _
    %3366 = vsyncpa [#allocation3], 1
    %s3367 = scalar_lea.sflag [#allocation3], 1
    %3368 = vsyncpa %s3367, 1

</llo_original>
